<compile_context>
chip_gen: v7x
topology: tpu7x:2x2x1
jax: 0.10.0
libtpu: 0.0.40
codegen_flags: <defaults>
</compile_context>

<pallas_src>
import functools

import jax
import jax.numpy as jnp
from jax.experimental import pallas as pl
from jax.experimental.pallas import tpu as pltpu


# ----------------------------- tiling / budgets -------------------------------
def _vmem_limit_bytes():
    """Generation-aware scoped-VMEM budget (3/4 of physical, capped)."""
    try:
        cap = int(pltpu.get_tpu_info().vmem_capacity_bytes)
    except Exception:  # pragma: no cover - conservative fallback
        cap = 64 * 1024 * 1024
    return min((cap * 3) // 4, 96 * 1024 * 1024)


def _pick_tile_n(n):
    """dst/node tile: multiple of 8, <= 256, keep >= 4 blocks for v7x megacore."""
    for t in (256, 128, 64, 32, 16, 8):
        if n % t == 0 and n // t >= 4:
            return t
    for t in (256, 128, 64, 32, 16, 8):
        if n % t == 0:
            return t
    return n


def _pick_tile_s(n):
    """src/reduction tile (lane dim of A): multiple of 128, as large as 512."""
    for t in (512, 384, 256, 128):
        if n % t == 0:
            return t
    return n


# ----------------------------- kernel 1: features + importance ----------------
def feat_kernel(x_ref, wi_ref, bi_ref, w1_ref, b1_ref, w2_ref, b2_ref,
                h_ref, imp_ref):
    # h = relu(x @ Wi + bi)            (bf16 MXU, f32 accumulate; stored bf16)
    h = jnp.dot(x_ref[...], wi_ref[...],
                preferred_element_type=jnp.float32) + bi_ref[...]
    h = jnp.maximum(h, 0.0)
    h_ref[...] = h.astype(jnp.bfloat16)
    # z = relu(h @ W1 + b1)
    z = jnp.dot(h.astype(jnp.bfloat16), w1_ref[...],
                preferred_element_type=jnp.float32) + b1_ref[...]
    z = jnp.maximum(z, 0.0)
    # importance = sigmoid(z @ w2 + b2): width-1 head -> VPU mul + lane reduce
    s = jnp.sum(z * w2_ref[...], axis=-1, keepdims=True) + b2_ref[...]
    imp_ref[...] = jax.nn.sigmoid(s)                      # [tile_n, 1] store


# ------------------- kernel 2: GCN hop (projection fused in epilogue) ---------
def hop_kernel(a_ref, hs_ref, dsrc_ref, ddst_ref, wg_ref, bg_ref,
               out_ref, acc_ref, *, tile_s, src_resident):
    k = pl.program_id(1)

    @pl.when(k == 0)
    def _():
        acc_ref[...] = jnp.zeros_like(acc_ref)

    if src_resident:
        off = pl.multiple_of(k * tile_s, tile_s)
        hs = hs_ref[pl.ds(off, tile_s), :]
    else:
        hs = hs_ref[...]
    # acc += A[dst, src_k] @ (D^-1/2_src * h[src_k])
    msrc = (hs.astype(jnp.float32) * dsrc_ref[...]).astype(jnp.bfloat16)
    acc_ref[...] += jnp.dot(a_ref[...], msrc, preferred_element_type=jnp.float32)

    @pl.when(k == pl.num_programs(1) - 1)
    def _():
        # (A D^-1/2 h) @ Wg, then dst-side normalization, bias, relu
        agg = jnp.dot(acc_ref[...].astype(jnp.bfloat16), wg_ref[...],
                      preferred_element_type=jnp.float32)
        out_ref[...] = jnp.maximum(agg * ddst_ref[...] + bg_ref[...],
                                   0.0).astype(out_ref.dtype)


# -------- kernel 3: last hop fused with the concat output head ----------------
def final_kernel(a_ref, hs_ref, dsrc_ref, ddst_ref, wg_ref, bg_ref,
                 h_ref, h1_ref, wo0_ref, wo1_ref, wo2_ref, bo_ref,
                 out_ref, acc_ref, *, tile_s, src_resident):
    k = pl.program_id(1)

    @pl.when(k == 0)
    def _():
        acc_ref[...] = jnp.zeros_like(acc_ref)

    if src_resident:
        off = pl.multiple_of(k * tile_s, tile_s)
        hs = hs_ref[pl.ds(off, tile_s), :]
    else:
        hs = hs_ref[...]
    msrc = (hs.astype(jnp.float32) * dsrc_ref[...]).astype(jnp.bfloat16)
    acc_ref[...] += jnp.dot(a_ref[...], msrc, preferred_element_type=jnp.float32)

    @pl.when(k == pl.num_programs(1) - 1)
    def _():
        agg = jnp.dot(acc_ref[...].astype(jnp.bfloat16), wg_ref[...],
                      preferred_element_type=jnp.float32)
        h2 = jnp.maximum(agg * ddst_ref[...] + bg_ref[...], 0.0)
        # concat([h, h1, h2], 1) @ Wo + bo == sum of three row-wise VPU dots
        s = (jnp.sum(h_ref[...].astype(jnp.float32) * wo0_ref[...],
                     axis=-1, keepdims=True)
             + jnp.sum(h1_ref[...].astype(jnp.float32) * wo1_ref[...],
                       axis=-1, keepdims=True)
             + jnp.sum(h2 * wo2_ref[...], axis=-1, keepdims=True)
             + bo_ref[...])
        out_ref[...] = s                                   # [tile_n, 1] store


# ----------------------------- parameters -------------------------------------
def init_params(key, in_dim, hidden_dim, k_hops):
    ks = jax.random.split(key, 4 + k_hops)

    def kaiming(k, fan_in, shape):                    # kaiming_normal_, gain=sqrt(2)
        return jax.random.normal(k, shape, jnp.float32) * jnp.sqrt(2.0 / fan_in)

    def glorot(k, fan_in, fan_out, shape):            # PyG GCNConv glorot
        lim = jnp.sqrt(6.0 / (fan_in + fan_out))
        return jax.random.uniform(k, shape, jnp.float32, -lim, lim)

    hh = hidden_dim // 2
    return {
        # weights stored transposed relative to torch ([in, out]) for x @ W.
        "wi": kaiming(ks[0], in_dim, (in_dim, hidden_dim)),
        "bi": jnp.zeros((1, hidden_dim), jnp.float32),
        "w1": kaiming(ks[1], hidden_dim, (hidden_dim, hh)),
        "b1": jnp.zeros((1, hh), jnp.float32),
        "w2": kaiming(ks[2], hh, (hh, 1)),
        "b2": jnp.zeros((1, 1), jnp.float32),
        "wg": [glorot(ks[4 + i], hidden_dim, hidden_dim,
                      (hidden_dim, hidden_dim)) for i in range(k_hops)],
        "bg": [jnp.zeros((1, hidden_dim), jnp.float32) for _ in range(k_hops)],
        "wo": kaiming(ks[3], hidden_dim * (k_hops + 1),
                      (hidden_dim * (k_hops + 1), 1)),
        "bo": jnp.zeros((1, 1), jnp.float32),
    }


# ----------------------------- forward -----------------------------------------
def selective_multihop_gcn(params, x, edge_index):
    N, F = x.shape
    H = params["wi"].shape[1]
    HH = params["w1"].shape[1]
    # TODO(synk): pad N to a multiple of 128 for ragged node counts.
    assert N % 128 == 0
    # TODO(synk): k_hops fixed to 2 (module default); k > 2 adds extra hop passes.
    assert len(params["wg"]) == 2

    tile_n = _pick_tile_n(N)
    tile_s = _pick_tile_s(N)
    n_t = N // tile_n
    n_s = N // tile_s
    vmem_limit = _vmem_limit_bytes()

    def cparams(sem):
        return pltpu.CompilerParams(dimension_semantics=sem,
                                    vmem_limit_bytes=vmem_limit)

    # bf16 copies of everything feeding the MXU (biases / head rows stay f32).
    xb = x.astype(jnp.bfloat16)
    wi = params["wi"].astype(jnp.bfloat16)
    w1 = params["w1"].astype(jnp.bfloat16)
    wg = [w.astype(jnp.bfloat16) for w in params["wg"]]
    w2_row = params["w2"].T                           # [1, HH]  (VPU head)
    wo0 = params["wo"][0 * H:1 * H].T                 # [1, H]
    wo1 = params["wo"][1 * H:2 * H].T                 # [1, H]
    wo2 = params["wo"][2 * H:3 * H].T                 # [1, H]

    # ---- stage 1: input transform + node-importance MLP (row-tiled) ----------
    h, imp = pl.pallas_call(
        feat_kernel,
        out_shape=(jax.ShapeDtypeStruct((N, H), jnp.bfloat16),
                   jax.ShapeDtypeStruct((N, 1), jnp.float32)),
        grid_spec=pltpu.PrefetchScalarGridSpec(
            num_scalar_prefetch=0, grid=(n_t,),
            in_specs=[
                pl.BlockSpec((tile_n, F), lambda i: (i, 0)),
                pl.BlockSpec((F, H), lambda i: (0, 0)),      # resident weights
                pl.BlockSpec((1, H), lambda i: (0, 0)),
                pl.BlockSpec((H, HH), lambda i: (0, 0)),
                pl.BlockSpec((1, HH), lambda i: (0, 0)),
                pl.BlockSpec((1, HH), lambda i: (0, 0)),
                pl.BlockSpec((1, 1), lambda i: (0, 0)),
            ],
            out_specs=(pl.BlockSpec((tile_n, H), lambda i: (i, 0)),
                       pl.BlockSpec((tile_n, 1), lambda i: (i, 0)))),
        compiler_params=cparams(("parallel",)),
    )(xb, wi, params["bi"], w1, params["b1"], w2_row, params["b2"])

    # ---- stage 2 (glue): importance edge filter -> normalized dense graph ----
    # TODO(synk): dense A is O(N^2); for large sparse graphs build per-dst-tile
    # adjacency inside the kernel from dst-sorted edge lists via scalar prefetch.
    row, col = edge_index[0], edge_index[1]
    imp_n = imp[:, 0]
    ew = (imp_n[row] + imp_n[col]) * 0.5                     # [E]
    thr = ew.mean() + jnp.std(ew, ddof=1)                    # torch .std(): unbiased
    keep = (ew > thr) & (row != col)                         # gcn_norm drops self-loops
    w = keep.astype(jnp.float32)
    # O(E) degree: one self-loop per node + kept incoming edges (duplicates sum).
    deg = 1.0 + jax.ops.segment_sum(w, col, num_segments=N)
    dinv = jax.lax.rsqrt(deg).reshape(N, 1)                  # deg >= 1 (self-loop)
    # Single bf16 scatter: edges + self-loop diagonal. Small integers are exact.
    # TODO(synk): > 256 parallel duplicate edges between one pair would round in bf16.
    nodes = jnp.arange(N, dtype=col.dtype)
    A = jnp.zeros((N, N), jnp.bfloat16).at[
        jnp.concatenate([col, nodes]), jnp.concatenate([row, nodes])
    ].add(jnp.concatenate([w, jnp.ones((N,), jnp.float32)]).astype(jnp.bfloat16))
    # TODO(synk): on v7x an fp8 A would halve the dominant A stream (MXU fp8 path).

    # ---- stage 3: GCN hops (projection fused) + fused output head ------------
    # Keep source features fully VMEM-resident when they fit the budget.
    src_resident = (2 * N * H * 2) <= vmem_limit // 4
    hs_spec = (pl.BlockSpec((N, H), lambda i, k: (0, 0)) if src_resident
               else pl.BlockSpec((tile_s, H), lambda i, k: (k, 0)))
    common_in = [
        pl.BlockSpec((tile_n, tile_s), lambda i, k: (i, k)),  # A tile
        hs_spec,                                              # source features
        pl.BlockSpec((tile_s, 1), lambda i, k: (k, 0)),       # dinv (src side)
        pl.BlockSpec((tile_n, 1), lambda i, k: (i, 0)),       # dinv (dst side)
        pl.BlockSpec((H, H), lambda i, k: (0, 0)),            # Wg (resident)
        pl.BlockSpec((1, H), lambda i, k: (0, 0)),            # bg
    ]
    agg_grid = (n_t, n_s)

    # hop 1: h1 = relu(D^-1/2 A D^-1/2 h Wg1 + bg1)
    h1 = pl.pallas_call(
        functools.partial(hop_kernel, tile_s=tile_s, src_resident=src_resident),
        out_shape=jax.ShapeDtypeStruct((N, H), jnp.bfloat16),
        grid_spec=pltpu.PrefetchScalarGridSpec(
            num_scalar_prefetch=0, grid=agg_grid,
            in_specs=common_in,
            out_specs=pl.BlockSpec((tile_n, H), lambda i, k: (i, 0)),
            scratch_shapes=[pltpu.VMEM((tile_n, H), jnp.float32)]),
        compiler_params=cparams(("parallel", "arbitrary")),
    )(A, h, dinv, dinv, wg[0], params["bg"][0])

    # hop 2 fused with the concat output head (h2 never materialized in HBM).
    out = pl.pallas_call(
        functools.partial(final_kernel, tile_s=tile_s, src_resident=src_resident),
        out_shape=jax.ShapeDtypeStruct((N, 1), jnp.float32),
        grid_spec=pltpu.PrefetchScalarGridSpec(
            num_scalar_prefetch=0, grid=agg_grid,
            in_specs=common_in + [
                pl.BlockSpec((tile_n, H), lambda i, k: (i, 0)),   # h   (dst rows)
                pl.BlockSpec((tile_n, H), lambda i, k: (i, 0)),   # h1  (dst rows)
                pl.BlockSpec((1, H), lambda i, k: (0, 0)),        # wo0
                pl.BlockSpec((1, H), lambda i, k: (0, 0)),        # wo1
                pl.BlockSpec((1, H), lambda i, k: (0, 0)),        # wo2
                pl.BlockSpec((1, 1), lambda i, k: (0, 0))],       # bo
            out_specs=pl.BlockSpec((tile_n, 1), lambda i, k: (i, 0)),
            scratch_shapes=[pltpu.VMEM((tile_n, H), jnp.float32)]),
        compiler_params=cparams(("parallel", "arbitrary")),
    )(A, h1, dinv, dinv, wg[1], params["bg"][1], h, h1, wo0, wo1, wo2,
      params["bo"])

    return out[:, 0]                                          # .squeeze()


# ----------------------------- main ---------------------------------------------
if __name__ == "__main__":
    key = jax.random.PRNGKey(0)
    k_x, k_src, k_dst, k_p = jax.random.split(key, 4)

    # hidden=128 matches the module default and is lane-dense on TPU.
    N, in_dim, hidden, k_hops, E = 256, 16, 128, 2, 2048

    x = jax.random.normal(k_x, (N, in_dim), jnp.float32)
    src = jax.random.randint(k_src, (E,), 0, N)
    dst = jax.random.randint(k_dst, (E,), 0, N)
    dst = jnp.where(dst == src, (dst + 1) % N, dst)           # no raw self-loops
    edge_index = jnp.stack([src, dst], axis=0)                # [2, E]

    params = init_params(k_p, in_dim, hidden, k_hops)

    out = jax.jit(selective_multihop_gcn)(params, x, edge_index)
    jax.block_until_ready(out)
    assert out.shape == (N,) and out.dtype == jnp.float32
    print("KERNEL_OK")
</pallas_src>

<mosaic_0001>
module attributes {stable_mosaic.version = 11 : i64} {
  func.func private @main(%arg0: i32) attributes {dimension_semantics = [#tpu.dimension_semantics<core_parallel>], iteration_bounds = array<i64: 2>, tpu.core_type = #tpu.core_type<sc_scalar_subcore>, window_params = []} {
    return
  }
}

module attributes {stable_mosaic.version = 11 : i64} {
  func.func private @main(%arg0: i32) attributes {dimension_semantics = [#tpu.dimension_semantics<core_parallel>], iteration_bounds = array<i64: 2>, tpu.core_type = #tpu.core_type<sc_scalar_subcore>, window_params = []} {
    return
  }
}

module attributes {stable_mosaic.version = 11 : i64} {
  func.func @feat_kernel(%arg0: i32, %arg1: memref<64x16xbf16, #tpu.memory_space<vmem>>, %arg2: memref<16x128xbf16, #tpu.memory_space<vmem>>, %arg3: memref<1x128xf32, #tpu.memory_space<vmem>>, %arg4: memref<128x64xbf16, #tpu.memory_space<vmem>>, %arg5: memref<1x64xf32, #tpu.memory_space<vmem>>, %arg6: memref<1x64xf32, #tpu.memory_space<vmem>>, %arg7: memref<1x1xf32, #tpu.memory_space<vmem>>, %arg8: memref<64x128xbf16, #tpu.memory_space<vmem>>, %arg9: memref<64x1xf32, #tpu.memory_space<vmem>>) attributes {dimension_semantics = [#tpu.dimension_semantics<parallel>], iteration_bounds = array<i64: 4>, scalar_prefetch = 0 : i64, scratch_operands = 0 : i64, tpu.core_type = #tpu.core_type<tc>, window_params = [{transform_indices = @transform_0, window_bounds = array<i64: 64, 16>}, {pipeline_mode = #tpu.pipeline_mode<synchronous>, transform_indices = @transform_1, window_bounds = array<i64: 16, 128>}, {pipeline_mode = #tpu.pipeline_mode<synchronous>, transform_indices = @transform_2, window_bounds = array<i64: 1, 128>}, {pipeline_mode = #tpu.pipeline_mode<synchronous>, transform_indices = @transform_3, window_bounds = array<i64: 128, 64>}, {pipeline_mode = #tpu.pipeline_mode<synchronous>, transform_indices = @transform_4, window_bounds = array<i64: 1, 64>}, {pipeline_mode = #tpu.pipeline_mode<synchronous>, transform_indices = @transform_5, window_bounds = array<i64: 1, 64>}, {pipeline_mode = #tpu.pipeline_mode<synchronous>, transform_indices = @transform_6, window_bounds = array<i64: 1, 1>}, {transform_indices = @transform_7, window_bounds = array<i64: 64, 128>}, {transform_indices = @transform_8, window_bounds = array<i64: 64, 1>}]} {
    %c0 = arith.constant 0 : index
    %c0_0 = arith.constant 0 : index
    %0 = vector.load %arg1[%c0, %c0_0] : memref<64x16xbf16, #tpu.memory_space<vmem>>, vector<64x16xbf16>
    %c0_1 = arith.constant 0 : index
    %c0_2 = arith.constant 0 : index
    %1 = vector.load %arg2[%c0_1, %c0_2] : memref<16x128xbf16, #tpu.memory_space<vmem>>, vector<16x128xbf16>
    %cst = arith.constant dense<0.000000e+00> : vector<64x128xf32>
    %2 = tpu.matmul %0, %1, %cst {dimension_numbers = #tpu.dot_dimension_numbers<[1], [0], [0], [1], [0, 0, 1, 1], [], []>} : vector<64x16xbf16>, vector<16x128xbf16>, vector<64x128xf32> -> vector<64x128xf32>
    %c0_3 = arith.constant 0 : index
    %c0_4 = arith.constant 0 : index
    %3 = vector.load %arg3[%c0_3, %c0_4] : memref<1x128xf32, #tpu.memory_space<vmem>>, vector<1x128xf32>
    %4 = vector.broadcast %3 : vector<1x128xf32> to vector<64x128xf32>
    %5 = arith.addf %2, %4 : vector<64x128xf32>
    %cst_5 = arith.constant 0.000000e+00 : f32
    %6 = vector.broadcast %cst_5 : f32 to vector<64x128xf32>
    %7 = arith.maximumf %5, %6 : vector<64x128xf32>
    %8 = arith.truncf %7 : vector<64x128xf32> to vector<64x128xbf16>
    %c0_6 = arith.constant 0 : index
    %c0_7 = arith.constant 0 : index
    %9 = vector.load %arg8[%c0_6, %c0_7] : memref<64x128xbf16, #tpu.memory_space<vmem>>, vector<64x128xbf16>
    tpu.vector_store %arg8[%c0_6, %c0_7], %8 {strides = array<i32>} : memref<64x128xbf16, #tpu.memory_space<vmem>>, vector<64x128xbf16>,
    %10 = arith.truncf %7 : vector<64x128xf32> to vector<64x128xbf16>
    %c0_8 = arith.constant 0 : index
    %c0_9 = arith.constant 0 : index
    %11 = vector.load %arg4[%c0_8, %c0_9] : memref<128x64xbf16, #tpu.memory_space<vmem>>, vector<128x64xbf16>
    %cst_10 = arith.constant dense<0.000000e+00> : vector<64x64xf32>
    %12 = tpu.matmul %10, %11, %cst_10 {dimension_numbers = #tpu.dot_dimension_numbers<[1], [0], [0], [1], [0, 0, 1, 1], [], []>} : vector<64x128xbf16>, vector<128x64xbf16>, vector<64x64xf32> -> vector<64x64xf32>
    %c0_11 = arith.constant 0 : index
    %c0_12 = arith.constant 0 : index
    %13 = vector.load %arg5[%c0_11, %c0_12] : memref<1x64xf32, #tpu.memory_space<vmem>>, vector<1x64xf32>
    %14 = vector.broadcast %13 : vector<1x64xf32> to vector<64x64xf32>
    %15 = arith.addf %12, %14 : vector<64x64xf32>
    %cst_13 = arith.constant 0.000000e+00 : f32
    %16 = vector.broadcast %cst_13 : f32 to vector<64x64xf32>
    %17 = arith.maximumf %15, %16 : vector<64x64xf32>
    %c0_14 = arith.constant 0 : index
    %c0_15 = arith.constant 0 : index
    %18 = vector.load %arg6[%c0_14, %c0_15] : memref<1x64xf32, #tpu.memory_space<vmem>>, vector<1x64xf32>
    %19 = vector.broadcast %18 : vector<1x64xf32> to vector<64x64xf32>
    %20 = arith.mulf %17, %19 : vector<64x64xf32>
    %cst_16 = arith.constant dense<0.000000e+00> : vector<64xf32>
    %21 = vector.multi_reduction <add>, %20, %cst_16 [1] : vector<64x64xf32> to vector<64xf32>
    %22 = vector.shape_cast %21 : vector<64xf32> to vector<64x1xf32>
    %c0_17 = arith.constant 0 : index
    %c0_18 = arith.constant 0 : index
    %23 = vector.load %arg7[%c0_17, %c0_18] : memref<1x1xf32, #tpu.memory_space<vmem>>, vector<1x1xf32>
    %24 = vector.broadcast %23 : vector<1x1xf32> to vector<64x1xf32>
    %25 = arith.addf %22, %24 : vector<64x1xf32>
    %26 = arith.negf %25 : vector<64x1xf32>
    %27 = math.exp %26 : vector<64x1xf32>
    %cst_19 = arith.constant 1.000000e+00 : f32
    %28 = vector.broadcast %cst_19 : f32 to vector<64x1xf32>
    %29 = arith.addf %28, %27 : vector<64x1xf32>
    %30 = arith.divf %28, %29 : vector<64x1xf32>
    %c0_20 = arith.constant 0 : index
    %c0_21 = arith.constant 0 : index
    %31 = vector.load %arg9[%c0_20, %c0_21] : memref<64x1xf32, #tpu.memory_space<vmem>>, vector<64x1xf32>
    tpu.vector_store %arg9[%c0_20, %c0_21], %30 {strides = array<i32>} : memref<64x1xf32, #tpu.memory_space<vmem>>, vector<64x1xf32>,
    return
  }
  func.func @transform_0(%arg0: i32) -> (i32, i32) {
    %c0_i32 = arith.constant 0 : i32
    %c0_i32_0 = arith.constant 0 : i32
    return %arg0, %c0_i32 : i32, i32
  }
  func.func @transform_1(%arg0: i32) -> (i32, i32) {
    %c0_i32 = arith.constant 0 : i32
    %c0_i32_0 = arith.constant 0 : i32
    %c0_i32_1 = arith.constant 0 : i32
    return %c0_i32, %c0_i32_0 : i32, i32
  }
  func.func @transform_2(%arg0: i32) -> (i32, i32) {
    %c0_i32 = arith.constant 0 : i32
    %c0_i32_0 = arith.constant 0 : i32
    %c0_i32_1 = arith.constant 0 : i32
    return %c0_i32, %c0_i32_0 : i32, i32
  }
  func.func @transform_3(%arg0: i32) -> (i32, i32) {
    %c0_i32 = arith.constant 0 : i32
    %c0_i32_0 = arith.constant 0 : i32
    %c0_i32_1 = arith.constant 0 : i32
    return %c0_i32, %c0_i32_0 : i32, i32
  }
  func.func @transform_4(%arg0: i32) -> (i32, i32) {
    %c0_i32 = arith.constant 0 : i32
    %c0_i32_0 = arith.constant 0 : i32
    %c0_i32_1 = arith.constant 0 : i32
    return %c0_i32, %c0_i32_0 : i32, i32
  }
  func.func @transform_5(%arg0: i32) -> (i32, i32) {
    %c0_i32 = arith.constant 0 : i32
    %c0_i32_0 = arith.constant 0 : i32
    %c0_i32_1 = arith.constant 0 : i32
    return %c0_i32, %c0_i32_0 : i32, i32
  }
  func.func @transform_6(%arg0: i32) -> (i32, i32) {
    %c0_i32 = arith.constant 0 : i32
    %c0_i32_0 = arith.constant 0 : i32
    %c0_i32_1 = arith.constant 0 : i32
    return %c0_i32, %c0_i32_0 : i32, i32
  }
  func.func @transform_7(%arg0: i32) -> (i32, i32) {
    %c0_i32 = arith.constant 0 : i32
    %c0_i32_0 = arith.constant 0 : i32
    return %arg0, %c0_i32 : i32, i32
  }
  func.func @transform_8(%arg0: i32) -> (i32, i32) {
    %c0_i32 = arith.constant 0 : i32
    %c0_i32_0 = arith.constant 0 : i32
    return %arg0, %c0_i32 : i32, i32
  }
}

module attributes {stable_mosaic.version = 11 : i64} {
  func.func @hop_kernel(%arg0: i32, %arg1: i32, %arg2: memref<64x256xbf16, #tpu.memory_space<vmem>>, %arg3: memref<256x128xbf16, #tpu.memory_space<vmem>>, %arg4: memref<256x1xf32, #tpu.memory_space<vmem>>, %arg5: memref<64x1xf32, #tpu.memory_space<vmem>>, %arg6: memref<128x128xbf16, #tpu.memory_space<vmem>>, %arg7: memref<1x128xf32, #tpu.memory_space<vmem>>, %arg8: memref<64x128xbf16, #tpu.memory_space<vmem>>, %arg9: memref<64x128xf32, #tpu.memory_space<vmem>>) attributes {dimension_semantics = [#tpu.dimension_semantics<parallel>, #tpu.dimension_semantics<arbitrary>], iteration_bounds = array<i64: 4, 1>, scalar_prefetch = 0 : i64, scratch_operands = 1 : i64, tpu.core_type = #tpu.core_type<tc>, window_params = [{transform_indices = @transform_0, window_bounds = array<i64: 64, 256>}, {pipeline_mode = #tpu.pipeline_mode<synchronous>, transform_indices = @transform_1, window_bounds = array<i64: 256, 128>}, {transform_indices = @transform_2, window_bounds = array<i64: 256, 1>}, {transform_indices = @transform_3, window_bounds = array<i64: 64, 1>}, {pipeline_mode = #tpu.pipeline_mode<synchronous>, transform_indices = @transform_4, window_bounds = array<i64: 128, 128>}, {pipeline_mode = #tpu.pipeline_mode<synchronous>, transform_indices = @transform_5, window_bounds = array<i64: 1, 128>}, {transform_indices = @transform_6, window_bounds = array<i64: 64, 128>}]} {
    %c0_i32 = arith.constant 0 : i32
    %0 = arith.cmpi eq, %arg1, %c0_i32 : i32
    %1 = arith.extui %0 : i1 to i32
    %c0_i32_0 = arith.constant 0 : i32
    %2 = arith.cmpi ne, %1, %c0_i32_0 : i32
    scf.if %2 {
      %cst_11 = arith.constant 0.000000e+00 : f32
      %20 = vector.broadcast %cst_11 : f32 to vector<64x128xf32>
      %c0_12 = arith.constant 0 : index
      %c0_13 = arith.constant 0 : index
      %21 = vector.load %arg9[%c0_12, %c0_13] : memref<64x128xf32, #tpu.memory_space<vmem>>, vector<64x128xf32>
      tpu.vector_store %arg9[%c0_12, %c0_13], %20 {strides = array<i32>} : memref<64x128xf32, #tpu.memory_space<vmem>>, vector<64x128xf32>,
    } else {
    }
    %c256_i32 = arith.constant 256 : i32
    %3 = arith.muli %arg1, %c256_i32 : i32
    %4 = tpu.assume_multiple %3, 256 : i32
    %5 = arith.index_cast %4 : i32 to index
    %c0 = arith.constant 0 : index
    %6 = vector.load %arg3[%5, %c0] : memref<256x128xbf16, #tpu.memory_space<vmem>>, vector<256x128xbf16>
    %7 = arith.extf %6 : vector<256x128xbf16> to vector<256x128xf32>
    %c0_1 = arith.constant 0 : index
    %c0_2 = arith.constant 0 : index
    %8 = vector.load %arg4[%c0_1, %c0_2] : memref<256x1xf32, #tpu.memory_space<vmem>>, vector<256x1xf32>
    %9 = vector.broadcast %8 : vector<256x1xf32> to vector<256x128xf32>
    %10 = arith.mulf %7, %9 : vector<256x128xf32>
    %11 = arith.truncf %10 : vector<256x128xf32> to vector<256x128xbf16>
    %c0_3 = arith.constant 0 : index
    %c0_4 = arith.constant 0 : index
    %12 = vector.load %arg9[%c0_3, %c0_4] : memref<64x128xf32, #tpu.memory_space<vmem>>, vector<64x128xf32>
    %c0_5 = arith.constant 0 : index
    %c0_6 = arith.constant 0 : index
    %13 = vector.load %arg2[%c0_5, %c0_6] : memref<64x256xbf16, #tpu.memory_space<vmem>>, vector<64x256xbf16>
    %cst = arith.constant dense<0.000000e+00> : vector<64x128xf32>
    %14 = tpu.matmul %13, %11, %cst {dimension_numbers = #tpu.dot_dimension_numbers<[1], [0], [0], [1], [0, 0, 1, 1], [], []>} : vector<64x256xbf16>, vector<256x128xbf16>, vector<64x128xf32> -> vector<64x128xf32>
    %15 = arith.addf %12, %14 : vector<64x128xf32>
    %c0_7 = arith.constant 0 : index
    %c0_8 = arith.constant 0 : index
    %16 = vector.load %arg9[%c0_7, %c0_8] : memref<64x128xf32, #tpu.memory_space<vmem>>, vector<64x128xf32>
    tpu.vector_store %arg9[%c0_7, %c0_8], %15 {strides = array<i32>} : memref<64x128xf32, #tpu.memory_space<vmem>>, vector<64x128xf32>,
    %c0_i32_9 = arith.constant 0 : i32
    %17 = arith.cmpi eq, %arg1, %c0_i32_9 : i32
    %18 = arith.extui %17 : i1 to i32
    %c0_i32_10 = arith.constant 0 : i32
    %19 = arith.cmpi ne, %18, %c0_i32_10 : i32
    scf.if %19 {
      %c0_11 = arith.constant 0 : index
      %c0_12 = arith.constant 0 : index
      %20 = vector.load %arg9[%c0_11, %c0_12] : memref<64x128xf32, #tpu.memory_space<vmem>>, vector<64x128xf32>
      %21 = arith.truncf %20 : vector<64x128xf32> to vector<64x128xbf16>
      %c0_13 = arith.constant 0 : index
      %c0_14 = arith.constant 0 : index
      %22 = vector.load %arg6[%c0_13, %c0_14] : memref<128x128xbf16, #tpu.memory_space<vmem>>, vector<128x128xbf16>
      %cst_15 = arith.constant dense<0.000000e+00> : vector<64x128xf32>
      %23 = tpu.matmul %21, %22, %cst_15 {dimension_numbers = #tpu.dot_dimension_numbers<[1], [0], [0], [1], [0, 0, 1, 1], [], []>} : vector<64x128xbf16>, vector<128x128xbf16>, vector<64x128xf32> -> vector<64x128xf32>
      %c0_16 = arith.constant 0 : index
      %c0_17 = arith.constant 0 : index
      %24 = vector.load %arg5[%c0_16, %c0_17] : memref<64x1xf32, #tpu.memory_space<vmem>>, vector<64x1xf32>
      %25 = vector.broadcast %24 : vector<64x1xf32> to vector<64x128xf32>
      %26 = arith.mulf %23, %25 : vector<64x128xf32>
      %c0_18 = arith.constant 0 : index
      %c0_19 = arith.constant 0 : index
      %27 = vector.load %arg7[%c0_18, %c0_19] : memref<1x128xf32, #tpu.memory_space<vmem>>, vector<1x128xf32>
      %28 = vector.broadcast %27 : vector<1x128xf32> to vector<64x128xf32>
      %29 = arith.addf %26, %28 : vector<64x128xf32>
      %cst_20 = arith.constant 0.000000e+00 : f32
      %30 = vector.broadcast %cst_20 : f32 to vector<64x128xf32>
      %31 = arith.maximumf %29, %30 : vector<64x128xf32>
      %32 = arith.truncf %31 : vector<64x128xf32> to vector<64x128xbf16>
      %c0_21 = arith.constant 0 : index
      %c0_22 = arith.constant 0 : index
      %33 = vector.load %arg8[%c0_21, %c0_22] : memref<64x128xbf16, #tpu.memory_space<vmem>>, vector<64x128xbf16>
      tpu.vector_store %arg8[%c0_21, %c0_22], %32 {strides = array<i32>} : memref<64x128xbf16, #tpu.memory_space<vmem>>, vector<64x128xbf16>,
    } else {
    }
    return
  }
  func.func @transform_0(%arg0: i32, %arg1: i32) -> (i32, i32) {
    %c0_i32 = arith.constant 0 : i32
    return %arg0, %arg1 : i32, i32
  }
  func.func @transform_1(%arg0: i32, %arg1: i32) -> (i32, i32) {
    %c0_i32 = arith.constant 0 : i32
    %c0_i32_0 = arith.constant 0 : i32
    %c0_i32_1 = arith.constant 0 : i32
    return %c0_i32, %c0_i32_0 : i32, i32
  }
  func.func @transform_2(%arg0: i32, %arg1: i32) -> (i32, i32) {
    %c0_i32 = arith.constant 0 : i32
    %c0_i32_0 = arith.constant 0 : i32
    return %arg1, %c0_i32 : i32, i32
  }
  func.func @transform_3(%arg0: i32, %arg1: i32) -> (i32, i32) {
    %c0_i32 = arith.constant 0 : i32
    %c0_i32_0 = arith.constant 0 : i32
    return %arg0, %c0_i32 : i32, i32
  }
  func.func @transform_4(%arg0: i32, %arg1: i32) -> (i32, i32) {
    %c0_i32 = arith.constant 0 : i32
    %c0_i32_0 = arith.constant 0 : i32
    %c0_i32_1 = arith.constant 0 : i32
    return %c0_i32, %c0_i32_0 : i32, i32
  }
  func.func @transform_5(%arg0: i32, %arg1: i32) -> (i32, i32) {
    %c0_i32 = arith.constant 0 : i32
    %c0_i32_0 = arith.constant 0 : i32
    %c0_i32_1 = arith.constant 0 : i32
    return %c0_i32, %c0_i32_0 : i32, i32
  }
  func.func @transform_6(%arg0: i32, %arg1: i32) -> (i32, i32) {
    %c0_i32 = arith.constant 0 : i32
    %c0_i32_0 = arith.constant 0 : i32
    return %arg0, %c0_i32 : i32, i32
  }
}

module attributes {stable_mosaic.version = 11 : i64} {
  func.func @final_kernel(%arg0: i32, %arg1: i32, %arg2: memref<64x256xbf16, #tpu.memory_space<vmem>>, %arg3: memref<256x128xbf16, #tpu.memory_space<vmem>>, %arg4: memref<256x1xf32, #tpu.memory_space<vmem>>, %arg5: memref<64x1xf32, #tpu.memory_space<vmem>>, %arg6: memref<128x128xbf16, #tpu.memory_space<vmem>>, %arg7: memref<1x128xf32, #tpu.memory_space<vmem>>, %arg8: memref<64x128xbf16, #tpu.memory_space<vmem>>, %arg9: memref<64x128xbf16, #tpu.memory_space<vmem>>, %arg10: memref<1x128xf32, #tpu.memory_space<vmem>>, %arg11: memref<1x128xf32, #tpu.memory_space<vmem>>, %arg12: memref<1x128xf32, #tpu.memory_space<vmem>>, %arg13: memref<1x1xf32, #tpu.memory_space<vmem>>, %arg14: memref<64x1xf32, #tpu.memory_space<vmem>>, %arg15: memref<64x128xf32, #tpu.memory_space<vmem>>) attributes {dimension_semantics = [#tpu.dimension_semantics<parallel>, #tpu.dimension_semantics<arbitrary>], iteration_bounds = array<i64: 4, 1>, scalar_prefetch = 0 : i64, scratch_operands = 1 : i64, tpu.core_type = #tpu.core_type<tc>, window_params = [{transform_indices = @transform_0, window_bounds = array<i64: 64, 256>}, {pipeline_mode = #tpu.pipeline_mode<synchronous>, transform_indices = @transform_1, window_bounds = array<i64: 256, 128>}, {transform_indices = @transform_2, window_bounds = array<i64: 256, 1>}, {transform_indices = @transform_3, window_bounds = array<i64: 64, 1>}, {pipeline_mode = #tpu.pipeline_mode<synchronous>, transform_indices = @transform_4, window_bounds = array<i64: 128, 128>}, {pipeline_mode = #tpu.pipeline_mode<synchronous>, transform_indices = @transform_5, window_bounds = array<i64: 1, 128>}, {transform_indices = @transform_6, window_bounds = array<i64: 64, 128>}, {transform_indices = @transform_7, window_bounds = array<i64: 64, 128>}, {pipeline_mode = #tpu.pipeline_mode<synchronous>, transform_indices = @transform_8, window_bounds = array<i64: 1, 128>}, {pipeline_mode = #tpu.pipeline_mode<synchronous>, transform_indices = @transform_9, window_bounds = array<i64: 1, 128>}, {pipeline_mode = #tpu.pipeline_mode<synchronous>, transform_indices = @transform_10, window_bounds = array<i64: 1, 128>}, {pipeline_mode = #tpu.pipeline_mode<synchronous>, transform_indices = @transform_11, window_bounds = array<i64: 1, 1>}, {transform_indices = @transform_12, window_bounds = array<i64: 64, 1>}]} {
    %c0_i32 = arith.constant 0 : i32
    %0 = arith.cmpi eq, %arg1, %c0_i32 : i32
    %1 = arith.extui %0 : i1 to i32
    %c0_i32_0 = arith.constant 0 : i32
    %2 = arith.cmpi ne, %1, %c0_i32_0 : i32
    scf.if %2 {
      %cst_11 = arith.constant 0.000000e+00 : f32
      %20 = vector.broadcast %cst_11 : f32 to vector<64x128xf32>
      %c0_12 = arith.constant 0 : index
      %c0_13 = arith.constant 0 : index
      %21 = vector.load %arg15[%c0_12, %c0_13] : memref<64x128xf32, #tpu.memory_space<vmem>>, vector<64x128xf32>
      tpu.vector_store %arg15[%c0_12, %c0_13], %20 {strides = array<i32>} : memref<64x128xf32, #tpu.memory_space<vmem>>, vector<64x128xf32>,
    } else {
    }
    %c256_i32 = arith.constant 256 : i32
    %3 = arith.muli %arg1, %c256_i32 : i32
    %4 = tpu.assume_multiple %3, 256 : i32
    %5 = arith.index_cast %4 : i32 to index
    %c0 = arith.constant 0 : index
    %6 = vector.load %arg3[%5, %c0] : memref<256x128xbf16, #tpu.memory_space<vmem>>, vector<256x128xbf16>
    %7 = arith.extf %6 : vector<256x128xbf16> to vector<256x128xf32>
    %c0_1 = arith.constant 0 : index
    %c0_2 = arith.constant 0 : index
    %8 = vector.load %arg4[%c0_1, %c0_2] : memref<256x1xf32, #tpu.memory_space<vmem>>, vector<256x1xf32>
    %9 = vector.broadcast %8 : vector<256x1xf32> to vector<256x128xf32>
    %10 = arith.mulf %7, %9 : vector<256x128xf32>
    %11 = arith.truncf %10 : vector<256x128xf32> to vector<256x128xbf16>
    %c0_3 = arith.constant 0 : index
    %c0_4 = arith.constant 0 : index
    %12 = vector.load %arg15[%c0_3, %c0_4] : memref<64x128xf32, #tpu.memory_space<vmem>>, vector<64x128xf32>
    %c0_5 = arith.constant 0 : index
    %c0_6 = arith.constant 0 : index
    %13 = vector.load %arg2[%c0_5, %c0_6] : memref<64x256xbf16, #tpu.memory_space<vmem>>, vector<64x256xbf16>
    %cst = arith.constant dense<0.000000e+00> : vector<64x128xf32>
    %14 = tpu.matmul %13, %11, %cst {dimension_numbers = #tpu.dot_dimension_numbers<[1], [0], [0], [1], [0, 0, 1, 1], [], []>} : vector<64x256xbf16>, vector<256x128xbf16>, vector<64x128xf32> -> vector<64x128xf32>
    %15 = arith.addf %12, %14 : vector<64x128xf32>
    %c0_7 = arith.constant 0 : index
    %c0_8 = arith.constant 0 : index
    %16 = vector.load %arg15[%c0_7, %c0_8] : memref<64x128xf32, #tpu.memory_space<vmem>>, vector<64x128xf32>
    tpu.vector_store %arg15[%c0_7, %c0_8], %15 {strides = array<i32>} : memref<64x128xf32, #tpu.memory_space<vmem>>, vector<64x128xf32>,
    %c0_i32_9 = arith.constant 0 : i32
    %17 = arith.cmpi eq, %arg1, %c0_i32_9 : i32
    %18 = arith.extui %17 : i1 to i32
    %c0_i32_10 = arith.constant 0 : i32
    %19 = arith.cmpi ne, %18, %c0_i32_10 : i32
    scf.if %19 {
      %c0_11 = arith.constant 0 : index
      %c0_12 = arith.constant 0 : index
      %20 = vector.load %arg15[%c0_11, %c0_12] : memref<64x128xf32, #tpu.memory_space<vmem>>, vector<64x128xf32>
      %21 = arith.truncf %20 : vector<64x128xf32> to vector<64x128xbf16>
      %c0_13 = arith.constant 0 : index
      %c0_14 = arith.constant 0 : index
      %22 = vector.load %arg6[%c0_13, %c0_14] : memref<128x128xbf16, #tpu.memory_space<vmem>>, vector<128x128xbf16>
      %cst_15 = arith.constant dense<0.000000e+00> : vector<64x128xf32>
      %23 = tpu.matmul %21, %22, %cst_15 {dimension_numbers = #tpu.dot_dimension_numbers<[1], [0], [0], [1], [0, 0, 1, 1], [], []>} : vector<64x128xbf16>, vector<128x128xbf16>, vector<64x128xf32> -> vector<64x128xf32>
      %c0_16 = arith.constant 0 : index
      %c0_17 = arith.constant 0 : index
      %24 = vector.load %arg5[%c0_16, %c0_17] : memref<64x1xf32, #tpu.memory_space<vmem>>, vector<64x1xf32>
      %25 = vector.broadcast %24 : vector<64x1xf32> to vector<64x128xf32>
      %26 = arith.mulf %23, %25 : vector<64x128xf32>
      %c0_18 = arith.constant 0 : index
      %c0_19 = arith.constant 0 : index
      %27 = vector.load %arg7[%c0_18, %c0_19] : memref<1x128xf32, #tpu.memory_space<vmem>>, vector<1x128xf32>
      %28 = vector.broadcast %27 : vector<1x128xf32> to vector<64x128xf32>
      %29 = arith.addf %26, %28 : vector<64x128xf32>
      %cst_20 = arith.constant 0.000000e+00 : f32
      %30 = vector.broadcast %cst_20 : f32 to vector<64x128xf32>
      %31 = arith.maximumf %29, %30 : vector<64x128xf32>
      %c0_21 = arith.constant 0 : index
      %c0_22 = arith.constant 0 : index
      %32 = vector.load %arg8[%c0_21, %c0_22] : memref<64x128xbf16, #tpu.memory_space<vmem>>, vector<64x128xbf16>
      %33 = arith.extf %32 : vector<64x128xbf16> to vector<64x128xf32>
      %c0_23 = arith.constant 0 : index
      %c0_24 = arith.constant 0 : index
      %34 = vector.load %arg10[%c0_23, %c0_24] : memref<1x128xf32, #tpu.memory_space<vmem>>, vector<1x128xf32>
      %35 = vector.broadcast %34 : vector<1x128xf32> to vector<64x128xf32>
      %36 = arith.mulf %33, %35 : vector<64x128xf32>
      %cst_25 = arith.constant dense<0.000000e+00> : vector<64xf32>
      %37 = vector.multi_reduction <add>, %36, %cst_25 [1] : vector<64x128xf32> to vector<64xf32>
      %38 = vector.shape_cast %37 : vector<64xf32> to vector<64x1xf32>
      %c0_26 = arith.constant 0 : index
      %c0_27 = arith.constant 0 : index
      %39 = vector.load %arg9[%c0_26, %c0_27] : memref<64x128xbf16, #tpu.memory_space<vmem>>, vector<64x128xbf16>
      %40 = arith.extf %39 : vector<64x128xbf16> to vector<64x128xf32>
      %c0_28 = arith.constant 0 : index
      %c0_29 = arith.constant 0 : index
      %41 = vector.load %arg11[%c0_28, %c0_29] : memref<1x128xf32, #tpu.memory_space<vmem>>, vector<1x128xf32>
      %42 = vector.broadcast %41 : vector<1x128xf32> to vector<64x128xf32>
      %43 = arith.mulf %40, %42 : vector<64x128xf32>
      %cst_30 = arith.constant dense<0.000000e+00> : vector<64xf32>
      %44 = vector.multi_reduction <add>, %43, %cst_30 [1] : vector<64x128xf32> to vector<64xf32>
      %45 = vector.shape_cast %44 : vector<64xf32> to vector<64x1xf32>
      %46 = arith.addf %38, %45 : vector<64x1xf32>
      %c0_31 = arith.constant 0 : index
      %c0_32 = arith.constant 0 : index
      %47 = vector.load %arg12[%c0_31, %c0_32] : memref<1x128xf32, #tpu.memory_space<vmem>>, vector<1x128xf32>
      %48 = vector.broadcast %47 : vector<1x128xf32> to vector<64x128xf32>
      %49 = arith.mulf %31, %48 : vector<64x128xf32>
      %cst_33 = arith.constant dense<0.000000e+00> : vector<64xf32>
      %50 = vector.multi_reduction <add>, %49, %cst_33 [1] : vector<64x128xf32> to vector<64xf32>
      %51 = vector.shape_cast %50 : vector<64xf32> to vector<64x1xf32>
      %52 = arith.addf %46, %51 : vector<64x1xf32>
      %c0_34 = arith.constant 0 : index
      %c0_35 = arith.constant 0 : index
      %53 = vector.load %arg13[%c0_34, %c0_35] : memref<1x1xf32, #tpu.memory_space<vmem>>, vector<1x1xf32>
      %54 = vector.broadcast %53 : vector<1x1xf32> to vector<64x1xf32>
      %55 = arith.addf %52, %54 : vector<64x1xf32>
      %c0_36 = arith.constant 0 : index
      %c0_37 = arith.constant 0 : index
      %56 = vector.load %arg14[%c0_36, %c0_37] : memref<64x1xf32, #tpu.memory_space<vmem>>, vector<64x1xf32>
      tpu.vector_store %arg14[%c0_36, %c0_37], %55 {strides = array<i32>} : memref<64x1xf32, #tpu.memory_space<vmem>>, vector<64x1xf32>,
    } else {
    }
    return
  }
  func.func @transform_0(%arg0: i32, %arg1: i32) -> (i32, i32) {
    %c0_i32 = arith.constant 0 : i32
    return %arg0, %arg1 : i32, i32
  }
  func.func @transform_1(%arg0: i32, %arg1: i32) -> (i32, i32) {
    %c0_i32 = arith.constant 0 : i32
    %c0_i32_0 = arith.constant 0 : i32
    %c0_i32_1 = arith.constant 0 : i32
    return %c0_i32, %c0_i32_0 : i32, i32
  }
  func.func @transform_2(%arg0: i32, %arg1: i32) -> (i32, i32) {
    %c0_i32 = arith.constant 0 : i32
    %c0_i32_0 = arith.constant 0 : i32
    return %arg1, %c0_i32 : i32, i32
  }
  func.func @transform_3(%arg0: i32, %arg1: i32) -> (i32, i32) {
    %c0_i32 = arith.constant 0 : i32
    %c0_i32_0 = arith.constant 0 : i32
    return %arg0, %c0_i32 : i32, i32
  }
  func.func @transform_4(%arg0: i32, %arg1: i32) -> (i32, i32) {
    %c0_i32 = arith.constant 0 : i32
    %c0_i32_0 = arith.constant 0 : i32
    %c0_i32_1 = arith.constant 0 : i32
    return %c0_i32, %c0_i32_0 : i32, i32
  }
  func.func @transform_5(%arg0: i32, %arg1: i32) -> (i32, i32) {
    %c0_i32 = arith.constant 0 : i32
    %c0_i32_0 = arith.constant 0 : i32
    %c0_i32_1 = arith.constant 0 : i32
    return %c0_i32, %c0_i32_0 : i32, i32
  }
  func.func @transform_6(%arg0: i32, %arg1: i32) -> (i32, i32) {
    %c0_i32 = arith.constant 0 : i32
    %c0_i32_0 = arith.constant 0 : i32
    return %arg0, %c0_i32 : i32, i32
  }
  func.func @transform_7(%arg0: i32, %arg1: i32) -> (i32, i32) {
    %c0_i32 = arith.constant 0 : i32
    %c0_i32_0 = arith.constant 0 : i32
    return %arg0, %c0_i32 : i32, i32
  }
  func.func @transform_8(%arg0: i32, %arg1: i32) -> (i32, i32) {
    %c0_i32 = arith.constant 0 : i32
    %c0_i32_0 = arith.constant 0 : i32
    %c0_i32_1 = arith.constant 0 : i32
    return %c0_i32, %c0_i32_0 : i32, i32
  }
  func.func @transform_9(%arg0: i32, %arg1: i32) -> (i32, i32) {
    %c0_i32 = arith.constant 0 : i32
    %c0_i32_0 = arith.constant 0 : i32
    %c0_i32_1 = arith.constant 0 : i32
    return %c0_i32, %c0_i32_0 : i32, i32
  }
  func.func @transform_10(%arg0: i32, %arg1: i32) -> (i32, i32) {
    %c0_i32 = arith.constant 0 : i32
    %c0_i32_0 = arith.constant 0 : i32
    %c0_i32_1 = arith.constant 0 : i32
    return %c0_i32, %c0_i32_0 : i32, i32
  }
  func.func @transform_11(%arg0: i32, %arg1: i32) -> (i32, i32) {
    %c0_i32 = arith.constant 0 : i32
    %c0_i32_0 = arith.constant 0 : i32
    %c0_i32_1 = arith.constant 0 : i32
    return %c0_i32, %c0_i32_0 : i32, i32
  }
  func.func @transform_12(%arg0: i32, %arg1: i32) -> (i32, i32) {
    %c0_i32 = arith.constant 0 : i32
    %c0_i32_0 = arith.constant 0 : i32
    return %arg0, %c0_i32 : i32, i32
  }
}

</mosaic_0001>

<llo_original>
// kernel: selective_multihop_gcn.3
$region0: #{selective_multihop_gcn.3}
  #allocation0 [shape = 'u32[]', space=smem, size = 0x4, offset = 0x4, fixed_abs, tag = 'smem constant byte address 0x4 - core index']
  #allocation1 [shape = 'u32[144,128]{1,0:T(1,128)}', space=vmem, size = 0x12000, scoped, tag = 'internal scratch']
  #allocation2 [shape = 'f32[1,1]{1,0:T(1,128)S(1)}', space=vmem, size = 0x200, scoped, tag = 'scoped memory for selective_multihop_gcn.3']
  %s0 = inlined_call_operand.vmem [shape: bf16[256,16], index: 0, kind: input, shape index: {}]
  %s1 = inlined_call_operand.vmem [shape: bf16[16,128], index: 1, kind: input, shape index: {}]
  %s2 = inlined_call_operand.vmem [shape: f32[1,128], index: 2, kind: input, shape index: {}]
  %s3 = inlined_call_operand.vmem [shape: bf16[128,64], index: 3, kind: input, shape index: {}]
  %s4 = inlined_call_operand.vmem [shape: f32[1,64], index: 4, kind: input, shape index: {}]
  %s5 = inlined_call_operand.vmem [shape: f32[1,64], index: 5, kind: input, shape index: {}]
  %s6 = inlined_call_operand.<no memory space> [shape: f32[1,1], index: 6, kind: input, shape index: {}]
  %s7 = inlined_call_operand.vmem [shape: bf16[256,128], index: 7, kind: output, shape index: {0}]
  %s8 = inlined_call_operand.vmem [shape: f32[256,1], index: 8, kind: output, shape index: {1}]
  %9 = xla_tuple %s7, %s8
  %s10 = sld [smem:[#allocation0]]
  $region69: #{selective_multihop_gcn.3} parent=0
    _
  %s12 = ssub.s32 1, %s10
  %s13 = scalar_select 0, %s12, %s10
  %v14 = vstv %s6
  %15 = vst [vmem:[#allocation2] sm:$0x1] %v14
  loop: start=0, step=1, limit=6
  $region2: #{selective_multihop_gcn.3} parent=0 // loop_pre_header
    _
  $region3: #{selective_multihop_gcn.3} parent=0 // loop_header
    %s17 = sphi 0, %s21
    %p18 = scmp.ge.s32.totalorder %s17, 6
    %s27 = sphi 0, %s29
    %s30 = sphi 0, %s27
    %s31 = sphi 0, %s30
    %s47 = sphi 0, %s31
    %s51 = sphi 0, %s51
    %s53 = sphi 0, %s51
    %s54 = sphi 0, %s53
    %s68 = sphi 0, %s54
    %s72 = sphi 0, %s72
    %s74 = sphi 0, %s72
    %s75 = sphi 0, %s74
    %s89 = sphi 0, %s75
    %s93 = sphi 0, %s93
    %s95 = sphi 0, %s93
    %s96 = sphi 0, %s95
    %s110 = sphi 0, %s96
    %s114 = sphi 0, %s114
    %s116 = sphi 0, %s114
    %s117 = sphi 0, %s116
    %s131 = sphi 0, %s117
    %s135 = sphi 0, %s135
    %s137 = sphi 0, %s135
    %s138 = sphi 0, %s137
    %s152 = sphi 0, %s138
    %s156 = sphi 0, %s156
    %s158 = sphi 0, %s156
    %s159 = sphi 0, %s158
    %s173 = sphi 0, %s159
    %s179 = sphi 0, %s181
    %s182 = sphi 0, %s179
    %s183 = sphi 0, %s182
    %s199 = sphi 0, %s183
    %s205 = sphi 0, %s207
    %s208 = sphi 0, %s205
    %s209 = sphi 0, %s208
    %s225 = sphi 0, %s209
  $region4: #{selective_multihop_gcn.3} parent=0 // loop_header_branch
    %20 = sbr.rel (%p18) target = $region8
  $region5: #{selective_multihop_gcn.3} parent=0 // loop_body
    %s22 = ssub.s32 %s17, 1
    %s23 = ssub.s32 %s17, 2
    %s24 = sadd.s32 %s17, 1
    %s25 = ssub.s32 %s17, %s24
    %p26 = scmp.eq.s32.totalorder %s25, 0
    %s28 = sadd.s32 %s27, 1
    %s29 = scalar_select %p26, %s27, %s28
    %p32 = pneg %p26
    %p33 = scmp.eq.s32.totalorder %s17, 3
    %p34 = por %p32, %p33
    %p35 = scmp.ne.s32.totalorder %s27, %s30
    %p36 = scmp.eq.s32.totalorder %s17, 0
    %p37 = por %p35, %p36
    %p38 = scmp.ne.s32.totalorder %s27, %s30
    %p39 = scmp.eq.s32.totalorder %s22, 3
    %p40 = por %p38, %p39
    %p41 = scmp.ne.s32.totalorder %s30, %s31
    %p42 = scmp.eq.s32.totalorder %s22, 0
    %p43 = por %p41, %p42
    %p44 = scmp.ne.s32.totalorder %s30, %s31
    %p45 = scmp.eq.s32.totalorder %s23, 3
    %p46 = por %p44, %p45
    %p48 = scmp.ne.s32.totalorder %s31, %s47
    %p49 = scmp.eq.s32.totalorder %s23, 0
    %p50 = por %p48, %p49
    %s52 = sadd.s32 %s51, 1
    %p55 = scmp.eq.s32.totalorder %s17, 3
    %p56 = scmp.ne.s32.totalorder %s51, %s53
    %p57 = scmp.eq.s32.totalorder %s17, 0
    %p58 = por %p56, %p57
    %p59 = scmp.ne.s32.totalorder %s51, %s53
    %p60 = scmp.eq.s32.totalorder %s22, 3
    %p61 = por %p59, %p60
    %p62 = scmp.ne.s32.totalorder %s53, %s54
    %p63 = scmp.eq.s32.totalorder %s22, 0
    %p64 = por %p62, %p63
    %p65 = scmp.ne.s32.totalorder %s53, %s54
    %p66 = scmp.eq.s32.totalorder %s23, 3
    %p67 = por %p65, %p66
    %p69 = scmp.ne.s32.totalorder %s54, %s68
    %p70 = scmp.eq.s32.totalorder %s23, 0
    %p71 = por %p69, %p70
    %s73 = sadd.s32 %s72, 1
    %p76 = scmp.eq.s32.totalorder %s17, 3
    %p77 = scmp.ne.s32.totalorder %s72, %s74
    %p78 = scmp.eq.s32.totalorder %s17, 0
    %p79 = por %p77, %p78
    %p80 = scmp.ne.s32.totalorder %s72, %s74
    %p81 = scmp.eq.s32.totalorder %s22, 3
    %p82 = por %p80, %p81
    %p83 = scmp.ne.s32.totalorder %s74, %s75
    %p84 = scmp.eq.s32.totalorder %s22, 0
    %p85 = por %p83, %p84
    %p86 = scmp.ne.s32.totalorder %s74, %s75
    %p87 = scmp.eq.s32.totalorder %s23, 3
    %p88 = por %p86, %p87
    %p90 = scmp.ne.s32.totalorder %s75, %s89
    %p91 = scmp.eq.s32.totalorder %s23, 0
    %p92 = por %p90, %p91
    %s94 = sadd.s32 %s93, 1
    %p97 = scmp.eq.s32.totalorder %s17, 3
    %p98 = scmp.ne.s32.totalorder %s93, %s95
    %p99 = scmp.eq.s32.totalorder %s17, 0
    %p100 = por %p98, %p99
    %p101 = scmp.ne.s32.totalorder %s93, %s95
    %p102 = scmp.eq.s32.totalorder %s22, 3
    %p103 = por %p101, %p102
    %p104 = scmp.ne.s32.totalorder %s95, %s96
    %p105 = scmp.eq.s32.totalorder %s22, 0
    %p106 = por %p104, %p105
    %p107 = scmp.ne.s32.totalorder %s95, %s96
    %p108 = scmp.eq.s32.totalorder %s23, 3
    %p109 = por %p107, %p108
    %p111 = scmp.ne.s32.totalorder %s96, %s110
    %p112 = scmp.eq.s32.totalorder %s23, 0
    %p113 = por %p111, %p112
    %s115 = sadd.s32 %s114, 1
    %p118 = scmp.eq.s32.totalorder %s17, 3
    %p119 = scmp.ne.s32.totalorder %s114, %s116
    %p120 = scmp.eq.s32.totalorder %s17, 0
    %p121 = por %p119, %p120
    %p122 = scmp.ne.s32.totalorder %s114, %s116
    %p123 = scmp.eq.s32.totalorder %s22, 3
    %p124 = por %p122, %p123
    %p125 = scmp.ne.s32.totalorder %s116, %s117
    %p126 = scmp.eq.s32.totalorder %s22, 0
    %p127 = por %p125, %p126
    %p128 = scmp.ne.s32.totalorder %s116, %s117
    %p129 = scmp.eq.s32.totalorder %s23, 3
    %p130 = por %p128, %p129
    %p132 = scmp.ne.s32.totalorder %s117, %s131
    %p133 = scmp.eq.s32.totalorder %s23, 0
    %p134 = por %p132, %p133
    %s136 = sadd.s32 %s135, 1
    %p139 = scmp.eq.s32.totalorder %s17, 3
    %p140 = scmp.ne.s32.totalorder %s135, %s137
    %p141 = scmp.eq.s32.totalorder %s17, 0
    %p142 = por %p140, %p141
    %p143 = scmp.ne.s32.totalorder %s135, %s137
    %p144 = scmp.eq.s32.totalorder %s22, 3
    %p145 = por %p143, %p144
    %p146 = scmp.ne.s32.totalorder %s137, %s138
    %p147 = scmp.eq.s32.totalorder %s22, 0
    %p148 = por %p146, %p147
    %p149 = scmp.ne.s32.totalorder %s137, %s138
    %p150 = scmp.eq.s32.totalorder %s23, 3
    %p151 = por %p149, %p150
    %p153 = scmp.ne.s32.totalorder %s138, %s152
    %p154 = scmp.eq.s32.totalorder %s23, 0
    %p155 = por %p153, %p154
    %s157 = sadd.s32 %s156, 1
    %p160 = scmp.eq.s32.totalorder %s17, 3
    %p161 = scmp.ne.s32.totalorder %s156, %s158
    %p162 = scmp.eq.s32.totalorder %s17, 0
    %p163 = por %p161, %p162
    %p164 = scmp.ne.s32.totalorder %s156, %s158
    %p165 = scmp.eq.s32.totalorder %s22, 3
    %p166 = por %p164, %p165
    %p167 = scmp.ne.s32.totalorder %s158, %s159
    %p168 = scmp.eq.s32.totalorder %s22, 0
    %p169 = por %p167, %p168
    %p170 = scmp.ne.s32.totalorder %s158, %s159
    %p171 = scmp.eq.s32.totalorder %s23, 3
    %p172 = por %p170, %p171
    %p174 = scmp.ne.s32.totalorder %s159, %s173
    %p175 = scmp.eq.s32.totalorder %s23, 0
    %p176 = por %p174, %p175
    %s177 = ssub.s32 %s17, %s24
    %p178 = scmp.eq.s32.totalorder %s177, 0
    %s180 = sadd.s32 %s179, 1
    %s181 = scalar_select %p178, %s179, %s180
    %p184 = pneg %p178
    %p185 = scmp.eq.s32.totalorder %s17, 3
    %p186 = por %p184, %p185
    %p187 = scmp.ne.s32.totalorder %s179, %s182
    %p188 = scmp.eq.s32.totalorder %s17, 0
    %p189 = por %p187, %p188
    %p190 = scmp.ne.s32.totalorder %s179, %s182
    %p191 = scmp.eq.s32.totalorder %s22, 3
    %p192 = por %p190, %p191
    %p193 = scmp.ne.s32.totalorder %s182, %s183
    %p194 = scmp.eq.s32.totalorder %s22, 0
    %p195 = por %p193, %p194
    %p196 = scmp.ne.s32.totalorder %s182, %s183
    %p197 = scmp.eq.s32.totalorder %s23, 3
    %p198 = por %p196, %p197
    %p200 = scmp.ne.s32.totalorder %s183, %s199
    %p201 = scmp.eq.s32.totalorder %s23, 0
    %p202 = por %p200, %p201
    %s203 = ssub.s32 %s17, %s24
    %p204 = scmp.eq.s32.totalorder %s203, 0
    %s206 = sadd.s32 %s205, 1
    %s207 = scalar_select %p204, %s205, %s206
    %p210 = pneg %p204
    %p211 = scmp.eq.s32.totalorder %s17, 3
    %p212 = por %p210, %p211
    %p213 = scmp.ne.s32.totalorder %s205, %s208
    %p214 = scmp.eq.s32.totalorder %s17, 0
    %p215 = por %p213, %p214
    %p216 = scmp.ne.s32.totalorder %s205, %s208
    %p217 = scmp.eq.s32.totalorder %s22, 3
    %p218 = por %p216, %p217
    %p219 = scmp.ne.s32.totalorder %s208, %s209
    %p220 = scmp.eq.s32.totalorder %s22, 0
    %p221 = por %p219, %p220
    %p222 = scmp.ne.s32.totalorder %s208, %s209
    %p223 = scmp.eq.s32.totalorder %s23, 3
    %p224 = por %p222, %p223
    %p226 = scmp.ne.s32.totalorder %s209, %s225
    %p227 = scmp.eq.s32.totalorder %s23, 0
    %p228 = por %p226, %p227
    %p229 = scmp.le.s32.totalorder 1, %s17
    %p230 = scmp.lt.s32.totalorder %s17, 5
    %p231 = pnand %p229, %p230
    %p232 = pneg %p231
    // Predicated region
    $region9: #{selective_multihop_gcn.3} parent=5 // pred_check
      _
    $region10: #{selective_multihop_gcn.3} parent=5 // pred_check_branch
      %234 = sbr.rel (%p231) target = $region12
    $region11: #{selective_multihop_gcn.3} parent=5 // pred_region
      %s235 = ssub.s32 %s17, 1
      // Predicated region
      $region13: #{selective_multihop_gcn.3} parent=11 // pred_check
        %p236 = pneg %p64
      $region14: #{selective_multihop_gcn.3} parent=11 // pred_check_branch
        %238 = sbr.rel (%p236) target = $region16
      $region15: #{selective_multihop_gcn.3} parent=11 // pred_region
        _
      $region16: #{selective_multihop_gcn.3} parent=11 // pred_fallthru
        _
      // Predicated region
      $region17: #{selective_multihop_gcn.3} parent=11 // pred_check
        %p239 = pneg %p85
      $region18: #{selective_multihop_gcn.3} parent=11 // pred_check_branch
        %241 = sbr.rel (%p239) target = $region20
      $region19: #{selective_multihop_gcn.3} parent=11 // pred_region
        _
      $region20: #{selective_multihop_gcn.3} parent=11 // pred_fallthru
        _
      // Predicated region
      $region21: #{selective_multihop_gcn.3} parent=11 // pred_check
        %p242 = pneg %p106
      $region22: #{selective_multihop_gcn.3} parent=11 // pred_check_branch
        %244 = sbr.rel (%p242) target = $region24
      $region23: #{selective_multihop_gcn.3} parent=11 // pred_region
        _
      $region24: #{selective_multihop_gcn.3} parent=11 // pred_fallthru
        _
      // Predicated region
      $region25: #{selective_multihop_gcn.3} parent=11 // pred_check
        %p245 = pneg %p127
      $region26: #{selective_multihop_gcn.3} parent=11 // pred_check_branch
        %247 = sbr.rel (%p245) target = $region28
      $region27: #{selective_multihop_gcn.3} parent=11 // pred_region
        _
      $region28: #{selective_multihop_gcn.3} parent=11 // pred_fallthru
        _
      // Predicated region
      $region29: #{selective_multihop_gcn.3} parent=11 // pred_check
        %p248 = pneg %p148
      $region30: #{selective_multihop_gcn.3} parent=11 // pred_check_branch
        %250 = sbr.rel (%p248) target = $region32
      $region31: #{selective_multihop_gcn.3} parent=11 // pred_region
        _
      $region32: #{selective_multihop_gcn.3} parent=11 // pred_fallthru
        _
      // Predicated region
      $region33: #{selective_multihop_gcn.3} parent=11 // pred_check
        %p251 = pneg %p169
      $region34: #{selective_multihop_gcn.3} parent=11 // pred_check_branch
        %253 = sbr.rel (%p251) target = $region36
      $region35: #{selective_multihop_gcn.3} parent=11 // pred_region
        _
      $region36: #{selective_multihop_gcn.3} parent=11 // pred_fallthru
        _
    $region12: #{selective_multihop_gcn.3} parent=5 // pred_fallthru
      _
    %p254 = scmp.lt.s32.totalorder %s17, 4
    // Predicated region
    $region37: #{selective_multihop_gcn.3} parent=5 // pred_check
      %p255 = pneg %p254
    $region38: #{selective_multihop_gcn.3} parent=5 // pred_check_branch
      %257 = sbr.rel (%p255) target = $region40
    $region39: #{selective_multihop_gcn.3} parent=5 // pred_region
      // Predicated region
      $region41: #{selective_multihop_gcn.3} parent=39 // pred_check
        %p258 = pneg %p37
      $region42: #{selective_multihop_gcn.3} parent=39 // pred_check_branch
        %260 = sbr.rel (%p258) target = $region44
      $region43: #{selective_multihop_gcn.3} parent=39 // pred_region
        %s261 = smul.u32 8, %s17
        %p262 = scmp.lt.s32.totalorder %s261, 31
        %s263 = scalar_select %p262, %s261, 31
        %s264 = smul.addr %s263, 4
        %s265 = scalar_lea.vmem %s0, %s264
        %s266 = smul.u32 8, %s17
      $region44: #{selective_multihop_gcn.3} parent=39 // pred_fallthru
        _
    $region40: #{selective_multihop_gcn.3} parent=5 // pred_fallthru
      _
    %p267 = scmp.le.s32.totalorder 1, %s17
    %p268 = scmp.lt.s32.totalorder %s17, 5
    %p269 = pnand %p267, %p268
    %p270 = pneg %p269
    // Predicated region
    $region45: #{selective_multihop_gcn.3} parent=5 // pred_check
      _
    $region46: #{selective_multihop_gcn.3} parent=5 // pred_check_branch
      %272 = sbr.rel (%p269) target = $region48
    $region47: #{selective_multihop_gcn.3} parent=5 // pred_region
      %s273 = ssub.s32 %s17, 1
      %s274 = smul.u32 8, %s22
      %p275 = scmp.lt.s32.totalorder %s274, 31
      %s276 = scalar_select %p275, %s274, 31
      %s277 = smul.addr %s276, 4
      %s278 = scalar_lea.vmem %s0, %s277
      %p279 = pneg %p43
      %p280 = pneg %p40
      %p281 = pneg %p64
      %p282 = pneg %p61
      %p283 = pneg %p85
      %p284 = pneg %p82
      %p285 = pneg %p106
      %p286 = pneg %p103
      %p287 = pneg %p127
      %p288 = pneg %p124
      %p289 = pneg %p148
      %p290 = pneg %p145
      %p291 = pneg %p169
      %p292 = pneg %p166
      %p293 = pneg %p195
      %p294 = pneg %p192
      %s295 = smul.u32 8, %s22
      %p296 = scmp.lt.s32.totalorder %s295, 31
      %s297 = scalar_select %p296, %s295, 31
      %s298 = smul.addr %s297, 4
      %s299 = scalar_lea.vmem %s7, %s298
      %p300 = pneg %p221
      %p301 = pneg %p218
      %s302 = smul.u32 8, %s22
      %p303 = scmp.lt.s32.totalorder %s302, 31
      %s304 = scalar_select %p303, %s302, 31
      %s305 = smul.addr %s304, 8
      %s306 = scalar_lea.vmem %s8, %s305
      %s307 = smul.u32 8, %s22
      %p308 = scmp.lt.s32.totalorder %s307, 31
      %s309 = scalar_select %p308, %s307, 31
      %s310 = smul.addr %s309, 4
      %s311 = scalar_lea.vmem %s0, %s310
      %s312 = smul.u32 8, %s22
      %s313 = smul.u32 8, %s22
      %p314 = scmp.lt.s32.totalorder %s313, 31
      %s315 = scalar_select %p314, %s313, 31
      %s316 = smul.addr %s315, 4
      %s317 = scalar_lea.vmem %s7, %s316
      %s318 = smul.u32 8, %s22
      %s319 = smul.u32 8, %s22
      %p320 = scmp.lt.s32.totalorder %s319, 31
      %s321 = scalar_select %p320, %s319, 31
      %s322 = smul.addr %s321, 8
      %s323 = scalar_lea.vmem %s8, %s322
      %s324 = smul.u32 8, %s22
      %v326 = vld [vmem:[%s311] sm:$0xf]
      %v327 = vld [vmem:[%s311 + $0x4] sm:$0xf]
      %v328 = vld [vmem:[%s311 + $0x8] sm:$0xf]
      %v329 = vld [vmem:[%s311 + $0xc] sm:$0xf]
      %v330 = vld [vmem:[%s311 + $0x10] sm:$0xf]
      %v331 = vld [vmem:[%s311 + $0x14] sm:$0xf]
      %v332 = vld [vmem:[%s311 + $0x18] sm:$0xf]
      %v333 = vld [vmem:[%s311 + $0x1c] sm:$0xf]
      %v334 = vld [vmem:[%s1] sm:$0xf]
      %v335 = vld [vmem:[%s1 + $0x4] sm:$0xf]
      %v336 = vld [vmem:[%s2] sm:$0x1]
      %v338 = vlaneseq
      %v339 = vshrl.u32 %v338, 7
      %v340 = vsub.s32 0, %v339
      %v341 = vrot.slane %v336, %v340
      %v351 = vunpack.c.l.b16 %v326
      %v352 = vunpack.c.l.b16 %v327
      %v353 = vunpack.c.l.b16 %v328
      %v354 = vunpack.c.l.b16 %v329
      %v355 = vunpack.c.l.b16 %v330
      %v356 = vunpack.c.l.b16 %v331
      %v357 = vunpack.c.l.b16 %v332
      %v358 = vunpack.c.l.b16 %v333
      %v359 = vpack.c.b16 %v352, %v351
      %v360 = vpack.c.b16 %v354, %v353
      %v361 = vpack.c.b16 %v356, %v355
      %v362 = vpack.c.b16 %v358, %v357
      %v365 = vunpack.c.l.b16 %v334
      %v366 = vunpack.c.l.b16 %v335
      %v367 = vpack.c.b16 %v366, %v365
      %vm369 = vcmask 130048
      %v371 = vsel %vm369, %v359, 0
      %v374 = vsel %vm369, %v360, 0
      %v377 = vsel %vm369, %v361, 0
      %v380 = vsel %vm369, %v362, 0
      %382 = vmatprep.subr.bf16.mxu0 0
      %383 = vmatpush1.bf16.msra.mxu0 %v367
      %384 = vmatprep.subr.bf16.mxu0 0
      %385 = vmatpush1.bf16.msra.mxu0 0
      %386 = vmatprep.subr.bf16.mxu0 0
      %387 = vmatpush1.bf16.msra.mxu0 0
      %388 = vmatprep.subr.bf16.mxu0 0
      %389 = vmatpush1.bf16.msra.mxu0 0
      %390 = vmatprep.subr.bf16.mxu0 0
      %391 = vmatpush1.bf16.msra.mxu0 0
      %392 = vmatprep.subr.bf16.mxu0 0
      %393 = vmatpush1.bf16.msra.mxu0 0
      %394 = vmatprep.subr.bf16.mxu0 0
      %395 = vmatpush1.bf16.msra.mxu0 0
      %396 = vmatprep.subr.bf16.mxu0 0
      %397 = vmatpush1.bf16.msra.mxu0 0
      %398 = vmatprep.subr.bf16.mxu0 0
      %399 = vmatpush1.bf16.msra.mxu0 0
      %400 = vmatprep.subr.bf16.mxu0 0
      %401 = vmatpush1.bf16.msra.mxu0 0
      %402 = vmatprep.subr.bf16.mxu0 0
      %403 = vmatpush1.bf16.msra.mxu0 0
      %404 = vmatprep.subr.bf16.mxu0 0
      %405 = vmatpush1.bf16.msra.mxu0 0
      %406 = vmatprep.subr.bf16.mxu0 0
      %407 = vmatpush1.bf16.msra.mxu0 0
      %408 = vmatprep.subr.bf16.mxu0 0
      %409 = vmatpush1.bf16.msra.mxu0 0
      %410 = vmatprep.subr.bf16.mxu0 0
      %411 = vmatpush1.bf16.msra.mxu0 0
      %412 = vmatprep.subr.bf16.mxu0 0
      %413 = vmatpush1.bf16.msra.mxu0 0
      %414 = vmatprep.mubr.bf16.mxu0 0
      %415 = vmatmul.mubr.bf16.gmra.mrb[0].mxu0 %v371
      %v416 = vpop.f32.mrb[0].mxu0
      %v417 = vadd.f32 %v341, %v416
      %v418 = vpop.f32.mrb[0].mxu0
      %v419 = vpop.f32.mrb[0].mxu0
      %v420 = vadd.f32 %v341, %v419
      %v421 = vpop.f32.mrb[0].mxu0
      %422 = vmatprep.mubr.bf16.mxu0 0
      %423 = vmatmul.mubr.bf16.gmra.mrb[0].mxu0 %v374
      %v424 = vpop.f32.mrb[0].mxu0
      %v425 = vadd.f32 %v341, %v424
      %v426 = vpop.f32.mrb[0].mxu0
      %v427 = vpop.f32.mrb[0].mxu0
      %v428 = vadd.f32 %v341, %v427
      %v429 = vpop.f32.mrb[0].mxu0
      %430 = vmatprep.mubr.bf16.mxu0 0
      %431 = vmatmul.mubr.bf16.gmra.mrb[0].mxu0 %v377
      %v432 = vpop.f32.mrb[0].mxu0
      %v433 = vadd.f32 %v341, %v432
      %v434 = vpop.f32.mrb[0].mxu0
      %v435 = vpop.f32.mrb[0].mxu0
      %v436 = vadd.f32 %v341, %v435
      %v437 = vpop.f32.mrb[0].mxu0
      %438 = vmatprep.mubr.bf16.mxu0 0
      %439 = vmatmul.mubr.bf16.gmra.mrb[0].mxu0 %v380
      %v440 = vpop.f32.mrb[0].mxu0
      %v441 = vadd.f32 %v341, %v440
      %v442 = vpop.f32.mrb[0].mxu0
      %v443 = vpop.f32.mrb[0].mxu0
      %v444 = vadd.f32 %v341, %v443
      %v445 = vpop.f32.mrb[0].mxu0
      %446 = vdwg.mxu0
      %v447 = vmax.f32 %v417, 0.0
      %v448 = vmax.f32 %v420, 0.0
      %v449 = vmax.f32 %v425, 0.0
      %v450 = vmax.f32 %v428, 0.0
      %v451 = vmax.f32 %v433, 0.0
      %v452 = vmax.f32 %v436, 0.0
      %v453 = vmax.f32 %v441, 0.0
      %v454 = vmax.f32 %v444, 0.0
      %v455 = vpack.c.bf16 %v448, %v447
      %v456 = vpack.c.bf16 %v450, %v449
      %v457 = vpack.c.bf16 %v452, %v451
      %v458 = vpack.c.bf16 %v454, %v453
      %v463 = vunpack.c.l.b16 %v455
      %v464 = vunpack.c.h.b16 %v455
      %v465 = vunpack.c.l.b16 %v456
      %v466 = vunpack.c.h.b16 %v456
      %v467 = vunpack.c.l.b16 %v457
      %v468 = vunpack.c.h.b16 %v457
      %v469 = vunpack.c.l.b16 %v458
      %v470 = vunpack.c.h.b16 %v458
      %v471 = vpack.c.b16 %v463, %v463
      %v472 = vpack.c.b16 %v464, %v464
      %v473 = vpack.c.b16 %v465, %v465
      %v474 = vpack.c.b16 %v466, %v466
      %v475 = vpack.c.b16 %v467, %v467
      %v476 = vpack.c.b16 %v468, %v468
      %v477 = vpack.c.b16 %v469, %v469
      %v478 = vpack.c.b16 %v470, %v470
      %487 = vst [vmem:[%s317] sm:$0xf] %v471
      %488 = vst [vmem:[%s317 + $0x4] sm:$0xf] %v472
      %489 = vst [vmem:[%s317 + $0x8] sm:$0xf] %v473
      %490 = vst [vmem:[%s317 + $0xc] sm:$0xf] %v474
      %491 = vst [vmem:[%s317 + $0x10] sm:$0xf] %v475
      %492 = vst [vmem:[%s317 + $0x14] sm:$0xf] %v476
      %493 = vst [vmem:[%s317 + $0x18] sm:$0xf] %v477
      %494 = vst [vmem:[%s317 + $0x1c] sm:$0xf] %v478
      %v495 = vld [vmem:[%s3] sm:$0xf]
      %v496 = vld [vmem:[%s3 + $0x4] sm:$0xf]
      %v497 = vld [vmem:[%s3 + $0x8] sm:$0xf]
      %v498 = vld [vmem:[%s3 + $0xc] sm:$0xf]
      %v499 = vld [vmem:[%s3 + $0x10] sm:$0xf]
      %v500 = vld [vmem:[%s3 + $0x14] sm:$0xf]
      %v501 = vld [vmem:[%s3 + $0x18] sm:$0xf]
      %v502 = vld [vmem:[%s3 + $0x1c] sm:$0xf]
      %v503 = vld [vmem:[%s3 + $0x20] sm:$0xf]
      %v504 = vld [vmem:[%s3 + $0x24] sm:$0xf]
      %v505 = vld [vmem:[%s3 + $0x28] sm:$0xf]
      %v506 = vld [vmem:[%s3 + $0x2c] sm:$0xf]
      %v507 = vld [vmem:[%s3 + $0x30] sm:$0xf]
      %v508 = vld [vmem:[%s3 + $0x34] sm:$0xf]
      %v509 = vld [vmem:[%s3 + $0x38] sm:$0xf]
      %v510 = vld [vmem:[%s3 + $0x3c] sm:$0xf]
      %v511 = vld [vmem:[%s4] sm:$0x1]
      %v513 = vlaneseq
      %v514 = vshrl.u32 %v513, 7
      %v515 = vsub.s32 0, %v514
      %v516 = vrot.slane %v511, %v515
      %v534 = vunpack.c.l.b16 %v495
      %v535 = vunpack.c.l.b16 %v496
      %v536 = vunpack.c.l.b16 %v497
      %v537 = vunpack.c.l.b16 %v498
      %v538 = vunpack.c.l.b16 %v499
      %v539 = vunpack.c.l.b16 %v500
      %v540 = vunpack.c.l.b16 %v501
      %v541 = vunpack.c.l.b16 %v502
      %v542 = vunpack.c.l.b16 %v503
      %v543 = vunpack.c.l.b16 %v504
      %v544 = vunpack.c.l.b16 %v505
      %v545 = vunpack.c.l.b16 %v506
      %v546 = vunpack.c.l.b16 %v507
      %v547 = vunpack.c.l.b16 %v508
      %v548 = vunpack.c.l.b16 %v509
      %v549 = vunpack.c.l.b16 %v510
      %v550 = vpack.c.b16 %v535, %v534
      %v551 = vpack.c.b16 %v537, %v536
      %v552 = vpack.c.b16 %v539, %v538
      %v553 = vpack.c.b16 %v541, %v540
      %v554 = vpack.c.b16 %v543, %v542
      %v555 = vpack.c.b16 %v545, %v544
      %v556 = vpack.c.b16 %v547, %v546
      %v557 = vpack.c.b16 %v549, %v548
      %566 = vmatprep.subr.bf16.mxu0 0
      %567 = vmatpush1.bf16.msra.mxu0 %v550
      %568 = vmatprep.subr.bf16.mxu0 0
      %569 = vmatpush1.bf16.msra.mxu0 %v551
      %570 = vmatprep.subr.bf16.mxu0 0
      %571 = vmatpush1.bf16.msra.mxu0 %v552
      %572 = vmatprep.subr.bf16.mxu0 0
      %573 = vmatpush1.bf16.msra.mxu0 %v553
      %574 = vmatprep.subr.bf16.mxu0 0
      %575 = vmatpush1.bf16.msra.mxu0 %v554
      %576 = vmatprep.subr.bf16.mxu0 0
      %577 = vmatpush1.bf16.msra.mxu0 %v555
      %578 = vmatprep.subr.bf16.mxu0 0
      %579 = vmatpush1.bf16.msra.mxu0 %v556
      %580 = vmatprep.subr.bf16.mxu0 0
      %581 = vmatpush1.bf16.msra.mxu0 %v557
      %582 = vmatprep.subr.bf16.mxu0 0
      %583 = vmatpush1.bf16.msra.mxu0 0
      %584 = vmatprep.subr.bf16.mxu0 0
      %585 = vmatpush1.bf16.msra.mxu0 0
      %586 = vmatprep.subr.bf16.mxu0 0
      %587 = vmatpush1.bf16.msra.mxu0 0
      %588 = vmatprep.subr.bf16.mxu0 0
      %589 = vmatpush1.bf16.msra.mxu0 0
      %590 = vmatprep.subr.bf16.mxu0 0
      %591 = vmatpush1.bf16.msra.mxu0 0
      %592 = vmatprep.subr.bf16.mxu0 0
      %593 = vmatpush1.bf16.msra.mxu0 0
      %594 = vmatprep.subr.bf16.mxu0 0
      %595 = vmatpush1.bf16.msra.mxu0 0
      %596 = vmatprep.subr.bf16.mxu0 0
      %597 = vmatpush1.bf16.msra.mxu0 0
      %598 = vmatprep.mubr.bf16.mxu0 0
      %599 = vmatmul.mubr.bf16.gmra.mrb[0].mxu0 %v455
      %v600 = vpop.f32.mrb[0].mxu0
      %v601 = vadd.f32 %v516, %v600
      %v602 = vpop.f32.mrb[0].mxu0
      %v603 = vpop.f32.mrb[0].mxu0
      %v604 = vadd.f32 %v516, %v603
      %v605 = vpop.f32.mrb[0].mxu0
      %606 = vmatprep.mubr.bf16.mxu0 0
      %607 = vmatmul.mubr.bf16.gmra.mrb[0].mxu0 %v456
      %v608 = vpop.f32.mrb[0].mxu0
      %v609 = vadd.f32 %v516, %v608
      %v610 = vpop.f32.mrb[0].mxu0
      %v611 = vpop.f32.mrb[0].mxu0
      %v612 = vadd.f32 %v516, %v611
      %v613 = vpop.f32.mrb[0].mxu0
      %614 = vmatprep.mubr.bf16.mxu0 0
      %615 = vmatmul.mubr.bf16.gmra.mrb[0].mxu0 %v457
      %v616 = vpop.f32.mrb[0].mxu0
      %v617 = vadd.f32 %v516, %v616
      %v618 = vpop.f32.mrb[0].mxu0
      %v619 = vpop.f32.mrb[0].mxu0
      %v620 = vadd.f32 %v516, %v619
      %v621 = vpop.f32.mrb[0].mxu0
      %622 = vmatprep.mubr.bf16.mxu0 0
      %623 = vmatmul.mubr.bf16.gmra.mrb[0].mxu0 %v458
      %v624 = vpop.f32.mrb[0].mxu0
      %v625 = vadd.f32 %v516, %v624
      %v626 = vpop.f32.mrb[0].mxu0
      %v627 = vpop.f32.mrb[0].mxu0
      %v628 = vadd.f32 %v516, %v627
      %v629 = vpop.f32.mrb[0].mxu0
      %630 = vdwg.mxu0
      %v631 = vmax.f32 %v601, 0.0
      %v632 = vmax.f32 %v604, 0.0
      %v633 = vmax.f32 %v609, 0.0
      %v634 = vmax.f32 %v612, 0.0
      %v635 = vmax.f32 %v617, 0.0
      %v636 = vmax.f32 %v620, 0.0
      %v637 = vmax.f32 %v625, 0.0
      %v638 = vmax.f32 %v628, 0.0
      %v639 = vld [vmem:[%s5] sm:$0x1]
      %v641 = vlaneseq
      %v642 = vshrl.u32 %v641, 7
      %v643 = vsub.s32 0, %v642
      %v644 = vrot.slane %v639, %v643
      %v646 = vmul.f32 %v631, %v644
      %v647 = vmul.f32 %v632, %v644
      %v648 = vmul.f32 %v633, %v644
      %v649 = vmul.f32 %v634, %v644
      %v650 = vmul.f32 %v635, %v644
      %v651 = vmul.f32 %v636, %v644
      %v652 = vmul.f32 %v637, %v644
      %v653 = vmul.f32 %v638, %v644
      %vm654 = vcmask 523264
      %v655 = vsel %vm654, %v646, 0.0
      %656 = vadd.xlane.f32.xlu0 %v655
      %v657 = vpop.xlane.xlu0 %656
      %v658 = vsel %vm654, %v647, 0.0
      %659 = vadd.xlane.f32.xlu0 %v658
      %v660 = vpop.xlane.xlu0 %659
      %v661 = vsel %vm654, %v648, 0.0
      %662 = vadd.xlane.f32.xlu0 %v661
      %v663 = vpop.xlane.xlu0 %662
      %v664 = vsel %vm654, %v649, 0.0
      %665 = vadd.xlane.f32.xlu0 %v664
      %v666 = vpop.xlane.xlu0 %665
      %v667 = vsel %vm654, %v650, 0.0
      %668 = vadd.xlane.f32.xlu0 %v667
      %v669 = vpop.xlane.xlu0 %668
      %v670 = vsel %vm654, %v651, 0.0
      %671 = vadd.xlane.f32.xlu0 %v670
      %v672 = vpop.xlane.xlu0 %671
      %v673 = vsel %vm654, %v652, 0.0
      %674 = vadd.xlane.f32.xlu0 %v673
      %v675 = vpop.xlane.xlu0 %674
      %v676 = vsel %vm654, %v653, 0.0
      %677 = vadd.xlane.f32.xlu0 %v676
      %v678 = vpop.xlane.xlu0 %677
      %v679 = vld [vmem:[#allocation2] sm:$0x1]
      %v681 = vlaneseq
      %v682 = vshrl.u32 %v681, 7
      %v683 = vsub.s32 0, %v682
      %v684 = vrot.slane %v679, %v683
      %v686 = vadd.f32 %v657, %v684
      %v687 = vadd.f32 %v660, %v684
      %v688 = vadd.f32 %v663, %v684
      %v689 = vadd.f32 %v666, %v684
      %v690 = vadd.f32 %v669, %v684
      %v691 = vadd.f32 %v672, %v684
      %v692 = vadd.f32 %v675, %v684
      %v693 = vadd.f32 %v678, %v684
      %v694 = vxor.u32 %v686, 2147483648
      %v695 = vxor.u32 %v687, 2147483648
      %v696 = vxor.u32 %v688, 2147483648
      %v697 = vxor.u32 %v689, 2147483648
      %v698 = vxor.u32 %v690, 2147483648
      %v699 = vxor.u32 %v691, 2147483648
      %v700 = vxor.u32 %v692, 2147483648
      %v701 = vxor.u32 %v693, 2147483648
      %v702 = vmul.f32 %v694, 1.442695
      %v703 = vpow.pop %v702
      %v704 = vmul.f32 %v695, 1.442695
      %v705 = vpow.pop %v704
      %v706 = vmul.f32 %v696, 1.442695
      %v707 = vpow.pop %v706
      %v708 = vmul.f32 %v697, 1.442695
      %v709 = vpow.pop %v708
      %v710 = vmul.f32 %v698, 1.442695
      %v711 = vpow.pop %v710
      %v712 = vmul.f32 %v699, 1.442695
      %v713 = vpow.pop %v712
      %v714 = vmul.f32 %v700, 1.442695
      %v715 = vpow.pop %v714
      %v716 = vmul.f32 %v701, 1.442695
      %v717 = vpow.pop %v716
      %v718 = vadd.f32 %v703, 1.0
      %v719 = vadd.f32 %v705, 1.0
      %v720 = vadd.f32 %v707, 1.0
      %v721 = vadd.f32 %v709, 1.0
      %v722 = vadd.f32 %v711, 1.0
      %v723 = vadd.f32 %v713, 1.0
      %v724 = vadd.f32 %v715, 1.0
      %v725 = vadd.f32 %v717, 1.0
      %v726 = vrcp.pop %v718
      %v727 = vmul.f32 1.0, %v726
      %v728 = vrcp.pop %v719
      %v729 = vmul.f32 1.0, %v728
      %v730 = vrcp.pop %v720
      %v731 = vmul.f32 1.0, %v730
      %v732 = vrcp.pop %v721
      %v733 = vmul.f32 1.0, %v732
      %v734 = vrcp.pop %v722
      %v735 = vmul.f32 1.0, %v734
      %v736 = vrcp.pop %v723
      %v737 = vmul.f32 1.0, %v736
      %v738 = vrcp.pop %v724
      %v739 = vmul.f32 1.0, %v738
      %v740 = vrcp.pop %v725
      %v741 = vmul.f32 1.0, %v740
      %vm742 = vcmask 7168
      %743 = vst.msk [vmem:[%s323] sm:$0xff] %vm742, %v727
      %744 = vst.msk [vmem:[%s323 + $0x8] sm:$0xff] %vm742, %v729
      %745 = vst.msk [vmem:[%s323 + $0x10] sm:$0xff] %vm742, %v731
      %746 = vst.msk [vmem:[%s323 + $0x18] sm:$0xff] %vm742, %v733
      %747 = vst.msk [vmem:[%s323 + $0x20] sm:$0xff] %vm742, %v735
      %748 = vst.msk [vmem:[%s323 + $0x28] sm:$0xff] %vm742, %v737
      %749 = vst.msk [vmem:[%s323 + $0x30] sm:$0xff] %vm742, %v739
      %750 = vst.msk [vmem:[%s323 + $0x38] sm:$0xff] %vm742, %v741
      %s751 = smul.u32 8, %s22
      %p752 = scmp.lt.s32.totalorder %s751, 31
      %s753 = scalar_select %p752, %s751, 31
      %s754 = smul.addr %s753, 4
      %s755 = scalar_lea.vmem %s7, %s754
      %s756 = smul.u32 8, %s22
      %p757 = scmp.lt.s32.totalorder %s756, 31
      %s758 = scalar_select %p757, %s756, 31
      %s759 = smul.addr %s758, 8
      %s760 = scalar_lea.vmem %s8, %s759
      // Predicated region
      $region49: #{selective_multihop_gcn.3} parent=47 // pred_check
        %p761 = pneg %p192
      $region50: #{selective_multihop_gcn.3} parent=47 // pred_check_branch
        %763 = sbr.rel (%p761) target = $region52
      $region51: #{selective_multihop_gcn.3} parent=47 // pred_region
        %s764 = smul.u32 8, %s22
      $region52: #{selective_multihop_gcn.3} parent=47 // pred_fallthru
        _
      // Predicated region
      $region53: #{selective_multihop_gcn.3} parent=47 // pred_check
        %p765 = pneg %p218
      $region54: #{selective_multihop_gcn.3} parent=47 // pred_check_branch
        %767 = sbr.rel (%p765) target = $region56
      $region55: #{selective_multihop_gcn.3} parent=47 // pred_region
        %s768 = smul.u32 8, %s22
      $region56: #{selective_multihop_gcn.3} parent=47 // pred_fallthru
        _
    $region48: #{selective_multihop_gcn.3} parent=5 // pred_fallthru
      _
    %p769 = scmp.le.s32.totalorder 2, %s17
    // Predicated region
    $region57: #{selective_multihop_gcn.3} parent=5 // pred_check
      %p770 = pneg %p769
    $region58: #{selective_multihop_gcn.3} parent=5 // pred_check_branch
      %772 = sbr.rel (%p770) target = $region60
    $region59: #{selective_multihop_gcn.3} parent=5 // pred_region
      %s773 = ssub.s32 %s17, 2
      // Predicated region
      $region61: #{selective_multihop_gcn.3} parent=59 // pred_check
        %p774 = pneg %p198
      $region62: #{selective_multihop_gcn.3} parent=59 // pred_check_branch
        %776 = sbr.rel (%p774) target = $region64
      $region63: #{selective_multihop_gcn.3} parent=59 // pred_region
        %s777 = smul.u32 8, %s23
        %p778 = scmp.lt.s32.totalorder %s777, 31
        %s779 = scalar_select %p778, %s777, 31
        %s780 = smul.addr %s779, 4
        %s781 = scalar_lea.vmem %s7, %s780
      $region64: #{selective_multihop_gcn.3} parent=59 // pred_fallthru
        _
      // Predicated region
      $region65: #{selective_multihop_gcn.3} parent=59 // pred_check
        %p782 = pneg %p224
      $region66: #{selective_multihop_gcn.3} parent=59 // pred_check_branch
        %784 = sbr.rel (%p782) target = $region68
      $region67: #{selective_multihop_gcn.3} parent=59 // pred_region
        %s785 = smul.u32 8, %s23
        %p786 = scmp.lt.s32.totalorder %s785, 31
        %s787 = scalar_select %p786, %s785, 31
        %s788 = smul.addr %s787, 8
        %s789 = scalar_lea.vmem %s8, %s788
      $region68: #{selective_multihop_gcn.3} parent=59 // pred_fallthru
        _
    $region60: #{selective_multihop_gcn.3} parent=5 // pred_fallthru
      _
  $region6: #{selective_multihop_gcn.3} parent=0 // loop_footer
    %s21 = sadd.s32 1, %s17
  $region7: #{selective_multihop_gcn.3} parent=0 // loop_footer_branch
    %16 = sbr.rel target = $region3
  $region8: #{selective_multihop_gcn.3} parent=0 // loop_exit
    _

// kernel: selective_multihop_gcn.4
$region0: #{selective_multihop_gcn.4}
  #allocation0 [shape = 'u32[]', space=smem, size = 0x4, offset = 0x4, fixed_abs, tag = 'smem constant byte address 0x4 - core index']
  #allocation1 [shape = 'u32[144,128]{1,0:T(1,128)}', space=vmem, size = 0x12000, scoped, tag = 'internal scratch']
  #allocation2 [shape = 'f32[64,128]{1,0:T(8,128)}', space=vmem, size = 0x8000, scoped, tag = 'scratch operand']
  %s0 = inlined_call_operand.vmem [shape: bf16[256,256], index: 0, kind: input, shape index: {}]
  %s1 = inlined_call_operand.vmem [shape: bf16[256,128], index: 1, kind: input, shape index: {}]
  %s2 = inlined_call_operand.vmem [shape: f32[256,1], index: 2, kind: input, shape index: {}, may-alias: {2,3}]
  %s3 = inlined_call_operand.vmem [shape: f32[256,1], index: 3, kind: input, shape index: {}, may-alias: {2,3}]
  %s4 = inlined_call_operand.vmem [shape: bf16[128,128], index: 4, kind: input, shape index: {}]
  %s5 = inlined_call_operand.vmem [shape: f32[1,128], index: 5, kind: input, shape index: {}]
  %s6 = inlined_call_operand.vmem [shape: bf16[256,128], index: 6, kind: output, shape index: {}]
  %s7 = sld [smem:[#allocation0]]
  $region65: #{selective_multihop_gcn.4} parent=0
    _
  %s9 = ssub.s32 1, %s7
  %s10 = scalar_select 0, %s9, %s7
  loop: start=0, step=1, limit=6
  $region2: #{selective_multihop_gcn.4} parent=0 // loop_pre_header
    _
  $region3: #{selective_multihop_gcn.4} parent=0 // loop_header
    %s12 = sphi 0, %s16
    %p13 = scmp.ge.s32.totalorder %s12, 6
    %s19 = sphi 0, %s31
    %s20 = sphi 0, %s27
    %s21 = sphi 0, %s19
    %s22 = sphi 0, %s20
    %s23 = sphi 0, %s21
    %s24 = sphi 0, %s22
    %s36 = sphi 0, %s38
    %s39 = sphi 0, %s36
    %s40 = sphi 0, %s39
    %s56 = sphi 0, %s40
    %s60 = sphi 0, %s60
    %s62 = sphi 0, %s60
    %s63 = sphi 0, %s62
    %s77 = sphi 0, %s63
    %s83 = sphi 0, %s85
    %s86 = sphi 0, %s83
    %s87 = sphi 0, %s86
    %s103 = sphi 0, %s87
    %s109 = sphi 0, %s111
    %s112 = sphi 0, %s109
    %s113 = sphi 0, %s112
    %s129 = sphi 0, %s113
    %s133 = sphi 0, %s133
    %s135 = sphi 0, %s133
    %s136 = sphi 0, %s135
    %s150 = sphi 0, %s136
    %s154 = sphi 0, %s154
    %s156 = sphi 0, %s154
    %s157 = sphi 0, %s156
    %s171 = sphi 0, %s157
    %s177 = sphi 0, %s179
    %s180 = sphi 0, %s177
    %s181 = sphi 0, %s180
    %s197 = sphi 0, %s181
  $region4: #{selective_multihop_gcn.4} parent=0 // loop_header_branch
    %15 = sbr.rel (%p13) target = $region8
  $region5: #{selective_multihop_gcn.4} parent=0 // loop_body
    %s17 = ssub.s32 %s12, 1
    %s18 = ssub.s32 %s12, 2
    %s25 = sadd.s32 1, %s20
    %p26 = scmp.ge.s32.totalorder %s25, 1
    %s27 = scalar_select %p26, 0, %s25
    %s28 = sadd.s32 1, %s19
    %s29 = scalar_select %p26, %s28, %s19
    %p30 = scmp.ge.s32.totalorder %s29, 4
    %s31 = scalar_select %p30, 0, %s29
    %s32 = ssub.s32 %s19, %s31
    %s33 = ssub.s32 %s20, %s27
    %s34 = sor.u32 %s32, %s33
    %p35 = scmp.eq.s32.totalorder %s34, 0
    %s37 = sadd.s32 %s36, 1
    %s38 = scalar_select %p35, %s36, %s37
    %p41 = pneg %p35
    %p42 = scmp.eq.s32.totalorder %s12, 3
    %p43 = por %p41, %p42
    %p44 = scmp.ne.s32.totalorder %s36, %s39
    %p45 = scmp.eq.s32.totalorder %s12, 0
    %p46 = por %p44, %p45
    %p47 = scmp.ne.s32.totalorder %s36, %s39
    %p48 = scmp.eq.s32.totalorder %s17, 3
    %p49 = por %p47, %p48
    %p50 = scmp.ne.s32.totalorder %s39, %s40
    %p51 = scmp.eq.s32.totalorder %s17, 0
    %p52 = por %p50, %p51
    %p53 = scmp.ne.s32.totalorder %s39, %s40
    %p54 = scmp.eq.s32.totalorder %s18, 3
    %p55 = por %p53, %p54
    %p57 = scmp.ne.s32.totalorder %s40, %s56
    %p58 = scmp.eq.s32.totalorder %s18, 0
    %p59 = por %p57, %p58
    %s61 = sadd.s32 %s60, 1
    %p64 = scmp.eq.s32.totalorder %s12, 3
    %p65 = scmp.ne.s32.totalorder %s60, %s62
    %p66 = scmp.eq.s32.totalorder %s12, 0
    %p67 = por %p65, %p66
    %p68 = scmp.ne.s32.totalorder %s60, %s62
    %p69 = scmp.eq.s32.totalorder %s17, 3
    %p70 = por %p68, %p69
    %p71 = scmp.ne.s32.totalorder %s62, %s63
    %p72 = scmp.eq.s32.totalorder %s17, 0
    %p73 = por %p71, %p72
    %p74 = scmp.ne.s32.totalorder %s62, %s63
    %p75 = scmp.eq.s32.totalorder %s18, 3
    %p76 = por %p74, %p75
    %p78 = scmp.ne.s32.totalorder %s63, %s77
    %p79 = scmp.eq.s32.totalorder %s18, 0
    %p80 = por %p78, %p79
    %s81 = ssub.s32 %s20, %s27
    %p82 = scmp.eq.s32.totalorder %s81, 0
    %s84 = sadd.s32 %s83, 1
    %s85 = scalar_select %p82, %s83, %s84
    %p88 = pneg %p82
    %p89 = scmp.eq.s32.totalorder %s12, 3
    %p90 = por %p88, %p89
    %p91 = scmp.ne.s32.totalorder %s83, %s86
    %p92 = scmp.eq.s32.totalorder %s12, 0
    %p93 = por %p91, %p92
    %p94 = scmp.ne.s32.totalorder %s83, %s86
    %p95 = scmp.eq.s32.totalorder %s17, 3
    %p96 = por %p94, %p95
    %p97 = scmp.ne.s32.totalorder %s86, %s87
    %p98 = scmp.eq.s32.totalorder %s17, 0
    %p99 = por %p97, %p98
    %p100 = scmp.ne.s32.totalorder %s86, %s87
    %p101 = scmp.eq.s32.totalorder %s18, 3
    %p102 = por %p100, %p101
    %p104 = scmp.ne.s32.totalorder %s87, %s103
    %p105 = scmp.eq.s32.totalorder %s18, 0
    %p106 = por %p104, %p105
    %s107 = ssub.s32 %s19, %s31
    %p108 = scmp.eq.s32.totalorder %s107, 0
    %s110 = sadd.s32 %s109, 1
    %s111 = scalar_select %p108, %s109, %s110
    %p114 = pneg %p108
    %p115 = scmp.eq.s32.totalorder %s12, 3
    %p116 = por %p114, %p115
    %p117 = scmp.ne.s32.totalorder %s109, %s112
    %p118 = scmp.eq.s32.totalorder %s12, 0
    %p119 = por %p117, %p118
    %p120 = scmp.ne.s32.totalorder %s109, %s112
    %p121 = scmp.eq.s32.totalorder %s17, 3
    %p122 = por %p120, %p121
    %p123 = scmp.ne.s32.totalorder %s112, %s113
    %p124 = scmp.eq.s32.totalorder %s17, 0
    %p125 = por %p123, %p124
    %p126 = scmp.ne.s32.totalorder %s112, %s113
    %p127 = scmp.eq.s32.totalorder %s18, 3
    %p128 = por %p126, %p127
    %p130 = scmp.ne.s32.totalorder %s113, %s129
    %p131 = scmp.eq.s32.totalorder %s18, 0
    %p132 = por %p130, %p131
    %s134 = sadd.s32 %s133, 1
    %p137 = scmp.eq.s32.totalorder %s12, 3
    %p138 = scmp.ne.s32.totalorder %s133, %s135
    %p139 = scmp.eq.s32.totalorder %s12, 0
    %p140 = por %p138, %p139
    %p141 = scmp.ne.s32.totalorder %s133, %s135
    %p142 = scmp.eq.s32.totalorder %s17, 3
    %p143 = por %p141, %p142
    %p144 = scmp.ne.s32.totalorder %s135, %s136
    %p145 = scmp.eq.s32.totalorder %s17, 0
    %p146 = por %p144, %p145
    %p147 = scmp.ne.s32.totalorder %s135, %s136
    %p148 = scmp.eq.s32.totalorder %s18, 3
    %p149 = por %p147, %p148
    %p151 = scmp.ne.s32.totalorder %s136, %s150
    %p152 = scmp.eq.s32.totalorder %s18, 0
    %p153 = por %p151, %p152
    %s155 = sadd.s32 %s154, 1
    %p158 = scmp.eq.s32.totalorder %s12, 3
    %p159 = scmp.ne.s32.totalorder %s154, %s156
    %p160 = scmp.eq.s32.totalorder %s12, 0
    %p161 = por %p159, %p160
    %p162 = scmp.ne.s32.totalorder %s154, %s156
    %p163 = scmp.eq.s32.totalorder %s17, 3
    %p164 = por %p162, %p163
    %p165 = scmp.ne.s32.totalorder %s156, %s157
    %p166 = scmp.eq.s32.totalorder %s17, 0
    %p167 = por %p165, %p166
    %p168 = scmp.ne.s32.totalorder %s156, %s157
    %p169 = scmp.eq.s32.totalorder %s18, 3
    %p170 = por %p168, %p169
    %p172 = scmp.ne.s32.totalorder %s157, %s171
    %p173 = scmp.eq.s32.totalorder %s18, 0
    %p174 = por %p172, %p173
    %s175 = ssub.s32 %s19, %s31
    %p176 = scmp.eq.s32.totalorder %s175, 0
    %s178 = sadd.s32 %s177, 1
    %s179 = scalar_select %p176, %s177, %s178
    %p182 = pneg %p176
    %p183 = scmp.eq.s32.totalorder %s12, 3
    %p184 = por %p182, %p183
    %p185 = scmp.ne.s32.totalorder %s177, %s180
    %p186 = scmp.eq.s32.totalorder %s12, 0
    %p187 = por %p185, %p186
    %p188 = scmp.ne.s32.totalorder %s177, %s180
    %p189 = scmp.eq.s32.totalorder %s17, 3
    %p190 = por %p188, %p189
    %p191 = scmp.ne.s32.totalorder %s180, %s181
    %p192 = scmp.eq.s32.totalorder %s17, 0
    %p193 = por %p191, %p192
    %p194 = scmp.ne.s32.totalorder %s180, %s181
    %p195 = scmp.eq.s32.totalorder %s18, 3
    %p196 = por %p194, %p195
    %p198 = scmp.ne.s32.totalorder %s181, %s197
    %p199 = scmp.eq.s32.totalorder %s18, 0
    %p200 = por %p198, %p199
    %p201 = scmp.le.s32.totalorder 1, %s12
    %p202 = scmp.lt.s32.totalorder %s12, 5
    %p203 = pnand %p201, %p202
    %p204 = pneg %p203
    // Predicated region
    $region9: #{selective_multihop_gcn.4} parent=5 // pred_check
      _
    $region10: #{selective_multihop_gcn.4} parent=5 // pred_check_branch
      %206 = sbr.rel (%p203) target = $region12
    $region11: #{selective_multihop_gcn.4} parent=5 // pred_region
      %s207 = ssub.s32 %s12, 1
      // Predicated region
      $region13: #{selective_multihop_gcn.4} parent=11 // pred_check
        %p208 = pneg %p73
      $region14: #{selective_multihop_gcn.4} parent=11 // pred_check_branch
        %210 = sbr.rel (%p208) target = $region16
      $region15: #{selective_multihop_gcn.4} parent=11 // pred_region
        _
      $region16: #{selective_multihop_gcn.4} parent=11 // pred_fallthru
        _
      // Predicated region
      $region17: #{selective_multihop_gcn.4} parent=11 // pred_check
        %p211 = pneg %p99
      $region18: #{selective_multihop_gcn.4} parent=11 // pred_check_branch
        %213 = sbr.rel (%p211) target = $region20
      $region19: #{selective_multihop_gcn.4} parent=11 // pred_region
        %s214 = smul.u32 32, %s22
        %p215 = scmp.lt.s32.totalorder %s214, 31
        %s216 = scalar_select %p215, %s214, 31
        %s217 = smul.addr %s216, 8
        %s218 = scalar_lea.vmem %s2, %s217
        %s219 = smul.u32 32, %s22
      $region20: #{selective_multihop_gcn.4} parent=11 // pred_fallthru
        _
      // Predicated region
      $region21: #{selective_multihop_gcn.4} parent=11 // pred_check
        %p220 = pneg %p146
      $region22: #{selective_multihop_gcn.4} parent=11 // pred_check_branch
        %222 = sbr.rel (%p220) target = $region24
      $region23: #{selective_multihop_gcn.4} parent=11 // pred_region
        _
      $region24: #{selective_multihop_gcn.4} parent=11 // pred_fallthru
        _
      // Predicated region
      $region25: #{selective_multihop_gcn.4} parent=11 // pred_check
        %p223 = pneg %p167
      $region26: #{selective_multihop_gcn.4} parent=11 // pred_check_branch
        %225 = sbr.rel (%p223) target = $region28
      $region27: #{selective_multihop_gcn.4} parent=11 // pred_region
        _
      $region28: #{selective_multihop_gcn.4} parent=11 // pred_fallthru
        _
    $region12: #{selective_multihop_gcn.4} parent=5 // pred_fallthru
      _
    %p226 = scmp.lt.s32.totalorder %s12, 4
    // Predicated region
    $region29: #{selective_multihop_gcn.4} parent=5 // pred_check
      %p227 = pneg %p226
    $region30: #{selective_multihop_gcn.4} parent=5 // pred_check_branch
      %229 = sbr.rel (%p227) target = $region32
    $region31: #{selective_multihop_gcn.4} parent=5 // pred_region
      // Predicated region
      $region33: #{selective_multihop_gcn.4} parent=31 // pred_check
        %p230 = pneg %p46
      $region34: #{selective_multihop_gcn.4} parent=31 // pred_check_branch
        %232 = sbr.rel (%p230) target = $region36
      $region35: #{selective_multihop_gcn.4} parent=31 // pred_region
        %s233 = smul.u32 8, %s19
        %s234 = smul.u32 2, %s20
        %p235 = scmp.lt.s32.totalorder %s233, 31
        %s236 = scalar_select %p235, %s233, 31
        %p237 = scmp.lt.s32.totalorder %s234, 1
        %s238 = scalar_select %p237, %s234, 1
        %s239 = smul.addr %s236, 2
        %s240 = sadd.s32 %s238, %s239
        %s241 = smul.addr %s240, 4
        %s242 = scalar_lea.vmem %s0, %s241
        %s243 = smul.u32 8, %s19
        %s244 = smul.u32 2, %s20
      $region36: #{selective_multihop_gcn.4} parent=31 // pred_fallthru
        _
      // Predicated region
      $region37: #{selective_multihop_gcn.4} parent=31 // pred_check
        %p245 = pneg %p119
      $region38: #{selective_multihop_gcn.4} parent=31 // pred_check_branch
        %247 = sbr.rel (%p245) target = $region40
      $region39: #{selective_multihop_gcn.4} parent=31 // pred_region
        %s248 = smul.u32 8, %s19
        %p249 = scmp.lt.s32.totalorder %s248, 31
        %s250 = scalar_select %p249, %s248, 31
        %s251 = smul.addr %s250, 8
        %s252 = scalar_lea.vmem %s3, %s251
        %s253 = smul.u32 8, %s19
      $region40: #{selective_multihop_gcn.4} parent=31 // pred_fallthru
        _
    $region32: #{selective_multihop_gcn.4} parent=5 // pred_fallthru
      _
    %p254 = scmp.le.s32.totalorder 1, %s12
    %p255 = scmp.lt.s32.totalorder %s12, 5
    %p256 = pnand %p254, %p255
    %p257 = pneg %p256
    // Predicated region
    $region41: #{selective_multihop_gcn.4} parent=5 // pred_check
      _
    $region42: #{selective_multihop_gcn.4} parent=5 // pred_check_branch
      %259 = sbr.rel (%p256) target = $region44
    $region43: #{selective_multihop_gcn.4} parent=5 // pred_region
      %s260 = ssub.s32 %s12, 1
      %s261 = smul.u32 8, %s21
      %s262 = smul.u32 2, %s22
      %p263 = scmp.lt.s32.totalorder %s261, 31
      %s264 = scalar_select %p263, %s261, 31
      %p265 = scmp.lt.s32.totalorder %s262, 1
      %s266 = scalar_select %p265, %s262, 1
      %s267 = smul.addr %s264, 2
      %s268 = sadd.s32 %s266, %s267
      %s269 = smul.addr %s268, 4
      %s270 = scalar_lea.vmem %s0, %s269
      %p271 = pneg %p52
      %p272 = pneg %p49
      %p273 = pneg %p73
      %p274 = pneg %p70
      %s275 = smul.u32 32, %s22
      %p276 = scmp.lt.s32.totalorder %s275, 31
      %s277 = scalar_select %p276, %s275, 31
      %s278 = smul.addr %s277, 8
      %s279 = scalar_lea.vmem %s2, %s278
      %p280 = pneg %p99
      %p281 = pneg %p96
      %s282 = smul.u32 8, %s21
      %p283 = scmp.lt.s32.totalorder %s282, 31
      %s284 = scalar_select %p283, %s282, 31
      %s285 = smul.addr %s284, 8
      %s286 = scalar_lea.vmem %s3, %s285
      %p287 = pneg %p125
      %p288 = pneg %p122
      %p289 = pneg %p146
      %p290 = pneg %p143
      %p291 = pneg %p167
      %p292 = pneg %p164
      %p293 = pneg %p193
      %p294 = pneg %p190
      %s295 = smul.u32 8, %s21
      %p296 = scmp.lt.s32.totalorder %s295, 31
      %s297 = scalar_select %p296, %s295, 31
      %s298 = smul.addr %s297, 4
      %s299 = scalar_lea.vmem %s6, %s298
      %s300 = smul.u32 8, %s21
      %s301 = smul.u32 2, %s22
      %p302 = scmp.lt.s32.totalorder %s300, 31
      %s303 = scalar_select %p302, %s300, 31
      %p304 = scmp.lt.s32.totalorder %s301, 1
      %s305 = scalar_select %p304, %s301, 1
      %s306 = smul.addr %s303, 2
      %s307 = sadd.s32 %s305, %s306
      %s308 = smul.addr %s307, 4
      %s309 = scalar_lea.vmem %s0, %s308
      %s310 = smul.u32 8, %s21
      %s311 = smul.u32 2, %s22
      %s312 = smul.u32 32, %s22
      %p313 = scmp.lt.s32.totalorder %s312, 31
      %s314 = scalar_select %p313, %s312, 31
      %s315 = smul.addr %s314, 8
      %s316 = scalar_lea.vmem %s2, %s315
      %s317 = smul.u32 32, %s22
      %s318 = smul.u32 8, %s21
      %p319 = scmp.lt.s32.totalorder %s318, 31
      %s320 = scalar_select %p319, %s318, 31
      %s321 = smul.addr %s320, 8
      %s322 = scalar_lea.vmem %s3, %s321
      %s323 = smul.u32 8, %s21
      %s324 = smul.u32 8, %s21
      %p325 = scmp.lt.s32.totalorder %s324, 31
      %s326 = scalar_select %p325, %s324, 31
      %s327 = smul.addr %s326, 4
      %s328 = scalar_lea.vmem %s6, %s327
      %s329 = smul.u32 8, %s21
      %p331 = scmp.eq.s32.totalorder %s22, 0
      // Predicated region
      $region45: #{selective_multihop_gcn.4} parent=43 // pred_check
        %p332 = pneg %p331
      $region46: #{selective_multihop_gcn.4} parent=43 // pred_check_branch
        %334 = sbr.rel (%p332) target = $region48
      $region47: #{selective_multihop_gcn.4} parent=43 // pred_region
        %335 = vst [vmem:[#allocation2] sm:$0xff] 0.0
        %336 = vst [vmem:[#allocation2 + $0x8] sm:$0xff] 0.0
        %337 = vst [vmem:[#allocation2 + $0x10] sm:$0xff] 0.0
        %338 = vst [vmem:[#allocation2 + $0x18] sm:$0xff] 0.0
        %339 = vst [vmem:[#allocation2 + $0x20] sm:$0xff] 0.0
        %340 = vst [vmem:[#allocation2 + $0x28] sm:$0xff] 0.0
        %341 = vst [vmem:[#allocation2 + $0x30] sm:$0xff] 0.0
        %342 = vst [vmem:[#allocation2 + $0x38] sm:$0xff] 0.0
      $region48: #{selective_multihop_gcn.4} parent=43 // pred_fallthru
        _
      %s343 = smul.u32 %s22, 256
      %s344 = sshra.s32 %s343, 3
      %s345 = sand.u32 %s343, 7
      %s346 = smul.addr %s344, 4
      %s347 = scalar_lea.vmem %s1, %s346
      %v348 = vld [vmem:[%s347] sm:$0xf]
      %v349 = vld [vmem:[%s347 + $0x4] sm:$0xf]
      %v350 = vld [vmem:[%s347 + $0x8] sm:$0xf]
      %v351 = vld [vmem:[%s347 + $0xc] sm:$0xf]
      %v352 = vld [vmem:[%s347 + $0x10] sm:$0xf]
      %v353 = vld [vmem:[%s347 + $0x14] sm:$0xf]
      %v354 = vld [vmem:[%s347 + $0x18] sm:$0xf]
      %v355 = vld [vmem:[%s347 + $0x1c] sm:$0xf]
      %v356 = vld [vmem:[%s347 + $0x20] sm:$0xf]
      %v357 = vld [vmem:[%s347 + $0x24] sm:$0xf]
      %v358 = vld [vmem:[%s347 + $0x28] sm:$0xf]
      %v359 = vld [vmem:[%s347 + $0x2c] sm:$0xf]
      %v360 = vld [vmem:[%s347 + $0x30] sm:$0xf]
      %v361 = vld [vmem:[%s347 + $0x34] sm:$0xf]
      %v362 = vld [vmem:[%s347 + $0x38] sm:$0xf]
      %v363 = vld [vmem:[%s347 + $0x3c] sm:$0xf]
      %v364 = vld [vmem:[%s347 + $0x40] sm:$0xf]
      %v365 = vld [vmem:[%s347 + $0x44] sm:$0xf]
      %v366 = vld [vmem:[%s347 + $0x48] sm:$0xf]
      %v367 = vld [vmem:[%s347 + $0x4c] sm:$0xf]
      %v368 = vld [vmem:[%s347 + $0x50] sm:$0xf]
      %v369 = vld [vmem:[%s347 + $0x54] sm:$0xf]
      %v370 = vld [vmem:[%s347 + $0x58] sm:$0xf]
      %v371 = vld [vmem:[%s347 + $0x5c] sm:$0xf]
      %v372 = vld [vmem:[%s347 + $0x60] sm:$0xf]
      %v373 = vld [vmem:[%s347 + $0x64] sm:$0xf]
      %v374 = vld [vmem:[%s347 + $0x68] sm:$0xf]
      %v375 = vld [vmem:[%s347 + $0x6c] sm:$0xf]
      %v376 = vld [vmem:[%s347 + $0x70] sm:$0xf]
      %v377 = vld [vmem:[%s347 + $0x74] sm:$0xf]
      %v378 = vld [vmem:[%s347 + $0x78] sm:$0xf]
      %v379 = vld [vmem:[%s347 + $0x7c] sm:$0xf]
      %v380 = vunpack.c.l.bf16 %v348
      %v381 = vunpack.c.l.bf16 %v349
      %v382 = vunpack.c.l.bf16 %v350
      %v383 = vunpack.c.l.bf16 %v351
      %v384 = vunpack.c.l.bf16 %v352
      %v385 = vunpack.c.l.bf16 %v353
      %v386 = vunpack.c.l.bf16 %v354
      %v387 = vunpack.c.l.bf16 %v355
      %v388 = vunpack.c.l.bf16 %v356
      %v389 = vunpack.c.l.bf16 %v357
      %v390 = vunpack.c.l.bf16 %v358
      %v391 = vunpack.c.l.bf16 %v359
      %v392 = vunpack.c.l.bf16 %v360
      %v393 = vunpack.c.l.bf16 %v361
      %v394 = vunpack.c.l.bf16 %v362
      %v395 = vunpack.c.l.bf16 %v363
      %v396 = vunpack.c.l.bf16 %v364
      %v397 = vunpack.c.l.bf16 %v365
      %v398 = vunpack.c.l.bf16 %v366
      %v399 = vunpack.c.l.bf16 %v367
      %v400 = vunpack.c.l.bf16 %v368
      %v401 = vunpack.c.l.bf16 %v369
      %v402 = vunpack.c.l.bf16 %v370
      %v403 = vunpack.c.l.bf16 %v371
      %v404 = vunpack.c.l.bf16 %v372
      %v405 = vunpack.c.l.bf16 %v373
      %v406 = vunpack.c.l.bf16 %v374
      %v407 = vunpack.c.l.bf16 %v375
      %v408 = vunpack.c.l.bf16 %v376
      %v409 = vunpack.c.l.bf16 %v377
      %v410 = vunpack.c.l.bf16 %v378
      %v411 = vunpack.c.l.bf16 %v379
      %v412 = vld [vmem:[%s316] sm:$0xff]
      %v413 = vld [vmem:[%s316 + $0x8] sm:$0xff]
      %v414 = vld [vmem:[%s316 + $0x10] sm:$0xff]
      %v415 = vld [vmem:[%s316 + $0x18] sm:$0xff]
      %v416 = vld [vmem:[%s316 + $0x20] sm:$0xff]
      %v417 = vld [vmem:[%s316 + $0x28] sm:$0xff]
      %v418 = vld [vmem:[%s316 + $0x30] sm:$0xff]
      %v419 = vld [vmem:[%s316 + $0x38] sm:$0xff]
      %v420 = vld [vmem:[%s316 + $0x40] sm:$0xff]
      %v421 = vld [vmem:[%s316 + $0x48] sm:$0xff]
      %v422 = vld [vmem:[%s316 + $0x50] sm:$0xff]
      %v423 = vld [vmem:[%s316 + $0x58] sm:$0xff]
      %v424 = vld [vmem:[%s316 + $0x60] sm:$0xff]
      %v425 = vld [vmem:[%s316 + $0x68] sm:$0xff]
      %v426 = vld [vmem:[%s316 + $0x70] sm:$0xff]
      %v427 = vld [vmem:[%s316 + $0x78] sm:$0xff]
      %v428 = vld [vmem:[%s316 + $0x80] sm:$0xff]
      %v429 = vld [vmem:[%s316 + $0x88] sm:$0xff]
      %v430 = vld [vmem:[%s316 + $0x90] sm:$0xff]
      %v431 = vld [vmem:[%s316 + $0x98] sm:$0xff]
      %v432 = vld [vmem:[%s316 + $0xa0] sm:$0xff]
      %v433 = vld [vmem:[%s316 + $0xa8] sm:$0xff]
      %v434 = vld [vmem:[%s316 + $0xb0] sm:$0xff]
      %v435 = vld [vmem:[%s316 + $0xb8] sm:$0xff]
      %v436 = vld [vmem:[%s316 + $0xc0] sm:$0xff]
      %v437 = vld [vmem:[%s316 + $0xc8] sm:$0xff]
      %v438 = vld [vmem:[%s316 + $0xd0] sm:$0xff]
      %v439 = vld [vmem:[%s316 + $0xd8] sm:$0xff]
      %v440 = vld [vmem:[%s316 + $0xe0] sm:$0xff]
      %v441 = vld [vmem:[%s316 + $0xe8] sm:$0xff]
      %v442 = vld [vmem:[%s316 + $0xf0] sm:$0xff]
      %v443 = vld [vmem:[%s316 + $0xf8] sm:$0xff]
      %445 = vset.pattern.permute.xlu0 0
      %446 = vperm.xlu0 %445, %v412
      %v447 = vpop.permute.xlu0 %446
      %450 = vset.pattern.permute.xlu0 0
      %451 = vperm.xlu0 %450, %v413
      %v452 = vpop.permute.xlu0 %451
      %455 = vset.pattern.permute.xlu0 0
      %456 = vperm.xlu0 %455, %v414
      %v457 = vpop.permute.xlu0 %456
      %460 = vset.pattern.permute.xlu0 0
      %461 = vperm.xlu0 %460, %v415
      %v462 = vpop.permute.xlu0 %461
      %465 = vset.pattern.permute.xlu0 0
      %466 = vperm.xlu0 %465, %v416
      %v467 = vpop.permute.xlu0 %466
      %470 = vset.pattern.permute.xlu0 0
      %471 = vperm.xlu0 %470, %v417
      %v472 = vpop.permute.xlu0 %471
      %475 = vset.pattern.permute.xlu0 0
      %476 = vperm.xlu0 %475, %v418
      %v477 = vpop.permute.xlu0 %476
      %480 = vset.pattern.permute.xlu0 0
      %481 = vperm.xlu0 %480, %v419
      %v482 = vpop.permute.xlu0 %481
      %485 = vset.pattern.permute.xlu0 0
      %486 = vperm.xlu0 %485, %v420
      %v487 = vpop.permute.xlu0 %486
      %490 = vset.pattern.permute.xlu0 0
      %491 = vperm.xlu0 %490, %v421
      %v492 = vpop.permute.xlu0 %491
      %495 = vset.pattern.permute.xlu0 0
      %496 = vperm.xlu0 %495, %v422
      %v497 = vpop.permute.xlu0 %496
      %500 = vset.pattern.permute.xlu0 0
      %501 = vperm.xlu0 %500, %v423
      %v502 = vpop.permute.xlu0 %501
      %505 = vset.pattern.permute.xlu0 0
      %506 = vperm.xlu0 %505, %v424
      %v507 = vpop.permute.xlu0 %506
      %510 = vset.pattern.permute.xlu0 0
      %511 = vperm.xlu0 %510, %v425
      %v512 = vpop.permute.xlu0 %511
      %515 = vset.pattern.permute.xlu0 0
      %516 = vperm.xlu0 %515, %v426
      %v517 = vpop.permute.xlu0 %516
      %520 = vset.pattern.permute.xlu0 0
      %521 = vperm.xlu0 %520, %v427
      %v522 = vpop.permute.xlu0 %521
      %525 = vset.pattern.permute.xlu0 0
      %526 = vperm.xlu0 %525, %v428
      %v527 = vpop.permute.xlu0 %526
      %530 = vset.pattern.permute.xlu0 0
      %531 = vperm.xlu0 %530, %v429
      %v532 = vpop.permute.xlu0 %531
      %535 = vset.pattern.permute.xlu0 0
      %536 = vperm.xlu0 %535, %v430
      %v537 = vpop.permute.xlu0 %536
      %540 = vset.pattern.permute.xlu0 0
      %541 = vperm.xlu0 %540, %v431
      %v542 = vpop.permute.xlu0 %541
      %545 = vset.pattern.permute.xlu0 0
      %546 = vperm.xlu0 %545, %v432
      %v547 = vpop.permute.xlu0 %546
      %550 = vset.pattern.permute.xlu0 0
      %551 = vperm.xlu0 %550, %v433
      %v552 = vpop.permute.xlu0 %551
      %555 = vset.pattern.permute.xlu0 0
      %556 = vperm.xlu0 %555, %v434
      %v557 = vpop.permute.xlu0 %556
      %560 = vset.pattern.permute.xlu0 0
      %561 = vperm.xlu0 %560, %v435
      %v562 = vpop.permute.xlu0 %561
      %565 = vset.pattern.permute.xlu0 0
      %566 = vperm.xlu0 %565, %v436
      %v567 = vpop.permute.xlu0 %566
      %570 = vset.pattern.permute.xlu0 0
      %571 = vperm.xlu0 %570, %v437
      %v572 = vpop.permute.xlu0 %571
      %575 = vset.pattern.permute.xlu0 0
      %576 = vperm.xlu0 %575, %v438
      %v577 = vpop.permute.xlu0 %576
      %580 = vset.pattern.permute.xlu0 0
      %581 = vperm.xlu0 %580, %v439
      %v582 = vpop.permute.xlu0 %581
      %585 = vset.pattern.permute.xlu0 0
      %586 = vperm.xlu0 %585, %v440
      %v587 = vpop.permute.xlu0 %586
      %590 = vset.pattern.permute.xlu0 0
      %591 = vperm.xlu0 %590, %v441
      %v592 = vpop.permute.xlu0 %591
      %595 = vset.pattern.permute.xlu0 0
      %596 = vperm.xlu0 %595, %v442
      %v597 = vpop.permute.xlu0 %596
      %600 = vset.pattern.permute.xlu0 0
      %601 = vperm.xlu0 %600, %v443
      %v602 = vpop.permute.xlu0 %601
      %v604 = vmul.f32 %v380, %v447
      %v605 = vmul.f32 %v381, %v452
      %v606 = vmul.f32 %v382, %v457
      %v607 = vmul.f32 %v383, %v462
      %v608 = vmul.f32 %v384, %v467
      %v609 = vmul.f32 %v385, %v472
      %v610 = vmul.f32 %v386, %v477
      %v611 = vmul.f32 %v387, %v482
      %v612 = vmul.f32 %v388, %v487
      %v613 = vmul.f32 %v389, %v492
      %v614 = vmul.f32 %v390, %v497
      %v615 = vmul.f32 %v391, %v502
      %v616 = vmul.f32 %v392, %v507
      %v617 = vmul.f32 %v393, %v512
      %v618 = vmul.f32 %v394, %v517
      %v619 = vmul.f32 %v395, %v522
      %v620 = vmul.f32 %v396, %v527
      %v621 = vmul.f32 %v397, %v532
      %v622 = vmul.f32 %v398, %v537
      %v623 = vmul.f32 %v399, %v542
      %v624 = vmul.f32 %v400, %v547
      %v625 = vmul.f32 %v401, %v552
      %v626 = vmul.f32 %v402, %v557
      %v627 = vmul.f32 %v403, %v562
      %v628 = vmul.f32 %v404, %v567
      %v629 = vmul.f32 %v405, %v572
      %v630 = vmul.f32 %v406, %v577
      %v631 = vmul.f32 %v407, %v582
      %v632 = vmul.f32 %v408, %v587
      %v633 = vmul.f32 %v409, %v592
      %v634 = vmul.f32 %v410, %v597
      %v635 = vmul.f32 %v411, %v602
      %v636 = vpack.c.bf16 %v605, %v604
      %v637 = vpack.c.bf16 %v607, %v606
      %v638 = vpack.c.bf16 %v609, %v608
      %v639 = vpack.c.bf16 %v611, %v610
      %v640 = vpack.c.bf16 %v613, %v612
      %v641 = vpack.c.bf16 %v615, %v614
      %v642 = vpack.c.bf16 %v617, %v616
      %v643 = vpack.c.bf16 %v619, %v618
      %v644 = vpack.c.bf16 %v621, %v620
      %v645 = vpack.c.bf16 %v623, %v622
      %v646 = vpack.c.bf16 %v625, %v624
      %v647 = vpack.c.bf16 %v627, %v626
      %v648 = vpack.c.bf16 %v629, %v628
      %v649 = vpack.c.bf16 %v631, %v630
      %v650 = vpack.c.bf16 %v633, %v632
      %v651 = vpack.c.bf16 %v635, %v634
      %v652 = vld [vmem:[#allocation2] sm:$0xff]
      %v653 = vld [vmem:[#allocation2 + $0x8] sm:$0xff]
      %v654 = vld [vmem:[#allocation2 + $0x10] sm:$0xff]
      %v655 = vld [vmem:[#allocation2 + $0x18] sm:$0xff]
      %v656 = vld [vmem:[#allocation2 + $0x20] sm:$0xff]
      %v657 = vld [vmem:[#allocation2 + $0x28] sm:$0xff]
      %v658 = vld [vmem:[#allocation2 + $0x30] sm:$0xff]
      %v659 = vld [vmem:[#allocation2 + $0x38] sm:$0xff]
      %v660 = vld [vmem:[%s309] sm:$0xff]
      %v661 = vld [vmem:[%s309 + $0x8] sm:$0xff]
      %v662 = vld [vmem:[%s309 + $0x10] sm:$0xff]
      %v663 = vld [vmem:[%s309 + $0x18] sm:$0xff]
      %v664 = vld [vmem:[%s309 + $0x20] sm:$0xff]
      %v665 = vld [vmem:[%s309 + $0x28] sm:$0xff]
      %v666 = vld [vmem:[%s309 + $0x30] sm:$0xff]
      %v667 = vld [vmem:[%s309 + $0x38] sm:$0xff]
      %v676 = vunpack.c.l.b16 %v660
      %v677 = vunpack.c.h.b16 %v660
      %v678 = vunpack.c.l.b16 %v661
      %v679 = vunpack.c.h.b16 %v661
      %v680 = vunpack.c.l.b16 %v662
      %v681 = vunpack.c.h.b16 %v662
      %v682 = vunpack.c.l.b16 %v663
      %v683 = vunpack.c.h.b16 %v663
      %v684 = vunpack.c.l.b16 %v664
      %v685 = vunpack.c.h.b16 %v664
      %v686 = vunpack.c.l.b16 %v665
      %v687 = vunpack.c.h.b16 %v665
      %v688 = vunpack.c.l.b16 %v666
      %v689 = vunpack.c.h.b16 %v666
      %v690 = vunpack.c.l.b16 %v667
      %v691 = vunpack.c.h.b16 %v667
      %v692 = vpack.c.b16 %v678, %v676
      %v693 = vpack.c.b16 %v679, %v677
      %v694 = vpack.c.b16 %v682, %v680
      %v695 = vpack.c.b16 %v683, %v681
      %v696 = vpack.c.b16 %v686, %v684
      %v697 = vpack.c.b16 %v687, %v685
      %v698 = vpack.c.b16 %v690, %v688
      %v699 = vpack.c.b16 %v691, %v689
      %708 = vmatprep.subr.bf16.mxu0 0
      %709 = vmatpush1.bf16.msra.mxu0 %v636
      %710 = vmatprep.subr.bf16.mxu0 0
      %711 = vmatpush1.bf16.msra.mxu0 %v637
      %712 = vmatprep.subr.bf16.mxu0 0
      %713 = vmatpush1.bf16.msra.mxu0 %v638
      %714 = vmatprep.subr.bf16.mxu0 0
      %715 = vmatpush1.bf16.msra.mxu0 %v639
      %716 = vmatprep.subr.bf16.mxu0 0
      %717 = vmatpush1.bf16.msra.mxu0 %v640
      %718 = vmatprep.subr.bf16.mxu0 0
      %719 = vmatpush1.bf16.msra.mxu0 %v641
      %720 = vmatprep.subr.bf16.mxu0 0
      %721 = vmatpush1.bf16.msra.mxu0 %v642
      %722 = vmatprep.subr.bf16.mxu0 0
      %723 = vmatpush1.bf16.msra.mxu0 %v643
      %724 = vmatprep.subr.bf16.mxu0 0
      %725 = vmatpush1.bf16.msra.mxu0 %v644
      %726 = vmatprep.subr.bf16.mxu0 0
      %727 = vmatpush1.bf16.msra.mxu0 %v645
      %728 = vmatprep.subr.bf16.mxu0 0
      %729 = vmatpush1.bf16.msra.mxu0 %v646
      %730 = vmatprep.subr.bf16.mxu0 0
      %731 = vmatpush1.bf16.msra.mxu0 %v647
      %732 = vmatprep.subr.bf16.mxu0 0
      %733 = vmatpush1.bf16.msra.mxu0 %v648
      %734 = vmatprep.subr.bf16.mxu0 0
      %735 = vmatpush1.bf16.msra.mxu0 %v649
      %736 = vmatprep.subr.bf16.mxu0 0
      %737 = vmatpush1.bf16.msra.mxu0 %v650
      %738 = vmatprep.subr.bf16.mxu0 0
      %739 = vmatpush1.bf16.msra.mxu0 %v651
      %740 = vmatprep.mubr.bf16.mxu0 %v693
      %741 = vmatmul.mubr.bf16.gmra.mrb[0].mxu0 %v692
      %v742 = vpop.f32.mrb[0].mxu0
      %v743 = vadd.f32 0.0, %v742
      %v744 = vpop.f32.mrb[0].mxu0
      %v745 = vpop.f32.mrb[0].mxu0
      %v746 = vadd.f32 0.0, %v745
      %v747 = vpop.f32.mrb[0].mxu0
      %748 = vmatprep.mubr.bf16.mxu0 %v695
      %749 = vmatmul.mubr.bf16.gmra.mrb[0].mxu0 %v694
      %v750 = vpop.f32.mrb[0].mxu0
      %v751 = vadd.f32 0.0, %v750
      %v752 = vpop.f32.mrb[0].mxu0
      %v753 = vpop.f32.mrb[0].mxu0
      %v754 = vadd.f32 0.0, %v753
      %v755 = vpop.f32.mrb[0].mxu0
      %756 = vmatprep.mubr.bf16.mxu0 %v697
      %757 = vmatmul.mubr.bf16.gmra.mrb[0].mxu0 %v696
      %v758 = vpop.f32.mrb[0].mxu0
      %v759 = vadd.f32 0.0, %v758
      %v760 = vpop.f32.mrb[0].mxu0
      %v761 = vpop.f32.mrb[0].mxu0
      %v762 = vadd.f32 0.0, %v761
      %v763 = vpop.f32.mrb[0].mxu0
      %764 = vmatprep.mubr.bf16.mxu0 %v699
      %765 = vmatmul.mubr.bf16.gmra.mrb[0].mxu0 %v698
      %v766 = vpop.f32.mrb[0].mxu0
      %v767 = vadd.f32 0.0, %v766
      %v768 = vpop.f32.mrb[0].mxu0
      %v769 = vpop.f32.mrb[0].mxu0
      %v770 = vadd.f32 0.0, %v769
      %v771 = vpop.f32.mrb[0].mxu0
      %772 = vdwg.mxu0
      %v773 = vadd.f32 %v652, %v743
      %v774 = vadd.f32 %v653, %v746
      %v775 = vadd.f32 %v654, %v751
      %v776 = vadd.f32 %v655, %v754
      %v777 = vadd.f32 %v656, %v759
      %v778 = vadd.f32 %v657, %v762
      %v779 = vadd.f32 %v658, %v767
      %v780 = vadd.f32 %v659, %v770
      %781 = vst [vmem:[#allocation2] sm:$0xff] %v773
      %782 = vst [vmem:[#allocation2 + $0x8] sm:$0xff] %v774
      %783 = vst [vmem:[#allocation2 + $0x10] sm:$0xff] %v775
      %784 = vst [vmem:[#allocation2 + $0x18] sm:$0xff] %v776
      %785 = vst [vmem:[#allocation2 + $0x20] sm:$0xff] %v777
      %786 = vst [vmem:[#allocation2 + $0x28] sm:$0xff] %v778
      %787 = vst [vmem:[#allocation2 + $0x30] sm:$0xff] %v779
      %788 = vst [vmem:[#allocation2 + $0x38] sm:$0xff] %v780
      // Predicated region
      $region49: #{selective_multihop_gcn.4} parent=43 // pred_check
        %p789 = pneg %p331
      $region50: #{selective_multihop_gcn.4} parent=43 // pred_check_branch
        %791 = sbr.rel (%p789) target = $region52
      $region51: #{selective_multihop_gcn.4} parent=43 // pred_region
        %v792 = vld [vmem:[#allocation2] sm:$0xff]
        %v793 = vld [vmem:[#allocation2 + $0x8] sm:$0xff]
        %v794 = vld [vmem:[#allocation2 + $0x10] sm:$0xff]
        %v795 = vld [vmem:[#allocation2 + $0x18] sm:$0xff]
        %v796 = vld [vmem:[#allocation2 + $0x20] sm:$0xff]
        %v797 = vld [vmem:[#allocation2 + $0x28] sm:$0xff]
        %v798 = vld [vmem:[#allocation2 + $0x30] sm:$0xff]
        %v799 = vld [vmem:[#allocation2 + $0x38] sm:$0xff]
        %v800 = vpack.c.bf16 %v793, %v792
        %v801 = vpack.c.bf16 %v795, %v794
        %v802 = vpack.c.bf16 %v797, %v796
        %v803 = vpack.c.bf16 %v799, %v798
        %v804 = vld [vmem:[%s4] sm:$0xf]
        %v805 = vld [vmem:[%s4 + $0x4] sm:$0xf]
        %v806 = vld [vmem:[%s4 + $0x8] sm:$0xf]
        %v807 = vld [vmem:[%s4 + $0xc] sm:$0xf]
        %v808 = vld [vmem:[%s4 + $0x10] sm:$0xf]
        %v809 = vld [vmem:[%s4 + $0x14] sm:$0xf]
        %v810 = vld [vmem:[%s4 + $0x18] sm:$0xf]
        %v811 = vld [vmem:[%s4 + $0x1c] sm:$0xf]
        %v812 = vld [vmem:[%s4 + $0x20] sm:$0xf]
        %v813 = vld [vmem:[%s4 + $0x24] sm:$0xf]
        %v814 = vld [vmem:[%s4 + $0x28] sm:$0xf]
        %v815 = vld [vmem:[%s4 + $0x2c] sm:$0xf]
        %v816 = vld [vmem:[%s4 + $0x30] sm:$0xf]
        %v817 = vld [vmem:[%s4 + $0x34] sm:$0xf]
        %v818 = vld [vmem:[%s4 + $0x38] sm:$0xf]
        %v819 = vld [vmem:[%s4 + $0x3c] sm:$0xf]
        %v836 = vunpack.c.l.b16 %v804
        %v837 = vunpack.c.l.b16 %v805
        %v838 = vunpack.c.l.b16 %v806
        %v839 = vunpack.c.l.b16 %v807
        %v840 = vunpack.c.l.b16 %v808
        %v841 = vunpack.c.l.b16 %v809
        %v842 = vunpack.c.l.b16 %v810
        %v843 = vunpack.c.l.b16 %v811
        %v844 = vunpack.c.l.b16 %v812
        %v845 = vunpack.c.l.b16 %v813
        %v846 = vunpack.c.l.b16 %v814
        %v847 = vunpack.c.l.b16 %v815
        %v848 = vunpack.c.l.b16 %v816
        %v849 = vunpack.c.l.b16 %v817
        %v850 = vunpack.c.l.b16 %v818
        %v851 = vunpack.c.l.b16 %v819
        %v852 = vpack.c.b16 %v837, %v836
        %v853 = vpack.c.b16 %v839, %v838
        %v854 = vpack.c.b16 %v841, %v840
        %v855 = vpack.c.b16 %v843, %v842
        %v856 = vpack.c.b16 %v845, %v844
        %v857 = vpack.c.b16 %v847, %v846
        %v858 = vpack.c.b16 %v849, %v848
        %v859 = vpack.c.b16 %v851, %v850
        %868 = vmatprep.subr.bf16.mxu0 0
        %869 = vmatpush1.bf16.msra.mxu0 %v852
        %870 = vmatprep.subr.bf16.mxu0 0
        %871 = vmatpush1.bf16.msra.mxu0 %v853
        %872 = vmatprep.subr.bf16.mxu0 0
        %873 = vmatpush1.bf16.msra.mxu0 %v854
        %874 = vmatprep.subr.bf16.mxu0 0
        %875 = vmatpush1.bf16.msra.mxu0 %v855
        %876 = vmatprep.subr.bf16.mxu0 0
        %877 = vmatpush1.bf16.msra.mxu0 %v856
        %878 = vmatprep.subr.bf16.mxu0 0
        %879 = vmatpush1.bf16.msra.mxu0 %v857
        %880 = vmatprep.subr.bf16.mxu0 0
        %881 = vmatpush1.bf16.msra.mxu0 %v858
        %882 = vmatprep.subr.bf16.mxu0 0
        %883 = vmatpush1.bf16.msra.mxu0 %v859
        %884 = vmatprep.subr.bf16.mxu0 0
        %885 = vmatpush1.bf16.msra.mxu0 0
        %886 = vmatprep.subr.bf16.mxu0 0
        %887 = vmatpush1.bf16.msra.mxu0 0
        %888 = vmatprep.subr.bf16.mxu0 0
        %889 = vmatpush1.bf16.msra.mxu0 0
        %890 = vmatprep.subr.bf16.mxu0 0
        %891 = vmatpush1.bf16.msra.mxu0 0
        %892 = vmatprep.subr.bf16.mxu0 0
        %893 = vmatpush1.bf16.msra.mxu0 0
        %894 = vmatprep.subr.bf16.mxu0 0
        %895 = vmatpush1.bf16.msra.mxu0 0
        %896 = vmatprep.subr.bf16.mxu0 0
        %897 = vmatpush1.bf16.msra.mxu0 0
        %898 = vmatprep.subr.bf16.mxu0 0
        %899 = vmatpush1.bf16.msra.mxu0 0
        %900 = vmatprep.mubr.bf16.mxu0 0
        %901 = vmatmul.mubr.bf16.gmra.mrb[0].mxu0 %v800
        %v902 = vpop.f32.mrb[0].mxu0
        %v903 = vadd.f32 0.0, %v902
        %v904 = vpop.f32.mrb[0].mxu0
        %v905 = vpop.f32.mrb[0].mxu0
        %v906 = vadd.f32 0.0, %v905
        %v907 = vpop.f32.mrb[0].mxu0
        %908 = vmatprep.mubr.bf16.mxu0 0
        %909 = vmatmul.mubr.bf16.gmra.mrb[0].mxu0 %v801
        %v910 = vpop.f32.mrb[0].mxu0
        %v911 = vadd.f32 0.0, %v910
        %v912 = vpop.f32.mrb[0].mxu0
        %v913 = vpop.f32.mrb[0].mxu0
        %v914 = vadd.f32 0.0, %v913
        %v915 = vpop.f32.mrb[0].mxu0
        %916 = vmatprep.mubr.bf16.mxu0 0
        %917 = vmatmul.mubr.bf16.gmra.mrb[0].mxu0 %v802
        %v918 = vpop.f32.mrb[0].mxu0
        %v919 = vadd.f32 0.0, %v918
        %v920 = vpop.f32.mrb[0].mxu0
        %v921 = vpop.f32.mrb[0].mxu0
        %v922 = vadd.f32 0.0, %v921
        %v923 = vpop.f32.mrb[0].mxu0
        %924 = vmatprep.mubr.bf16.mxu0 0
        %925 = vmatmul.mubr.bf16.gmra.mrb[0].mxu0 %v803
        %v926 = vpop.f32.mrb[0].mxu0
        %v927 = vadd.f32 0.0, %v926
        %v928 = vpop.f32.mrb[0].mxu0
        %v929 = vpop.f32.mrb[0].mxu0
        %v930 = vadd.f32 0.0, %v929
        %v931 = vpop.f32.mrb[0].mxu0
        %932 = vdwg.mxu0
        %v933 = vld [vmem:[%s322] sm:$0xff]
        %v934 = vld [vmem:[%s322 + $0x8] sm:$0xff]
        %v935 = vld [vmem:[%s322 + $0x10] sm:$0xff]
        %v936 = vld [vmem:[%s322 + $0x18] sm:$0xff]
        %v937 = vld [vmem:[%s322 + $0x20] sm:$0xff]
        %v938 = vld [vmem:[%s322 + $0x28] sm:$0xff]
        %v939 = vld [vmem:[%s322 + $0x30] sm:$0xff]
        %v940 = vld [vmem:[%s322 + $0x38] sm:$0xff]
        %942 = vset.pattern.permute.xlu0 0
        %943 = vperm.xlu0 %942, %v933
        %v944 = vpop.permute.xlu0 %943
        %947 = vset.pattern.permute.xlu0 0
        %948 = vperm.xlu0 %947, %v934
        %v949 = vpop.permute.xlu0 %948
        %952 = vset.pattern.permute.xlu0 0
        %953 = vperm.xlu0 %952, %v935
        %v954 = vpop.permute.xlu0 %953
        %957 = vset.pattern.permute.xlu0 0
        %958 = vperm.xlu0 %957, %v936
        %v959 = vpop.permute.xlu0 %958
        %962 = vset.pattern.permute.xlu0 0
        %963 = vperm.xlu0 %962, %v937
        %v964 = vpop.permute.xlu0 %963
        %967 = vset.pattern.permute.xlu0 0
        %968 = vperm.xlu0 %967, %v938
        %v969 = vpop.permute.xlu0 %968
        %972 = vset.pattern.permute.xlu0 0
        %973 = vperm.xlu0 %972, %v939
        %v974 = vpop.permute.xlu0 %973
        %977 = vset.pattern.permute.xlu0 0
        %978 = vperm.xlu0 %977, %v940
        %v979 = vpop.permute.xlu0 %978
        %v981 = vmul.f32 %v903, %v944
        %v982 = vmul.f32 %v906, %v949
        %v983 = vmul.f32 %v911, %v954
        %v984 = vmul.f32 %v914, %v959
        %v985 = vmul.f32 %v919, %v964
        %v986 = vmul.f32 %v922, %v969
        %v987 = vmul.f32 %v927, %v974
        %v988 = vmul.f32 %v930, %v979
        %v989 = vld [vmem:[%s5] sm:$0x1]
        %v991 = vlaneseq
        %v992 = vshrl.u32 %v991, 7
        %v993 = vsub.s32 0, %v992
        %v994 = vrot.slane %v989, %v993
        %v996 = vadd.f32 %v981, %v994
        %v997 = vadd.f32 %v982, %v994
        %v998 = vadd.f32 %v983, %v994
        %v999 = vadd.f32 %v984, %v994
        %v1000 = vadd.f32 %v985, %v994
        %v1001 = vadd.f32 %v986, %v994
        %v1002 = vadd.f32 %v987, %v994
        %v1003 = vadd.f32 %v988, %v994
        %v1004 = vmax.f32 %v996, 0.0
        %v1005 = vmax.f32 %v997, 0.0
        %v1006 = vmax.f32 %v998, 0.0
        %v1007 = vmax.f32 %v999, 0.0
        %v1008 = vmax.f32 %v1000, 0.0
        %v1009 = vmax.f32 %v1001, 0.0
        %v1010 = vmax.f32 %v1002, 0.0
        %v1011 = vmax.f32 %v1003, 0.0
        %v1012 = vpack.c.bf16 %v1005, %v1004
        %v1013 = vpack.c.bf16 %v1007, %v1006
        %v1014 = vpack.c.bf16 %v1009, %v1008
        %v1015 = vpack.c.bf16 %v1011, %v1010
        %v1020 = vunpack.c.l.b16 %v1012
        %v1021 = vunpack.c.h.b16 %v1012
        %v1022 = vunpack.c.l.b16 %v1013
        %v1023 = vunpack.c.h.b16 %v1013
        %v1024 = vunpack.c.l.b16 %v1014
        %v1025 = vunpack.c.h.b16 %v1014
        %v1026 = vunpack.c.l.b16 %v1015
        %v1027 = vunpack.c.h.b16 %v1015
        %v1028 = vpack.c.b16 %v1020, %v1020
        %v1029 = vpack.c.b16 %v1021, %v1021
        %v1030 = vpack.c.b16 %v1022, %v1022
        %v1031 = vpack.c.b16 %v1023, %v1023
        %v1032 = vpack.c.b16 %v1024, %v1024
        %v1033 = vpack.c.b16 %v1025, %v1025
        %v1034 = vpack.c.b16 %v1026, %v1026
        %v1035 = vpack.c.b16 %v1027, %v1027
        %1044 = vst [vmem:[%s328] sm:$0xf] %v1028
        %1045 = vst [vmem:[%s328 + $0x4] sm:$0xf] %v1029
        %1046 = vst [vmem:[%s328 + $0x8] sm:$0xf] %v1030
        %1047 = vst [vmem:[%s328 + $0xc] sm:$0xf] %v1031
        %1048 = vst [vmem:[%s328 + $0x10] sm:$0xf] %v1032
        %1049 = vst [vmem:[%s328 + $0x14] sm:$0xf] %v1033
        %1050 = vst [vmem:[%s328 + $0x18] sm:$0xf] %v1034
        %1051 = vst [vmem:[%s328 + $0x1c] sm:$0xf] %v1035
      $region52: #{selective_multihop_gcn.4} parent=43 // pred_fallthru
        _
      %s1052 = smul.u32 8, %s21
      %p1053 = scmp.lt.s32.totalorder %s1052, 31
      %s1054 = scalar_select %p1053, %s1052, 31
      %s1055 = smul.addr %s1054, 4
      %s1056 = scalar_lea.vmem %s6, %s1055
      // Predicated region
      $region53: #{selective_multihop_gcn.4} parent=43 // pred_check
        %p1057 = pneg %p190
      $region54: #{selective_multihop_gcn.4} parent=43 // pred_check_branch
        %1059 = sbr.rel (%p1057) target = $region56
      $region55: #{selective_multihop_gcn.4} parent=43 // pred_region
        %s1060 = smul.u32 8, %s21
      $region56: #{selective_multihop_gcn.4} parent=43 // pred_fallthru
        _
    $region44: #{selective_multihop_gcn.4} parent=5 // pred_fallthru
      _
    %p1061 = scmp.le.s32.totalorder 2, %s12
    // Predicated region
    $region57: #{selective_multihop_gcn.4} parent=5 // pred_check
      %p1062 = pneg %p1061
    $region58: #{selective_multihop_gcn.4} parent=5 // pred_check_branch
      %1064 = sbr.rel (%p1062) target = $region60
    $region59: #{selective_multihop_gcn.4} parent=5 // pred_region
      %s1065 = ssub.s32 %s12, 2
      // Predicated region
      $region61: #{selective_multihop_gcn.4} parent=59 // pred_check
        %p1066 = pneg %p196
      $region62: #{selective_multihop_gcn.4} parent=59 // pred_check_branch
        %1068 = sbr.rel (%p1066) target = $region64
      $region63: #{selective_multihop_gcn.4} parent=59 // pred_region
        %s1069 = smul.u32 8, %s23
        %p1070 = scmp.lt.s32.totalorder %s1069, 31
        %s1071 = scalar_select %p1070, %s1069, 31
        %s1072 = smul.addr %s1071, 4
        %s1073 = scalar_lea.vmem %s6, %s1072
      $region64: #{selective_multihop_gcn.4} parent=59 // pred_fallthru
        _
    $region60: #{selective_multihop_gcn.4} parent=5 // pred_fallthru
      _
  $region6: #{selective_multihop_gcn.4} parent=0 // loop_footer
    %s16 = sadd.s32 1, %s12
  $region7: #{selective_multihop_gcn.4} parent=0 // loop_footer_branch
    %11 = sbr.rel target = $region3
  $region8: #{selective_multihop_gcn.4} parent=0 // loop_exit
    _

// kernel: selective_multihop_gcn.5
$region0: #{selective_multihop_gcn.5}
  #allocation0 [shape = 'u32[]', space=smem, size = 0x4, offset = 0x4, fixed_abs, tag = 'smem constant byte address 0x4 - core index']
  #allocation1 [shape = 'u32[144,128]{1,0:T(1,128)}', space=vmem, size = 0x12000, scoped, tag = 'internal scratch']
  #allocation2 [shape = 'f32[64,128]{1,0:T(8,128)}', space=vmem, size = 0x8000, scoped, tag = 'scratch operand']
  #allocation3 [shape = 'f32[1,1]{1,0:T(1,128)S(1)}', space=vmem, size = 0x200, scoped, tag = 'scoped memory for selective_multihop_gcn.5']
  %s0 = inlined_call_operand.vmem [shape: bf16[256,256], index: 0, kind: input, shape index: {}]
  %s1 = inlined_call_operand.vmem [shape: bf16[256,128], index: 1, kind: input, shape index: {}, may-alias: {1,7}]
  %s2 = inlined_call_operand.vmem [shape: f32[256,1], index: 2, kind: input, shape index: {}, may-alias: {2,3}]
  %s3 = inlined_call_operand.vmem [shape: f32[256,1], index: 3, kind: input, shape index: {}, may-alias: {2,3}]
  %s4 = inlined_call_operand.vmem [shape: bf16[128,128], index: 4, kind: input, shape index: {}]
  %s5 = inlined_call_operand.vmem [shape: f32[1,128], index: 5, kind: input, shape index: {}]
  %s6 = inlined_call_operand.vmem [shape: bf16[256,128], index: 6, kind: input, shape index: {}]
  %s7 = inlined_call_operand.vmem [shape: bf16[256,128], index: 7, kind: input, shape index: {}, may-alias: {1,7}]
  %s8 = inlined_call_operand.vmem [shape: f32[1,128], index: 8, kind: input, shape index: {}]
  %s9 = inlined_call_operand.vmem [shape: f32[1,128], index: 9, kind: input, shape index: {}]
  %s10 = inlined_call_operand.vmem [shape: f32[1,128], index: 10, kind: input, shape index: {}]
  %s11 = inlined_call_operand.<no memory space> [shape: f32[1,1], index: 11, kind: input, shape index: {}]
  %s12 = inlined_call_operand.vmem [shape: f32[256,1], index: 12, kind: output, shape index: {}]
  %s13 = sld [smem:[#allocation0]]
  $region89: #{selective_multihop_gcn.5} parent=0
    _
  %s15 = ssub.s32 1, %s13
  %s16 = scalar_select 0, %s15, %s13
  %v17 = vstv %s11
  %18 = vst [vmem:[#allocation3] sm:$0x1] %v17
  loop: start=0, step=1, limit=6
  $region2: #{selective_multihop_gcn.5} parent=0 // loop_pre_header
    _
  $region3: #{selective_multihop_gcn.5} parent=0 // loop_header
    %s20 = sphi 0, %s24
    %p21 = scmp.ge.s32.totalorder %s20, 6
    %s27 = sphi 0, %s39
    %s28 = sphi 0, %s35
    %s29 = sphi 0, %s27
    %s30 = sphi 0, %s28
    %s31 = sphi 0, %s29
    %s32 = sphi 0, %s30
    %s44 = sphi 0, %s46
    %s47 = sphi 0, %s44
    %s48 = sphi 0, %s47
    %s64 = sphi 0, %s48
    %s68 = sphi 0, %s68
    %s70 = sphi 0, %s68
    %s71 = sphi 0, %s70
    %s85 = sphi 0, %s71
    %s91 = sphi 0, %s93
    %s94 = sphi 0, %s91
    %s95 = sphi 0, %s94
    %s111 = sphi 0, %s95
    %s117 = sphi 0, %s119
    %s120 = sphi 0, %s117
    %s121 = sphi 0, %s120
    %s137 = sphi 0, %s121
    %s141 = sphi 0, %s141
    %s143 = sphi 0, %s141
    %s144 = sphi 0, %s143
    %s158 = sphi 0, %s144
    %s162 = sphi 0, %s162
    %s164 = sphi 0, %s162
    %s165 = sphi 0, %s164
    %s179 = sphi 0, %s165
    %s185 = sphi 0, %s187
    %s188 = sphi 0, %s185
    %s189 = sphi 0, %s188
    %s205 = sphi 0, %s189
    %s211 = sphi 0, %s213
    %s214 = sphi 0, %s211
    %s215 = sphi 0, %s214
    %s231 = sphi 0, %s215
    %s235 = sphi 0, %s235
    %s237 = sphi 0, %s235
    %s238 = sphi 0, %s237
    %s252 = sphi 0, %s238
    %s256 = sphi 0, %s256
    %s258 = sphi 0, %s256
    %s259 = sphi 0, %s258
    %s273 = sphi 0, %s259
    %s277 = sphi 0, %s277
    %s279 = sphi 0, %s277
    %s280 = sphi 0, %s279
    %s294 = sphi 0, %s280
    %s298 = sphi 0, %s298
    %s300 = sphi 0, %s298
    %s301 = sphi 0, %s300
    %s315 = sphi 0, %s301
    %s321 = sphi 0, %s323
    %s324 = sphi 0, %s321
    %s325 = sphi 0, %s324
    %s341 = sphi 0, %s325
  $region4: #{selective_multihop_gcn.5} parent=0 // loop_header_branch
    %23 = sbr.rel (%p21) target = $region8
  $region5: #{selective_multihop_gcn.5} parent=0 // loop_body
    %s25 = ssub.s32 %s20, 1
    %s26 = ssub.s32 %s20, 2
    %s33 = sadd.s32 1, %s28
    %p34 = scmp.ge.s32.totalorder %s33, 1
    %s35 = scalar_select %p34, 0, %s33
    %s36 = sadd.s32 1, %s27
    %s37 = scalar_select %p34, %s36, %s27
    %p38 = scmp.ge.s32.totalorder %s37, 4
    %s39 = scalar_select %p38, 0, %s37
    %s40 = ssub.s32 %s27, %s39
    %s41 = ssub.s32 %s28, %s35
    %s42 = sor.u32 %s40, %s41
    %p43 = scmp.eq.s32.totalorder %s42, 0
    %s45 = sadd.s32 %s44, 1
    %s46 = scalar_select %p43, %s44, %s45
    %p49 = pneg %p43
    %p50 = scmp.eq.s32.totalorder %s20, 3
    %p51 = por %p49, %p50
    %p52 = scmp.ne.s32.totalorder %s44, %s47
    %p53 = scmp.eq.s32.totalorder %s20, 0
    %p54 = por %p52, %p53
    %p55 = scmp.ne.s32.totalorder %s44, %s47
    %p56 = scmp.eq.s32.totalorder %s25, 3
    %p57 = por %p55, %p56
    %p58 = scmp.ne.s32.totalorder %s47, %s48
    %p59 = scmp.eq.s32.totalorder %s25, 0
    %p60 = por %p58, %p59
    %p61 = scmp.ne.s32.totalorder %s47, %s48
    %p62 = scmp.eq.s32.totalorder %s26, 3
    %p63 = por %p61, %p62
    %p65 = scmp.ne.s32.totalorder %s48, %s64
    %p66 = scmp.eq.s32.totalorder %s26, 0
    %p67 = por %p65, %p66
    %s69 = sadd.s32 %s68, 1
    %p72 = scmp.eq.s32.totalorder %s20, 3
    %p73 = scmp.ne.s32.totalorder %s68, %s70
    %p74 = scmp.eq.s32.totalorder %s20, 0
    %p75 = por %p73, %p74
    %p76 = scmp.ne.s32.totalorder %s68, %s70
    %p77 = scmp.eq.s32.totalorder %s25, 3
    %p78 = por %p76, %p77
    %p79 = scmp.ne.s32.totalorder %s70, %s71
    %p80 = scmp.eq.s32.totalorder %s25, 0
    %p81 = por %p79, %p80
    %p82 = scmp.ne.s32.totalorder %s70, %s71
    %p83 = scmp.eq.s32.totalorder %s26, 3
    %p84 = por %p82, %p83
    %p86 = scmp.ne.s32.totalorder %s71, %s85
    %p87 = scmp.eq.s32.totalorder %s26, 0
    %p88 = por %p86, %p87
    %s89 = ssub.s32 %s28, %s35
    %p90 = scmp.eq.s32.totalorder %s89, 0
    %s92 = sadd.s32 %s91, 1
    %s93 = scalar_select %p90, %s91, %s92
    %p96 = pneg %p90
    %p97 = scmp.eq.s32.totalorder %s20, 3
    %p98 = por %p96, %p97
    %p99 = scmp.ne.s32.totalorder %s91, %s94
    %p100 = scmp.eq.s32.totalorder %s20, 0
    %p101 = por %p99, %p100
    %p102 = scmp.ne.s32.totalorder %s91, %s94
    %p103 = scmp.eq.s32.totalorder %s25, 3
    %p104 = por %p102, %p103
    %p105 = scmp.ne.s32.totalorder %s94, %s95
    %p106 = scmp.eq.s32.totalorder %s25, 0
    %p107 = por %p105, %p106
    %p108 = scmp.ne.s32.totalorder %s94, %s95
    %p109 = scmp.eq.s32.totalorder %s26, 3
    %p110 = por %p108, %p109
    %p112 = scmp.ne.s32.totalorder %s95, %s111
    %p113 = scmp.eq.s32.totalorder %s26, 0
    %p114 = por %p112, %p113
    %s115 = ssub.s32 %s27, %s39
    %p116 = scmp.eq.s32.totalorder %s115, 0
    %s118 = sadd.s32 %s117, 1
    %s119 = scalar_select %p116, %s117, %s118
    %p122 = pneg %p116
    %p123 = scmp.eq.s32.totalorder %s20, 3
    %p124 = por %p122, %p123
    %p125 = scmp.ne.s32.totalorder %s117, %s120
    %p126 = scmp.eq.s32.totalorder %s20, 0
    %p127 = por %p125, %p126
    %p128 = scmp.ne.s32.totalorder %s117, %s120
    %p129 = scmp.eq.s32.totalorder %s25, 3
    %p130 = por %p128, %p129
    %p131 = scmp.ne.s32.totalorder %s120, %s121
    %p132 = scmp.eq.s32.totalorder %s25, 0
    %p133 = por %p131, %p132
    %p134 = scmp.ne.s32.totalorder %s120, %s121
    %p135 = scmp.eq.s32.totalorder %s26, 3
    %p136 = por %p134, %p135
    %p138 = scmp.ne.s32.totalorder %s121, %s137
    %p139 = scmp.eq.s32.totalorder %s26, 0
    %p140 = por %p138, %p139
    %s142 = sadd.s32 %s141, 1
    %p145 = scmp.eq.s32.totalorder %s20, 3
    %p146 = scmp.ne.s32.totalorder %s141, %s143
    %p147 = scmp.eq.s32.totalorder %s20, 0
    %p148 = por %p146, %p147
    %p149 = scmp.ne.s32.totalorder %s141, %s143
    %p150 = scmp.eq.s32.totalorder %s25, 3
    %p151 = por %p149, %p150
    %p152 = scmp.ne.s32.totalorder %s143, %s144
    %p153 = scmp.eq.s32.totalorder %s25, 0
    %p154 = por %p152, %p153
    %p155 = scmp.ne.s32.totalorder %s143, %s144
    %p156 = scmp.eq.s32.totalorder %s26, 3
    %p157 = por %p155, %p156
    %p159 = scmp.ne.s32.totalorder %s144, %s158
    %p160 = scmp.eq.s32.totalorder %s26, 0
    %p161 = por %p159, %p160
    %s163 = sadd.s32 %s162, 1
    %p166 = scmp.eq.s32.totalorder %s20, 3
    %p167 = scmp.ne.s32.totalorder %s162, %s164
    %p168 = scmp.eq.s32.totalorder %s20, 0
    %p169 = por %p167, %p168
    %p170 = scmp.ne.s32.totalorder %s162, %s164
    %p171 = scmp.eq.s32.totalorder %s25, 3
    %p172 = por %p170, %p171
    %p173 = scmp.ne.s32.totalorder %s164, %s165
    %p174 = scmp.eq.s32.totalorder %s25, 0
    %p175 = por %p173, %p174
    %p176 = scmp.ne.s32.totalorder %s164, %s165
    %p177 = scmp.eq.s32.totalorder %s26, 3
    %p178 = por %p176, %p177
    %p180 = scmp.ne.s32.totalorder %s165, %s179
    %p181 = scmp.eq.s32.totalorder %s26, 0
    %p182 = por %p180, %p181
    %s183 = ssub.s32 %s27, %s39
    %p184 = scmp.eq.s32.totalorder %s183, 0
    %s186 = sadd.s32 %s185, 1
    %s187 = scalar_select %p184, %s185, %s186
    %p190 = pneg %p184
    %p191 = scmp.eq.s32.totalorder %s20, 3
    %p192 = por %p190, %p191
    %p193 = scmp.ne.s32.totalorder %s185, %s188
    %p194 = scmp.eq.s32.totalorder %s20, 0
    %p195 = por %p193, %p194
    %p196 = scmp.ne.s32.totalorder %s185, %s188
    %p197 = scmp.eq.s32.totalorder %s25, 3
    %p198 = por %p196, %p197
    %p199 = scmp.ne.s32.totalorder %s188, %s189
    %p200 = scmp.eq.s32.totalorder %s25, 0
    %p201 = por %p199, %p200
    %p202 = scmp.ne.s32.totalorder %s188, %s189
    %p203 = scmp.eq.s32.totalorder %s26, 3
    %p204 = por %p202, %p203
    %p206 = scmp.ne.s32.totalorder %s189, %s205
    %p207 = scmp.eq.s32.totalorder %s26, 0
    %p208 = por %p206, %p207
    %s209 = ssub.s32 %s27, %s39
    %p210 = scmp.eq.s32.totalorder %s209, 0
    %s212 = sadd.s32 %s211, 1
    %s213 = scalar_select %p210, %s211, %s212
    %p216 = pneg %p210
    %p217 = scmp.eq.s32.totalorder %s20, 3
    %p218 = por %p216, %p217
    %p219 = scmp.ne.s32.totalorder %s211, %s214
    %p220 = scmp.eq.s32.totalorder %s20, 0
    %p221 = por %p219, %p220
    %p222 = scmp.ne.s32.totalorder %s211, %s214
    %p223 = scmp.eq.s32.totalorder %s25, 3
    %p224 = por %p222, %p223
    %p225 = scmp.ne.s32.totalorder %s214, %s215
    %p226 = scmp.eq.s32.totalorder %s25, 0
    %p227 = por %p225, %p226
    %p228 = scmp.ne.s32.totalorder %s214, %s215
    %p229 = scmp.eq.s32.totalorder %s26, 3
    %p230 = por %p228, %p229
    %p232 = scmp.ne.s32.totalorder %s215, %s231
    %p233 = scmp.eq.s32.totalorder %s26, 0
    %p234 = por %p232, %p233
    %s236 = sadd.s32 %s235, 1
    %p239 = scmp.eq.s32.totalorder %s20, 3
    %p240 = scmp.ne.s32.totalorder %s235, %s237
    %p241 = scmp.eq.s32.totalorder %s20, 0
    %p242 = por %p240, %p241
    %p243 = scmp.ne.s32.totalorder %s235, %s237
    %p244 = scmp.eq.s32.totalorder %s25, 3
    %p245 = por %p243, %p244
    %p246 = scmp.ne.s32.totalorder %s237, %s238
    %p247 = scmp.eq.s32.totalorder %s25, 0
    %p248 = por %p246, %p247
    %p249 = scmp.ne.s32.totalorder %s237, %s238
    %p250 = scmp.eq.s32.totalorder %s26, 3
    %p251 = por %p249, %p250
    %p253 = scmp.ne.s32.totalorder %s238, %s252
    %p254 = scmp.eq.s32.totalorder %s26, 0
    %p255 = por %p253, %p254
    %s257 = sadd.s32 %s256, 1
    %p260 = scmp.eq.s32.totalorder %s20, 3
    %p261 = scmp.ne.s32.totalorder %s256, %s258
    %p262 = scmp.eq.s32.totalorder %s20, 0
    %p263 = por %p261, %p262
    %p264 = scmp.ne.s32.totalorder %s256, %s258
    %p265 = scmp.eq.s32.totalorder %s25, 3
    %p266 = por %p264, %p265
    %p267 = scmp.ne.s32.totalorder %s258, %s259
    %p268 = scmp.eq.s32.totalorder %s25, 0
    %p269 = por %p267, %p268
    %p270 = scmp.ne.s32.totalorder %s258, %s259
    %p271 = scmp.eq.s32.totalorder %s26, 3
    %p272 = por %p270, %p271
    %p274 = scmp.ne.s32.totalorder %s259, %s273
    %p275 = scmp.eq.s32.totalorder %s26, 0
    %p276 = por %p274, %p275
    %s278 = sadd.s32 %s277, 1
    %p281 = scmp.eq.s32.totalorder %s20, 3
    %p282 = scmp.ne.s32.totalorder %s277, %s279
    %p283 = scmp.eq.s32.totalorder %s20, 0
    %p284 = por %p282, %p283
    %p285 = scmp.ne.s32.totalorder %s277, %s279
    %p286 = scmp.eq.s32.totalorder %s25, 3
    %p287 = por %p285, %p286
    %p288 = scmp.ne.s32.totalorder %s279, %s280
    %p289 = scmp.eq.s32.totalorder %s25, 0
    %p290 = por %p288, %p289
    %p291 = scmp.ne.s32.totalorder %s279, %s280
    %p292 = scmp.eq.s32.totalorder %s26, 3
    %p293 = por %p291, %p292
    %p295 = scmp.ne.s32.totalorder %s280, %s294
    %p296 = scmp.eq.s32.totalorder %s26, 0
    %p297 = por %p295, %p296
    %s299 = sadd.s32 %s298, 1
    %p302 = scmp.eq.s32.totalorder %s20, 3
    %p303 = scmp.ne.s32.totalorder %s298, %s300
    %p304 = scmp.eq.s32.totalorder %s20, 0
    %p305 = por %p303, %p304
    %p306 = scmp.ne.s32.totalorder %s298, %s300
    %p307 = scmp.eq.s32.totalorder %s25, 3
    %p308 = por %p306, %p307
    %p309 = scmp.ne.s32.totalorder %s300, %s301
    %p310 = scmp.eq.s32.totalorder %s25, 0
    %p311 = por %p309, %p310
    %p312 = scmp.ne.s32.totalorder %s300, %s301
    %p313 = scmp.eq.s32.totalorder %s26, 3
    %p314 = por %p312, %p313
    %p316 = scmp.ne.s32.totalorder %s301, %s315
    %p317 = scmp.eq.s32.totalorder %s26, 0
    %p318 = por %p316, %p317
    %s319 = ssub.s32 %s27, %s39
    %p320 = scmp.eq.s32.totalorder %s319, 0
    %s322 = sadd.s32 %s321, 1
    %s323 = scalar_select %p320, %s321, %s322
    %p326 = pneg %p320
    %p327 = scmp.eq.s32.totalorder %s20, 3
    %p328 = por %p326, %p327
    %p329 = scmp.ne.s32.totalorder %s321, %s324
    %p330 = scmp.eq.s32.totalorder %s20, 0
    %p331 = por %p329, %p330
    %p332 = scmp.ne.s32.totalorder %s321, %s324
    %p333 = scmp.eq.s32.totalorder %s25, 3
    %p334 = por %p332, %p333
    %p335 = scmp.ne.s32.totalorder %s324, %s325
    %p336 = scmp.eq.s32.totalorder %s25, 0
    %p337 = por %p335, %p336
    %p338 = scmp.ne.s32.totalorder %s324, %s325
    %p339 = scmp.eq.s32.totalorder %s26, 3
    %p340 = por %p338, %p339
    %p342 = scmp.ne.s32.totalorder %s325, %s341
    %p343 = scmp.eq.s32.totalorder %s26, 0
    %p344 = por %p342, %p343
    %p345 = scmp.le.s32.totalorder 1, %s20
    %p346 = scmp.lt.s32.totalorder %s20, 5
    %p347 = pnand %p345, %p346
    %p348 = pneg %p347
    // Predicated region
    $region9: #{selective_multihop_gcn.5} parent=5 // pred_check
      _
    $region10: #{selective_multihop_gcn.5} parent=5 // pred_check_branch
      %350 = sbr.rel (%p347) target = $region12
    $region11: #{selective_multihop_gcn.5} parent=5 // pred_region
      %s351 = ssub.s32 %s20, 1
      // Predicated region
      $region13: #{selective_multihop_gcn.5} parent=11 // pred_check
        %p352 = pneg %p81
      $region14: #{selective_multihop_gcn.5} parent=11 // pred_check_branch
        %354 = sbr.rel (%p352) target = $region16
      $region15: #{selective_multihop_gcn.5} parent=11 // pred_region
        _
      $region16: #{selective_multihop_gcn.5} parent=11 // pred_fallthru
        _
      // Predicated region
      $region17: #{selective_multihop_gcn.5} parent=11 // pred_check
        %p355 = pneg %p107
      $region18: #{selective_multihop_gcn.5} parent=11 // pred_check_branch
        %357 = sbr.rel (%p355) target = $region20
      $region19: #{selective_multihop_gcn.5} parent=11 // pred_region
        %s358 = smul.u32 32, %s30
        %p359 = scmp.lt.s32.totalorder %s358, 31
        %s360 = scalar_select %p359, %s358, 31
        %s361 = smul.addr %s360, 8
        %s362 = scalar_lea.vmem %s2, %s361
        %s363 = smul.u32 32, %s30
      $region20: #{selective_multihop_gcn.5} parent=11 // pred_fallthru
        _
      // Predicated region
      $region21: #{selective_multihop_gcn.5} parent=11 // pred_check
        %p364 = pneg %p154
      $region22: #{selective_multihop_gcn.5} parent=11 // pred_check_branch
        %366 = sbr.rel (%p364) target = $region24
      $region23: #{selective_multihop_gcn.5} parent=11 // pred_region
        _
      $region24: #{selective_multihop_gcn.5} parent=11 // pred_fallthru
        _
      // Predicated region
      $region25: #{selective_multihop_gcn.5} parent=11 // pred_check
        %p367 = pneg %p175
      $region26: #{selective_multihop_gcn.5} parent=11 // pred_check_branch
        %369 = sbr.rel (%p367) target = $region28
      $region27: #{selective_multihop_gcn.5} parent=11 // pred_region
        _
      $region28: #{selective_multihop_gcn.5} parent=11 // pred_fallthru
        _
      // Predicated region
      $region29: #{selective_multihop_gcn.5} parent=11 // pred_check
        %p370 = pneg %p248
      $region30: #{selective_multihop_gcn.5} parent=11 // pred_check_branch
        %372 = sbr.rel (%p370) target = $region32
      $region31: #{selective_multihop_gcn.5} parent=11 // pred_region
        _
      $region32: #{selective_multihop_gcn.5} parent=11 // pred_fallthru
        _
      // Predicated region
      $region33: #{selective_multihop_gcn.5} parent=11 // pred_check
        %p373 = pneg %p269
      $region34: #{selective_multihop_gcn.5} parent=11 // pred_check_branch
        %375 = sbr.rel (%p373) target = $region36
      $region35: #{selective_multihop_gcn.5} parent=11 // pred_region
        _
      $region36: #{selective_multihop_gcn.5} parent=11 // pred_fallthru
        _
      // Predicated region
      $region37: #{selective_multihop_gcn.5} parent=11 // pred_check
        %p376 = pneg %p290
      $region38: #{selective_multihop_gcn.5} parent=11 // pred_check_branch
        %378 = sbr.rel (%p376) target = $region40
      $region39: #{selective_multihop_gcn.5} parent=11 // pred_region
        _
      $region40: #{selective_multihop_gcn.5} parent=11 // pred_fallthru
        _
      // Predicated region
      $region41: #{selective_multihop_gcn.5} parent=11 // pred_check
        %p379 = pneg %p311
      $region42: #{selective_multihop_gcn.5} parent=11 // pred_check_branch
        %381 = sbr.rel (%p379) target = $region44
      $region43: #{selective_multihop_gcn.5} parent=11 // pred_region
        _
      $region44: #{selective_multihop_gcn.5} parent=11 // pred_fallthru
        _
    $region12: #{selective_multihop_gcn.5} parent=5 // pred_fallthru
      _
    %p382 = scmp.lt.s32.totalorder %s20, 4
    // Predicated region
    $region45: #{selective_multihop_gcn.5} parent=5 // pred_check
      %p383 = pneg %p382
    $region46: #{selective_multihop_gcn.5} parent=5 // pred_check_branch
      %385 = sbr.rel (%p383) target = $region48
    $region47: #{selective_multihop_gcn.5} parent=5 // pred_region
      // Predicated region
      $region49: #{selective_multihop_gcn.5} parent=47 // pred_check
        %p386 = pneg %p54
      $region50: #{selective_multihop_gcn.5} parent=47 // pred_check_branch
        %388 = sbr.rel (%p386) target = $region52
      $region51: #{selective_multihop_gcn.5} parent=47 // pred_region
        %s389 = smul.u32 8, %s27
        %s390 = smul.u32 2, %s28
        %p391 = scmp.lt.s32.totalorder %s389, 31
        %s392 = scalar_select %p391, %s389, 31
        %p393 = scmp.lt.s32.totalorder %s390, 1
        %s394 = scalar_select %p393, %s390, 1
        %s395 = smul.addr %s392, 2
        %s396 = sadd.s32 %s394, %s395
        %s397 = smul.addr %s396, 4
        %s398 = scalar_lea.vmem %s0, %s397
        %s399 = smul.u32 8, %s27
        %s400 = smul.u32 2, %s28
      $region52: #{selective_multihop_gcn.5} parent=47 // pred_fallthru
        _
      // Predicated region
      $region53: #{selective_multihop_gcn.5} parent=47 // pred_check
        %p401 = pneg %p127
      $region54: #{selective_multihop_gcn.5} parent=47 // pred_check_branch
        %403 = sbr.rel (%p401) target = $region56
      $region55: #{selective_multihop_gcn.5} parent=47 // pred_region
        %s404 = smul.u32 8, %s27
        %p405 = scmp.lt.s32.totalorder %s404, 31
        %s406 = scalar_select %p405, %s404, 31
        %s407 = smul.addr %s406, 8
        %s408 = scalar_lea.vmem %s3, %s407
        %s409 = smul.u32 8, %s27
      $region56: #{selective_multihop_gcn.5} parent=47 // pred_fallthru
        _
      // Predicated region
      $region57: #{selective_multihop_gcn.5} parent=47 // pred_check
        %p410 = pneg %p195
      $region58: #{selective_multihop_gcn.5} parent=47 // pred_check_branch
        %412 = sbr.rel (%p410) target = $region60
      $region59: #{selective_multihop_gcn.5} parent=47 // pred_region
        %s413 = smul.u32 8, %s27
        %p414 = scmp.lt.s32.totalorder %s413, 31
        %s415 = scalar_select %p414, %s413, 31
        %s416 = smul.addr %s415, 4
        %s417 = scalar_lea.vmem %s6, %s416
        %s418 = smul.u32 8, %s27
      $region60: #{selective_multihop_gcn.5} parent=47 // pred_fallthru
        _
      // Predicated region
      $region61: #{selective_multihop_gcn.5} parent=47 // pred_check
        %p419 = pneg %p221
      $region62: #{selective_multihop_gcn.5} parent=47 // pred_check_branch
        %421 = sbr.rel (%p419) target = $region64
      $region63: #{selective_multihop_gcn.5} parent=47 // pred_region
        %s422 = smul.u32 8, %s27
        %p423 = scmp.lt.s32.totalorder %s422, 31
        %s424 = scalar_select %p423, %s422, 31
        %s425 = smul.addr %s424, 4
        %s426 = scalar_lea.vmem %s7, %s425
        %s427 = smul.u32 8, %s27
      $region64: #{selective_multihop_gcn.5} parent=47 // pred_fallthru
        _
    $region48: #{selective_multihop_gcn.5} parent=5 // pred_fallthru
      _
    %p428 = scmp.le.s32.totalorder 1, %s20
    %p429 = scmp.lt.s32.totalorder %s20, 5
    %p430 = pnand %p428, %p429
    %p431 = pneg %p430
    // Predicated region
    $region65: #{selective_multihop_gcn.5} parent=5 // pred_check
      _
    $region66: #{selective_multihop_gcn.5} parent=5 // pred_check_branch
      %433 = sbr.rel (%p430) target = $region68
    $region67: #{selective_multihop_gcn.5} parent=5 // pred_region
      %s434 = ssub.s32 %s20, 1
      %s435 = smul.u32 8, %s29
      %s436 = smul.u32 2, %s30
      %p437 = scmp.lt.s32.totalorder %s435, 31
      %s438 = scalar_select %p437, %s435, 31
      %p439 = scmp.lt.s32.totalorder %s436, 1
      %s440 = scalar_select %p439, %s436, 1
      %s441 = smul.addr %s438, 2
      %s442 = sadd.s32 %s440, %s441
      %s443 = smul.addr %s442, 4
      %s444 = scalar_lea.vmem %s0, %s443
      %p445 = pneg %p60
      %p446 = pneg %p57
      %p447 = pneg %p81
      %p448 = pneg %p78
      %s449 = smul.u32 32, %s30
      %p450 = scmp.lt.s32.totalorder %s449, 31
      %s451 = scalar_select %p450, %s449, 31
      %s452 = smul.addr %s451, 8
      %s453 = scalar_lea.vmem %s2, %s452
      %p454 = pneg %p107
      %p455 = pneg %p104
      %s456 = smul.u32 8, %s29
      %p457 = scmp.lt.s32.totalorder %s456, 31
      %s458 = scalar_select %p457, %s456, 31
      %s459 = smul.addr %s458, 8
      %s460 = scalar_lea.vmem %s3, %s459
      %p461 = pneg %p133
      %p462 = pneg %p130
      %p463 = pneg %p154
      %p464 = pneg %p151
      %p465 = pneg %p175
      %p466 = pneg %p172
      %s467 = smul.u32 8, %s29
      %p468 = scmp.lt.s32.totalorder %s467, 31
      %s469 = scalar_select %p468, %s467, 31
      %s470 = smul.addr %s469, 4
      %s471 = scalar_lea.vmem %s6, %s470
      %p472 = pneg %p201
      %p473 = pneg %p198
      %s474 = smul.u32 8, %s29
      %p475 = scmp.lt.s32.totalorder %s474, 31
      %s476 = scalar_select %p475, %s474, 31
      %s477 = smul.addr %s476, 4
      %s478 = scalar_lea.vmem %s7, %s477
      %p479 = pneg %p227
      %p480 = pneg %p224
      %p481 = pneg %p248
      %p482 = pneg %p245
      %p483 = pneg %p269
      %p484 = pneg %p266
      %p485 = pneg %p290
      %p486 = pneg %p287
      %p487 = pneg %p311
      %p488 = pneg %p308
      %p489 = pneg %p337
      %p490 = pneg %p334
      %s491 = smul.u32 8, %s29
      %p492 = scmp.lt.s32.totalorder %s491, 31
      %s493 = scalar_select %p492, %s491, 31
      %s494 = smul.addr %s493, 8
      %s495 = scalar_lea.vmem %s12, %s494
      %s496 = smul.u32 8, %s29
      %s497 = smul.u32 2, %s30
      %p498 = scmp.lt.s32.totalorder %s496, 31
      %s499 = scalar_select %p498, %s496, 31
      %p500 = scmp.lt.s32.totalorder %s497, 1
      %s501 = scalar_select %p500, %s497, 1
      %s502 = smul.addr %s499, 2
      %s503 = sadd.s32 %s501, %s502
      %s504 = smul.addr %s503, 4
      %s505 = scalar_lea.vmem %s0, %s504
      %s506 = smul.u32 8, %s29
      %s507 = smul.u32 2, %s30
      %s508 = smul.u32 32, %s30
      %p509 = scmp.lt.s32.totalorder %s508, 31
      %s510 = scalar_select %p509, %s508, 31
      %s511 = smul.addr %s510, 8
      %s512 = scalar_lea.vmem %s2, %s511
      %s513 = smul.u32 32, %s30
      %s514 = smul.u32 8, %s29
      %p515 = scmp.lt.s32.totalorder %s514, 31
      %s516 = scalar_select %p515, %s514, 31
      %s517 = smul.addr %s516, 8
      %s518 = scalar_lea.vmem %s3, %s517
      %s519 = smul.u32 8, %s29
      %s520 = smul.u32 8, %s29
      %p521 = scmp.lt.s32.totalorder %s520, 31
      %s522 = scalar_select %p521, %s520, 31
      %s523 = smul.addr %s522, 4
      %s524 = scalar_lea.vmem %s6, %s523
      %s525 = smul.u32 8, %s29
      %s526 = smul.u32 8, %s29
      %p527 = scmp.lt.s32.totalorder %s526, 31
      %s528 = scalar_select %p527, %s526, 31
      %s529 = smul.addr %s528, 4
      %s530 = scalar_lea.vmem %s7, %s529
      %s531 = smul.u32 8, %s29
      %s532 = smul.u32 8, %s29
      %p533 = scmp.lt.s32.totalorder %s532, 31
      %s534 = scalar_select %p533, %s532, 31
      %s535 = smul.addr %s534, 8
      %s536 = scalar_lea.vmem %s12, %s535
      %s537 = smul.u32 8, %s29
      %p539 = scmp.eq.s32.totalorder %s30, 0
      // Predicated region
      $region69: #{selective_multihop_gcn.5} parent=67 // pred_check
        %p540 = pneg %p539
      $region70: #{selective_multihop_gcn.5} parent=67 // pred_check_branch
        %542 = sbr.rel (%p540) target = $region72
      $region71: #{selective_multihop_gcn.5} parent=67 // pred_region
        %543 = vst [vmem:[#allocation2] sm:$0xff] 0.0
        %544 = vst [vmem:[#allocation2 + $0x8] sm:$0xff] 0.0
        %545 = vst [vmem:[#allocation2 + $0x10] sm:$0xff] 0.0
        %546 = vst [vmem:[#allocation2 + $0x18] sm:$0xff] 0.0
        %547 = vst [vmem:[#allocation2 + $0x20] sm:$0xff] 0.0
        %548 = vst [vmem:[#allocation2 + $0x28] sm:$0xff] 0.0
        %549 = vst [vmem:[#allocation2 + $0x30] sm:$0xff] 0.0
        %550 = vst [vmem:[#allocation2 + $0x38] sm:$0xff] 0.0
      $region72: #{selective_multihop_gcn.5} parent=67 // pred_fallthru
        _
      %s551 = smul.u32 %s30, 256
      %s552 = sshra.s32 %s551, 3
      %s553 = sand.u32 %s551, 7
      %s554 = smul.addr %s552, 4
      %s555 = scalar_lea.vmem %s1, %s554
      %v556 = vld [vmem:[%s555] sm:$0xf]
      %v557 = vld [vmem:[%s555 + $0x4] sm:$0xf]
      %v558 = vld [vmem:[%s555 + $0x8] sm:$0xf]
      %v559 = vld [vmem:[%s555 + $0xc] sm:$0xf]
      %v560 = vld [vmem:[%s555 + $0x10] sm:$0xf]
      %v561 = vld [vmem:[%s555 + $0x14] sm:$0xf]
      %v562 = vld [vmem:[%s555 + $0x18] sm:$0xf]
      %v563 = vld [vmem:[%s555 + $0x1c] sm:$0xf]
      %v564 = vld [vmem:[%s555 + $0x20] sm:$0xf]
      %v565 = vld [vmem:[%s555 + $0x24] sm:$0xf]
      %v566 = vld [vmem:[%s555 + $0x28] sm:$0xf]
      %v567 = vld [vmem:[%s555 + $0x2c] sm:$0xf]
      %v568 = vld [vmem:[%s555 + $0x30] sm:$0xf]
      %v569 = vld [vmem:[%s555 + $0x34] sm:$0xf]
      %v570 = vld [vmem:[%s555 + $0x38] sm:$0xf]
      %v571 = vld [vmem:[%s555 + $0x3c] sm:$0xf]
      %v572 = vld [vmem:[%s555 + $0x40] sm:$0xf]
      %v573 = vld [vmem:[%s555 + $0x44] sm:$0xf]
      %v574 = vld [vmem:[%s555 + $0x48] sm:$0xf]
      %v575 = vld [vmem:[%s555 + $0x4c] sm:$0xf]
      %v576 = vld [vmem:[%s555 + $0x50] sm:$0xf]
      %v577 = vld [vmem:[%s555 + $0x54] sm:$0xf]
      %v578 = vld [vmem:[%s555 + $0x58] sm:$0xf]
      %v579 = vld [vmem:[%s555 + $0x5c] sm:$0xf]
      %v580 = vld [vmem:[%s555 + $0x60] sm:$0xf]
      %v581 = vld [vmem:[%s555 + $0x64] sm:$0xf]
      %v582 = vld [vmem:[%s555 + $0x68] sm:$0xf]
      %v583 = vld [vmem:[%s555 + $0x6c] sm:$0xf]
      %v584 = vld [vmem:[%s555 + $0x70] sm:$0xf]
      %v585 = vld [vmem:[%s555 + $0x74] sm:$0xf]
      %v586 = vld [vmem:[%s555 + $0x78] sm:$0xf]
      %v587 = vld [vmem:[%s555 + $0x7c] sm:$0xf]
      %v588 = vunpack.c.l.bf16 %v556
      %v589 = vunpack.c.l.bf16 %v557
      %v590 = vunpack.c.l.bf16 %v558
      %v591 = vunpack.c.l.bf16 %v559
      %v592 = vunpack.c.l.bf16 %v560
      %v593 = vunpack.c.l.bf16 %v561
      %v594 = vunpack.c.l.bf16 %v562
      %v595 = vunpack.c.l.bf16 %v563
      %v596 = vunpack.c.l.bf16 %v564
      %v597 = vunpack.c.l.bf16 %v565
      %v598 = vunpack.c.l.bf16 %v566
      %v599 = vunpack.c.l.bf16 %v567
      %v600 = vunpack.c.l.bf16 %v568
      %v601 = vunpack.c.l.bf16 %v569
      %v602 = vunpack.c.l.bf16 %v570
      %v603 = vunpack.c.l.bf16 %v571
      %v604 = vunpack.c.l.bf16 %v572
      %v605 = vunpack.c.l.bf16 %v573
      %v606 = vunpack.c.l.bf16 %v574
      %v607 = vunpack.c.l.bf16 %v575
      %v608 = vunpack.c.l.bf16 %v576
      %v609 = vunpack.c.l.bf16 %v577
      %v610 = vunpack.c.l.bf16 %v578
      %v611 = vunpack.c.l.bf16 %v579
      %v612 = vunpack.c.l.bf16 %v580
      %v613 = vunpack.c.l.bf16 %v581
      %v614 = vunpack.c.l.bf16 %v582
      %v615 = vunpack.c.l.bf16 %v583
      %v616 = vunpack.c.l.bf16 %v584
      %v617 = vunpack.c.l.bf16 %v585
      %v618 = vunpack.c.l.bf16 %v586
      %v619 = vunpack.c.l.bf16 %v587
      %v620 = vld [vmem:[%s512] sm:$0xff]
      %v621 = vld [vmem:[%s512 + $0x8] sm:$0xff]
      %v622 = vld [vmem:[%s512 + $0x10] sm:$0xff]
      %v623 = vld [vmem:[%s512 + $0x18] sm:$0xff]
      %v624 = vld [vmem:[%s512 + $0x20] sm:$0xff]
      %v625 = vld [vmem:[%s512 + $0x28] sm:$0xff]
      %v626 = vld [vmem:[%s512 + $0x30] sm:$0xff]
      %v627 = vld [vmem:[%s512 + $0x38] sm:$0xff]
      %v628 = vld [vmem:[%s512 + $0x40] sm:$0xff]
      %v629 = vld [vmem:[%s512 + $0x48] sm:$0xff]
      %v630 = vld [vmem:[%s512 + $0x50] sm:$0xff]
      %v631 = vld [vmem:[%s512 + $0x58] sm:$0xff]
      %v632 = vld [vmem:[%s512 + $0x60] sm:$0xff]
      %v633 = vld [vmem:[%s512 + $0x68] sm:$0xff]
      %v634 = vld [vmem:[%s512 + $0x70] sm:$0xff]
      %v635 = vld [vmem:[%s512 + $0x78] sm:$0xff]
      %v636 = vld [vmem:[%s512 + $0x80] sm:$0xff]
      %v637 = vld [vmem:[%s512 + $0x88] sm:$0xff]
      %v638 = vld [vmem:[%s512 + $0x90] sm:$0xff]
      %v639 = vld [vmem:[%s512 + $0x98] sm:$0xff]
      %v640 = vld [vmem:[%s512 + $0xa0] sm:$0xff]
      %v641 = vld [vmem:[%s512 + $0xa8] sm:$0xff]
      %v642 = vld [vmem:[%s512 + $0xb0] sm:$0xff]
      %v643 = vld [vmem:[%s512 + $0xb8] sm:$0xff]
      %v644 = vld [vmem:[%s512 + $0xc0] sm:$0xff]
      %v645 = vld [vmem:[%s512 + $0xc8] sm:$0xff]
      %v646 = vld [vmem:[%s512 + $0xd0] sm:$0xff]
      %v647 = vld [vmem:[%s512 + $0xd8] sm:$0xff]
      %v648 = vld [vmem:[%s512 + $0xe0] sm:$0xff]
      %v649 = vld [vmem:[%s512 + $0xe8] sm:$0xff]
      %v650 = vld [vmem:[%s512 + $0xf0] sm:$0xff]
      %v651 = vld [vmem:[%s512 + $0xf8] sm:$0xff]
      %653 = vset.pattern.permute.xlu0 0
      %654 = vperm.xlu0 %653, %v620
      %v655 = vpop.permute.xlu0 %654
      %658 = vset.pattern.permute.xlu0 0
      %659 = vperm.xlu0 %658, %v621
      %v660 = vpop.permute.xlu0 %659
      %663 = vset.pattern.permute.xlu0 0
      %664 = vperm.xlu0 %663, %v622
      %v665 = vpop.permute.xlu0 %664
      %668 = vset.pattern.permute.xlu0 0
      %669 = vperm.xlu0 %668, %v623
      %v670 = vpop.permute.xlu0 %669
      %673 = vset.pattern.permute.xlu0 0
      %674 = vperm.xlu0 %673, %v624
      %v675 = vpop.permute.xlu0 %674
      %678 = vset.pattern.permute.xlu0 0
      %679 = vperm.xlu0 %678, %v625
      %v680 = vpop.permute.xlu0 %679
      %683 = vset.pattern.permute.xlu0 0
      %684 = vperm.xlu0 %683, %v626
      %v685 = vpop.permute.xlu0 %684
      %688 = vset.pattern.permute.xlu0 0
      %689 = vperm.xlu0 %688, %v627
      %v690 = vpop.permute.xlu0 %689
      %693 = vset.pattern.permute.xlu0 0
      %694 = vperm.xlu0 %693, %v628
      %v695 = vpop.permute.xlu0 %694
      %698 = vset.pattern.permute.xlu0 0
      %699 = vperm.xlu0 %698, %v629
      %v700 = vpop.permute.xlu0 %699
      %703 = vset.pattern.permute.xlu0 0
      %704 = vperm.xlu0 %703, %v630
      %v705 = vpop.permute.xlu0 %704
      %708 = vset.pattern.permute.xlu0 0
      %709 = vperm.xlu0 %708, %v631
      %v710 = vpop.permute.xlu0 %709
      %713 = vset.pattern.permute.xlu0 0
      %714 = vperm.xlu0 %713, %v632
      %v715 = vpop.permute.xlu0 %714
      %718 = vset.pattern.permute.xlu0 0
      %719 = vperm.xlu0 %718, %v633
      %v720 = vpop.permute.xlu0 %719
      %723 = vset.pattern.permute.xlu0 0
      %724 = vperm.xlu0 %723, %v634
      %v725 = vpop.permute.xlu0 %724
      %728 = vset.pattern.permute.xlu0 0
      %729 = vperm.xlu0 %728, %v635
      %v730 = vpop.permute.xlu0 %729
      %733 = vset.pattern.permute.xlu0 0
      %734 = vperm.xlu0 %733, %v636
      %v735 = vpop.permute.xlu0 %734
      %738 = vset.pattern.permute.xlu0 0
      %739 = vperm.xlu0 %738, %v637
      %v740 = vpop.permute.xlu0 %739
      %743 = vset.pattern.permute.xlu0 0
      %744 = vperm.xlu0 %743, %v638
      %v745 = vpop.permute.xlu0 %744
      %748 = vset.pattern.permute.xlu0 0
      %749 = vperm.xlu0 %748, %v639
      %v750 = vpop.permute.xlu0 %749
      %753 = vset.pattern.permute.xlu0 0
      %754 = vperm.xlu0 %753, %v640
      %v755 = vpop.permute.xlu0 %754
      %758 = vset.pattern.permute.xlu0 0
      %759 = vperm.xlu0 %758, %v641
      %v760 = vpop.permute.xlu0 %759
      %763 = vset.pattern.permute.xlu0 0
      %764 = vperm.xlu0 %763, %v642
      %v765 = vpop.permute.xlu0 %764
      %768 = vset.pattern.permute.xlu0 0
      %769 = vperm.xlu0 %768, %v643
      %v770 = vpop.permute.xlu0 %769
      %773 = vset.pattern.permute.xlu0 0
      %774 = vperm.xlu0 %773, %v644
      %v775 = vpop.permute.xlu0 %774
      %778 = vset.pattern.permute.xlu0 0
      %779 = vperm.xlu0 %778, %v645
      %v780 = vpop.permute.xlu0 %779
      %783 = vset.pattern.permute.xlu0 0
      %784 = vperm.xlu0 %783, %v646
      %v785 = vpop.permute.xlu0 %784
      %788 = vset.pattern.permute.xlu0 0
      %789 = vperm.xlu0 %788, %v647
      %v790 = vpop.permute.xlu0 %789
      %793 = vset.pattern.permute.xlu0 0
      %794 = vperm.xlu0 %793, %v648
      %v795 = vpop.permute.xlu0 %794
      %798 = vset.pattern.permute.xlu0 0
      %799 = vperm.xlu0 %798, %v649
      %v800 = vpop.permute.xlu0 %799
      %803 = vset.pattern.permute.xlu0 0
      %804 = vperm.xlu0 %803, %v650
      %v805 = vpop.permute.xlu0 %804
      %808 = vset.pattern.permute.xlu0 0
      %809 = vperm.xlu0 %808, %v651
      %v810 = vpop.permute.xlu0 %809
      %v812 = vmul.f32 %v588, %v655
      %v813 = vmul.f32 %v589, %v660
      %v814 = vmul.f32 %v590, %v665
      %v815 = vmul.f32 %v591, %v670
      %v816 = vmul.f32 %v592, %v675
      %v817 = vmul.f32 %v593, %v680
      %v818 = vmul.f32 %v594, %v685
      %v819 = vmul.f32 %v595, %v690
      %v820 = vmul.f32 %v596, %v695
      %v821 = vmul.f32 %v597, %v700
      %v822 = vmul.f32 %v598, %v705
      %v823 = vmul.f32 %v599, %v710
      %v824 = vmul.f32 %v600, %v715
      %v825 = vmul.f32 %v601, %v720
      %v826 = vmul.f32 %v602, %v725
      %v827 = vmul.f32 %v603, %v730
      %v828 = vmul.f32 %v604, %v735
      %v829 = vmul.f32 %v605, %v740
      %v830 = vmul.f32 %v606, %v745
      %v831 = vmul.f32 %v607, %v750
      %v832 = vmul.f32 %v608, %v755
      %v833 = vmul.f32 %v609, %v760
      %v834 = vmul.f32 %v610, %v765
      %v835 = vmul.f32 %v611, %v770
      %v836 = vmul.f32 %v612, %v775
      %v837 = vmul.f32 %v613, %v780
      %v838 = vmul.f32 %v614, %v785
      %v839 = vmul.f32 %v615, %v790
      %v840 = vmul.f32 %v616, %v795
      %v841 = vmul.f32 %v617, %v800
      %v842 = vmul.f32 %v618, %v805
      %v843 = vmul.f32 %v619, %v810
      %v844 = vpack.c.bf16 %v813, %v812
      %v845 = vpack.c.bf16 %v815, %v814
      %v846 = vpack.c.bf16 %v817, %v816
      %v847 = vpack.c.bf16 %v819, %v818
      %v848 = vpack.c.bf16 %v821, %v820
      %v849 = vpack.c.bf16 %v823, %v822
      %v850 = vpack.c.bf16 %v825, %v824
      %v851 = vpack.c.bf16 %v827, %v826
      %v852 = vpack.c.bf16 %v829, %v828
      %v853 = vpack.c.bf16 %v831, %v830
      %v854 = vpack.c.bf16 %v833, %v832
      %v855 = vpack.c.bf16 %v835, %v834
      %v856 = vpack.c.bf16 %v837, %v836
      %v857 = vpack.c.bf16 %v839, %v838
      %v858 = vpack.c.bf16 %v841, %v840
      %v859 = vpack.c.bf16 %v843, %v842
      %v860 = vld [vmem:[#allocation2] sm:$0xff]
      %v861 = vld [vmem:[#allocation2 + $0x8] sm:$0xff]
      %v862 = vld [vmem:[#allocation2 + $0x10] sm:$0xff]
      %v863 = vld [vmem:[#allocation2 + $0x18] sm:$0xff]
      %v864 = vld [vmem:[#allocation2 + $0x20] sm:$0xff]
      %v865 = vld [vmem:[#allocation2 + $0x28] sm:$0xff]
      %v866 = vld [vmem:[#allocation2 + $0x30] sm:$0xff]
      %v867 = vld [vmem:[#allocation2 + $0x38] sm:$0xff]
      %v868 = vld [vmem:[%s505] sm:$0xff]
      %v869 = vld [vmem:[%s505 + $0x8] sm:$0xff]
      %v870 = vld [vmem:[%s505 + $0x10] sm:$0xff]
      %v871 = vld [vmem:[%s505 + $0x18] sm:$0xff]
      %v872 = vld [vmem:[%s505 + $0x20] sm:$0xff]
      %v873 = vld [vmem:[%s505 + $0x28] sm:$0xff]
      %v874 = vld [vmem:[%s505 + $0x30] sm:$0xff]
      %v875 = vld [vmem:[%s505 + $0x38] sm:$0xff]
      %v884 = vunpack.c.l.b16 %v868
      %v885 = vunpack.c.h.b16 %v868
      %v886 = vunpack.c.l.b16 %v869
      %v887 = vunpack.c.h.b16 %v869
      %v888 = vunpack.c.l.b16 %v870
      %v889 = vunpack.c.h.b16 %v870
      %v890 = vunpack.c.l.b16 %v871
      %v891 = vunpack.c.h.b16 %v871
      %v892 = vunpack.c.l.b16 %v872
      %v893 = vunpack.c.h.b16 %v872
      %v894 = vunpack.c.l.b16 %v873
      %v895 = vunpack.c.h.b16 %v873
      %v896 = vunpack.c.l.b16 %v874
      %v897 = vunpack.c.h.b16 %v874
      %v898 = vunpack.c.l.b16 %v875
      %v899 = vunpack.c.h.b16 %v875
      %v900 = vpack.c.b16 %v886, %v884
      %v901 = vpack.c.b16 %v887, %v885
      %v902 = vpack.c.b16 %v890, %v888
      %v903 = vpack.c.b16 %v891, %v889
      %v904 = vpack.c.b16 %v894, %v892
      %v905 = vpack.c.b16 %v895, %v893
      %v906 = vpack.c.b16 %v898, %v896
      %v907 = vpack.c.b16 %v899, %v897
      %916 = vmatprep.subr.bf16.mxu0 0
      %917 = vmatpush1.bf16.msra.mxu0 %v844
      %918 = vmatprep.subr.bf16.mxu0 0
      %919 = vmatpush1.bf16.msra.mxu0 %v845
      %920 = vmatprep.subr.bf16.mxu0 0
      %921 = vmatpush1.bf16.msra.mxu0 %v846
      %922 = vmatprep.subr.bf16.mxu0 0
      %923 = vmatpush1.bf16.msra.mxu0 %v847
      %924 = vmatprep.subr.bf16.mxu0 0
      %925 = vmatpush1.bf16.msra.mxu0 %v848
      %926 = vmatprep.subr.bf16.mxu0 0
      %927 = vmatpush1.bf16.msra.mxu0 %v849
      %928 = vmatprep.subr.bf16.mxu0 0
      %929 = vmatpush1.bf16.msra.mxu0 %v850
      %930 = vmatprep.subr.bf16.mxu0 0
      %931 = vmatpush1.bf16.msra.mxu0 %v851
      %932 = vmatprep.subr.bf16.mxu0 0
      %933 = vmatpush1.bf16.msra.mxu0 %v852
      %934 = vmatprep.subr.bf16.mxu0 0
      %935 = vmatpush1.bf16.msra.mxu0 %v853
      %936 = vmatprep.subr.bf16.mxu0 0
      %937 = vmatpush1.bf16.msra.mxu0 %v854
      %938 = vmatprep.subr.bf16.mxu0 0
      %939 = vmatpush1.bf16.msra.mxu0 %v855
      %940 = vmatprep.subr.bf16.mxu0 0
      %941 = vmatpush1.bf16.msra.mxu0 %v856
      %942 = vmatprep.subr.bf16.mxu0 0
      %943 = vmatpush1.bf16.msra.mxu0 %v857
      %944 = vmatprep.subr.bf16.mxu0 0
      %945 = vmatpush1.bf16.msra.mxu0 %v858
      %946 = vmatprep.subr.bf16.mxu0 0
      %947 = vmatpush1.bf16.msra.mxu0 %v859
      %948 = vmatprep.mubr.bf16.mxu0 %v901
      %949 = vmatmul.mubr.bf16.gmra.mrb[0].mxu0 %v900
      %v950 = vpop.f32.mrb[0].mxu0
      %v951 = vadd.f32 0.0, %v950
      %v952 = vpop.f32.mrb[0].mxu0
      %v953 = vpop.f32.mrb[0].mxu0
      %v954 = vadd.f32 0.0, %v953
      %v955 = vpop.f32.mrb[0].mxu0
      %956 = vmatprep.mubr.bf16.mxu0 %v903
      %957 = vmatmul.mubr.bf16.gmra.mrb[0].mxu0 %v902
      %v958 = vpop.f32.mrb[0].mxu0
      %v959 = vadd.f32 0.0, %v958
      %v960 = vpop.f32.mrb[0].mxu0
      %v961 = vpop.f32.mrb[0].mxu0
      %v962 = vadd.f32 0.0, %v961
      %v963 = vpop.f32.mrb[0].mxu0
      %964 = vmatprep.mubr.bf16.mxu0 %v905
      %965 = vmatmul.mubr.bf16.gmra.mrb[0].mxu0 %v904
      %v966 = vpop.f32.mrb[0].mxu0
      %v967 = vadd.f32 0.0, %v966
      %v968 = vpop.f32.mrb[0].mxu0
      %v969 = vpop.f32.mrb[0].mxu0
      %v970 = vadd.f32 0.0, %v969
      %v971 = vpop.f32.mrb[0].mxu0
      %972 = vmatprep.mubr.bf16.mxu0 %v907
      %973 = vmatmul.mubr.bf16.gmra.mrb[0].mxu0 %v906
      %v974 = vpop.f32.mrb[0].mxu0
      %v975 = vadd.f32 0.0, %v974
      %v976 = vpop.f32.mrb[0].mxu0
      %v977 = vpop.f32.mrb[0].mxu0
      %v978 = vadd.f32 0.0, %v977
      %v979 = vpop.f32.mrb[0].mxu0
      %980 = vdwg.mxu0
      %v981 = vadd.f32 %v860, %v951
      %v982 = vadd.f32 %v861, %v954
      %v983 = vadd.f32 %v862, %v959
      %v984 = vadd.f32 %v863, %v962
      %v985 = vadd.f32 %v864, %v967
      %v986 = vadd.f32 %v865, %v970
      %v987 = vadd.f32 %v866, %v975
      %v988 = vadd.f32 %v867, %v978
      %989 = vst [vmem:[#allocation2] sm:$0xff] %v981
      %990 = vst [vmem:[#allocation2 + $0x8] sm:$0xff] %v982
      %991 = vst [vmem:[#allocation2 + $0x10] sm:$0xff] %v983
      %992 = vst [vmem:[#allocation2 + $0x18] sm:$0xff] %v984
      %993 = vst [vmem:[#allocation2 + $0x20] sm:$0xff] %v985
      %994 = vst [vmem:[#allocation2 + $0x28] sm:$0xff] %v986
      %995 = vst [vmem:[#allocation2 + $0x30] sm:$0xff] %v987
      %996 = vst [vmem:[#allocation2 + $0x38] sm:$0xff] %v988
      // Predicated region
      $region73: #{selective_multihop_gcn.5} parent=67 // pred_check
        %p997 = pneg %p539
      $region74: #{selective_multihop_gcn.5} parent=67 // pred_check_branch
        %999 = sbr.rel (%p997) target = $region76
      $region75: #{selective_multihop_gcn.5} parent=67 // pred_region
        %v1000 = vld [vmem:[#allocation2] sm:$0xff]
        %v1001 = vld [vmem:[#allocation2 + $0x8] sm:$0xff]
        %v1002 = vld [vmem:[#allocation2 + $0x10] sm:$0xff]
        %v1003 = vld [vmem:[#allocation2 + $0x18] sm:$0xff]
        %v1004 = vld [vmem:[#allocation2 + $0x20] sm:$0xff]
        %v1005 = vld [vmem:[#allocation2 + $0x28] sm:$0xff]
        %v1006 = vld [vmem:[#allocation2 + $0x30] sm:$0xff]
        %v1007 = vld [vmem:[#allocation2 + $0x38] sm:$0xff]
        %v1008 = vpack.c.bf16 %v1001, %v1000
        %v1009 = vpack.c.bf16 %v1003, %v1002
        %v1010 = vpack.c.bf16 %v1005, %v1004
        %v1011 = vpack.c.bf16 %v1007, %v1006
        %v1012 = vld [vmem:[%s4] sm:$0xf]
        %v1013 = vld [vmem:[%s4 + $0x4] sm:$0xf]
        %v1014 = vld [vmem:[%s4 + $0x8] sm:$0xf]
        %v1015 = vld [vmem:[%s4 + $0xc] sm:$0xf]
        %v1016 = vld [vmem:[%s4 + $0x10] sm:$0xf]
        %v1017 = vld [vmem:[%s4 + $0x14] sm:$0xf]
        %v1018 = vld [vmem:[%s4 + $0x18] sm:$0xf]
        %v1019 = vld [vmem:[%s4 + $0x1c] sm:$0xf]
        %v1020 = vld [vmem:[%s4 + $0x20] sm:$0xf]
        %v1021 = vld [vmem:[%s4 + $0x24] sm:$0xf]
        %v1022 = vld [vmem:[%s4 + $0x28] sm:$0xf]
        %v1023 = vld [vmem:[%s4 + $0x2c] sm:$0xf]
        %v1024 = vld [vmem:[%s4 + $0x30] sm:$0xf]
        %v1025 = vld [vmem:[%s4 + $0x34] sm:$0xf]
        %v1026 = vld [vmem:[%s4 + $0x38] sm:$0xf]
        %v1027 = vld [vmem:[%s4 + $0x3c] sm:$0xf]
        %v1044 = vunpack.c.l.b16 %v1012
        %v1045 = vunpack.c.l.b16 %v1013
        %v1046 = vunpack.c.l.b16 %v1014
        %v1047 = vunpack.c.l.b16 %v1015
        %v1048 = vunpack.c.l.b16 %v1016
        %v1049 = vunpack.c.l.b16 %v1017
        %v1050 = vunpack.c.l.b16 %v1018
        %v1051 = vunpack.c.l.b16 %v1019
        %v1052 = vunpack.c.l.b16 %v1020
        %v1053 = vunpack.c.l.b16 %v1021
        %v1054 = vunpack.c.l.b16 %v1022
        %v1055 = vunpack.c.l.b16 %v1023
        %v1056 = vunpack.c.l.b16 %v1024
        %v1057 = vunpack.c.l.b16 %v1025
        %v1058 = vunpack.c.l.b16 %v1026
        %v1059 = vunpack.c.l.b16 %v1027
        %v1060 = vpack.c.b16 %v1045, %v1044
        %v1061 = vpack.c.b16 %v1047, %v1046
        %v1062 = vpack.c.b16 %v1049, %v1048
        %v1063 = vpack.c.b16 %v1051, %v1050
        %v1064 = vpack.c.b16 %v1053, %v1052
        %v1065 = vpack.c.b16 %v1055, %v1054
        %v1066 = vpack.c.b16 %v1057, %v1056
        %v1067 = vpack.c.b16 %v1059, %v1058
        %1076 = vmatprep.subr.bf16.mxu0 0
        %1077 = vmatpush1.bf16.msra.mxu0 %v1060
        %1078 = vmatprep.subr.bf16.mxu0 0
        %1079 = vmatpush1.bf16.msra.mxu0 %v1061
        %1080 = vmatprep.subr.bf16.mxu0 0
        %1081 = vmatpush1.bf16.msra.mxu0 %v1062
        %1082 = vmatprep.subr.bf16.mxu0 0
        %1083 = vmatpush1.bf16.msra.mxu0 %v1063
        %1084 = vmatprep.subr.bf16.mxu0 0
        %1085 = vmatpush1.bf16.msra.mxu0 %v1064
        %1086 = vmatprep.subr.bf16.mxu0 0
        %1087 = vmatpush1.bf16.msra.mxu0 %v1065
        %1088 = vmatprep.subr.bf16.mxu0 0
        %1089 = vmatpush1.bf16.msra.mxu0 %v1066
        %1090 = vmatprep.subr.bf16.mxu0 0
        %1091 = vmatpush1.bf16.msra.mxu0 %v1067
        %1092 = vmatprep.subr.bf16.mxu0 0
        %1093 = vmatpush1.bf16.msra.mxu0 0
        %1094 = vmatprep.subr.bf16.mxu0 0
        %1095 = vmatpush1.bf16.msra.mxu0 0
        %1096 = vmatprep.subr.bf16.mxu0 0
        %1097 = vmatpush1.bf16.msra.mxu0 0
        %1098 = vmatprep.subr.bf16.mxu0 0
        %1099 = vmatpush1.bf16.msra.mxu0 0
        %1100 = vmatprep.subr.bf16.mxu0 0
        %1101 = vmatpush1.bf16.msra.mxu0 0
        %1102 = vmatprep.subr.bf16.mxu0 0
        %1103 = vmatpush1.bf16.msra.mxu0 0
        %1104 = vmatprep.subr.bf16.mxu0 0
        %1105 = vmatpush1.bf16.msra.mxu0 0
        %1106 = vmatprep.subr.bf16.mxu0 0
        %1107 = vmatpush1.bf16.msra.mxu0 0
        %1108 = vmatprep.mubr.bf16.mxu0 0
        %1109 = vmatmul.mubr.bf16.gmra.mrb[0].mxu0 %v1008
        %v1110 = vpop.f32.mrb[0].mxu0
        %v1111 = vadd.f32 0.0, %v1110
        %v1112 = vpop.f32.mrb[0].mxu0
        %v1113 = vpop.f32.mrb[0].mxu0
        %v1114 = vadd.f32 0.0, %v1113
        %v1115 = vpop.f32.mrb[0].mxu0
        %1116 = vmatprep.mubr.bf16.mxu0 0
        %1117 = vmatmul.mubr.bf16.gmra.mrb[0].mxu0 %v1009
        %v1118 = vpop.f32.mrb[0].mxu0
        %v1119 = vadd.f32 0.0, %v1118
        %v1120 = vpop.f32.mrb[0].mxu0
        %v1121 = vpop.f32.mrb[0].mxu0
        %v1122 = vadd.f32 0.0, %v1121
        %v1123 = vpop.f32.mrb[0].mxu0
        %1124 = vmatprep.mubr.bf16.mxu0 0
        %1125 = vmatmul.mubr.bf16.gmra.mrb[0].mxu0 %v1010
        %v1126 = vpop.f32.mrb[0].mxu0
        %v1127 = vadd.f32 0.0, %v1126
        %v1128 = vpop.f32.mrb[0].mxu0
        %v1129 = vpop.f32.mrb[0].mxu0
        %v1130 = vadd.f32 0.0, %v1129
        %v1131 = vpop.f32.mrb[0].mxu0
        %1132 = vmatprep.mubr.bf16.mxu0 0
        %1133 = vmatmul.mubr.bf16.gmra.mrb[0].mxu0 %v1011
        %v1134 = vpop.f32.mrb[0].mxu0
        %v1135 = vadd.f32 0.0, %v1134
        %v1136 = vpop.f32.mrb[0].mxu0
        %v1137 = vpop.f32.mrb[0].mxu0
        %v1138 = vadd.f32 0.0, %v1137
        %v1139 = vpop.f32.mrb[0].mxu0
        %1140 = vdwg.mxu0
        %v1141 = vld [vmem:[%s518] sm:$0xff]
        %v1142 = vld [vmem:[%s518 + $0x8] sm:$0xff]
        %v1143 = vld [vmem:[%s518 + $0x10] sm:$0xff]
        %v1144 = vld [vmem:[%s518 + $0x18] sm:$0xff]
        %v1145 = vld [vmem:[%s518 + $0x20] sm:$0xff]
        %v1146 = vld [vmem:[%s518 + $0x28] sm:$0xff]
        %v1147 = vld [vmem:[%s518 + $0x30] sm:$0xff]
        %v1148 = vld [vmem:[%s518 + $0x38] sm:$0xff]
        %1150 = vset.pattern.permute.xlu0 0
        %1151 = vperm.xlu0 %1150, %v1141
        %v1152 = vpop.permute.xlu0 %1151
        %1155 = vset.pattern.permute.xlu0 0
        %1156 = vperm.xlu0 %1155, %v1142
        %v1157 = vpop.permute.xlu0 %1156
        %1160 = vset.pattern.permute.xlu0 0
        %1161 = vperm.xlu0 %1160, %v1143
        %v1162 = vpop.permute.xlu0 %1161
        %1165 = vset.pattern.permute.xlu0 0
        %1166 = vperm.xlu0 %1165, %v1144
        %v1167 = vpop.permute.xlu0 %1166
        %1170 = vset.pattern.permute.xlu0 0
        %1171 = vperm.xlu0 %1170, %v1145
        %v1172 = vpop.permute.xlu0 %1171
        %1175 = vset.pattern.permute.xlu0 0
        %1176 = vperm.xlu0 %1175, %v1146
        %v1177 = vpop.permute.xlu0 %1176
        %1180 = vset.pattern.permute.xlu0 0
        %1181 = vperm.xlu0 %1180, %v1147
        %v1182 = vpop.permute.xlu0 %1181
        %1185 = vset.pattern.permute.xlu0 0
        %1186 = vperm.xlu0 %1185, %v1148
        %v1187 = vpop.permute.xlu0 %1186
        %v1189 = vmul.f32 %v1111, %v1152
        %v1190 = vmul.f32 %v1114, %v1157
        %v1191 = vmul.f32 %v1119, %v1162
        %v1192 = vmul.f32 %v1122, %v1167
        %v1193 = vmul.f32 %v1127, %v1172
        %v1194 = vmul.f32 %v1130, %v1177
        %v1195 = vmul.f32 %v1135, %v1182
        %v1196 = vmul.f32 %v1138, %v1187
        %v1197 = vld [vmem:[%s5] sm:$0x1]
        %v1199 = vlaneseq
        %v1200 = vshrl.u32 %v1199, 7
        %v1201 = vsub.s32 0, %v1200
        %v1202 = vrot.slane %v1197, %v1201
        %v1204 = vadd.f32 %v1189, %v1202
        %v1205 = vadd.f32 %v1190, %v1202
        %v1206 = vadd.f32 %v1191, %v1202
        %v1207 = vadd.f32 %v1192, %v1202
        %v1208 = vadd.f32 %v1193, %v1202
        %v1209 = vadd.f32 %v1194, %v1202
        %v1210 = vadd.f32 %v1195, %v1202
        %v1211 = vadd.f32 %v1196, %v1202
        %v1212 = vmax.f32 %v1204, 0.0
        %v1213 = vmax.f32 %v1205, 0.0
        %v1214 = vmax.f32 %v1206, 0.0
        %v1215 = vmax.f32 %v1207, 0.0
        %v1216 = vmax.f32 %v1208, 0.0
        %v1217 = vmax.f32 %v1209, 0.0
        %v1218 = vmax.f32 %v1210, 0.0
        %v1219 = vmax.f32 %v1211, 0.0
        %v1220 = vld [vmem:[%s524] sm:$0xf]
        %v1221 = vld [vmem:[%s524 + $0x4] sm:$0xf]
        %v1222 = vld [vmem:[%s524 + $0x8] sm:$0xf]
        %v1223 = vld [vmem:[%s524 + $0xc] sm:$0xf]
        %v1224 = vld [vmem:[%s524 + $0x10] sm:$0xf]
        %v1225 = vld [vmem:[%s524 + $0x14] sm:$0xf]
        %v1226 = vld [vmem:[%s524 + $0x18] sm:$0xf]
        %v1227 = vld [vmem:[%s524 + $0x1c] sm:$0xf]
        %v1228 = vunpack.c.l.bf16 %v1220
        %v1229 = vunpack.c.l.bf16 %v1221
        %v1230 = vunpack.c.l.bf16 %v1222
        %v1231 = vunpack.c.l.bf16 %v1223
        %v1232 = vunpack.c.l.bf16 %v1224
        %v1233 = vunpack.c.l.bf16 %v1225
        %v1234 = vunpack.c.l.bf16 %v1226
        %v1235 = vunpack.c.l.bf16 %v1227
        %v1236 = vld [vmem:[%s8] sm:$0x1]
        %v1238 = vlaneseq
        %v1239 = vshrl.u32 %v1238, 7
        %v1240 = vsub.s32 0, %v1239
        %v1241 = vrot.slane %v1236, %v1240
        %v1243 = vmul.f32 %v1228, %v1241
        %v1244 = vmul.f32 %v1229, %v1241
        %v1245 = vmul.f32 %v1230, %v1241
        %v1246 = vmul.f32 %v1231, %v1241
        %v1247 = vmul.f32 %v1232, %v1241
        %v1248 = vmul.f32 %v1233, %v1241
        %v1249 = vmul.f32 %v1234, %v1241
        %v1250 = vmul.f32 %v1235, %v1241
        %1251 = vadd.xlane.f32.xlu0 %v1243
        %v1252 = vpop.xlane.xlu0 %1251
        %1253 = vadd.xlane.f32.xlu0 %v1244
        %v1254 = vpop.xlane.xlu0 %1253
        %1255 = vadd.xlane.f32.xlu0 %v1245
        %v1256 = vpop.xlane.xlu0 %1255
        %1257 = vadd.xlane.f32.xlu0 %v1246
        %v1258 = vpop.xlane.xlu0 %1257
        %1259 = vadd.xlane.f32.xlu0 %v1247
        %v1260 = vpop.xlane.xlu0 %1259
        %1261 = vadd.xlane.f32.xlu0 %v1248
        %v1262 = vpop.xlane.xlu0 %1261
        %1263 = vadd.xlane.f32.xlu0 %v1249
        %v1264 = vpop.xlane.xlu0 %1263
        %1265 = vadd.xlane.f32.xlu0 %v1250
        %v1266 = vpop.xlane.xlu0 %1265
        %v1267 = vld [vmem:[%s530] sm:$0xf]
        %v1268 = vld [vmem:[%s530 + $0x4] sm:$0xf]
        %v1269 = vld [vmem:[%s530 + $0x8] sm:$0xf]
        %v1270 = vld [vmem:[%s530 + $0xc] sm:$0xf]
        %v1271 = vld [vmem:[%s530 + $0x10] sm:$0xf]
        %v1272 = vld [vmem:[%s530 + $0x14] sm:$0xf]
        %v1273 = vld [vmem:[%s530 + $0x18] sm:$0xf]
        %v1274 = vld [vmem:[%s530 + $0x1c] sm:$0xf]
        %v1275 = vunpack.c.l.bf16 %v1267
        %v1276 = vunpack.c.l.bf16 %v1268
        %v1277 = vunpack.c.l.bf16 %v1269
        %v1278 = vunpack.c.l.bf16 %v1270
        %v1279 = vunpack.c.l.bf16 %v1271
        %v1280 = vunpack.c.l.bf16 %v1272
        %v1281 = vunpack.c.l.bf16 %v1273
        %v1282 = vunpack.c.l.bf16 %v1274
        %v1283 = vld [vmem:[%s9] sm:$0x1]
        %v1285 = vlaneseq
        %v1286 = vshrl.u32 %v1285, 7
        %v1287 = vsub.s32 0, %v1286
        %v1288 = vrot.slane %v1283, %v1287
        %v1290 = vmul.f32 %v1275, %v1288
        %v1291 = vmul.f32 %v1276, %v1288
        %v1292 = vmul.f32 %v1277, %v1288
        %v1293 = vmul.f32 %v1278, %v1288
        %v1294 = vmul.f32 %v1279, %v1288
        %v1295 = vmul.f32 %v1280, %v1288
        %v1296 = vmul.f32 %v1281, %v1288
        %v1297 = vmul.f32 %v1282, %v1288
        %1298 = vadd.xlane.f32.xlu0 %v1290
        %v1299 = vpop.xlane.xlu0 %1298
        %1300 = vadd.xlane.f32.xlu0 %v1291
        %v1301 = vpop.xlane.xlu0 %1300
        %1302 = vadd.xlane.f32.xlu0 %v1292
        %v1303 = vpop.xlane.xlu0 %1302
        %1304 = vadd.xlane.f32.xlu0 %v1293
        %v1305 = vpop.xlane.xlu0 %1304
        %1306 = vadd.xlane.f32.xlu0 %v1294
        %v1307 = vpop.xlane.xlu0 %1306
        %1308 = vadd.xlane.f32.xlu0 %v1295
        %v1309 = vpop.xlane.xlu0 %1308
        %1310 = vadd.xlane.f32.xlu0 %v1296
        %v1311 = vpop.xlane.xlu0 %1310
        %1312 = vadd.xlane.f32.xlu0 %v1297
        %v1313 = vpop.xlane.xlu0 %1312
        %v1314 = vadd.f32 %v1252, %v1299
        %v1315 = vadd.f32 %v1254, %v1301
        %v1316 = vadd.f32 %v1256, %v1303
        %v1317 = vadd.f32 %v1258, %v1305
        %v1318 = vadd.f32 %v1260, %v1307
        %v1319 = vadd.f32 %v1262, %v1309
        %v1320 = vadd.f32 %v1264, %v1311
        %v1321 = vadd.f32 %v1266, %v1313
        %v1322 = vld [vmem:[%s10] sm:$0x1]
        %v1324 = vlaneseq
        %v1325 = vshrl.u32 %v1324, 7
        %v1326 = vsub.s32 0, %v1325
        %v1327 = vrot.slane %v1322, %v1326
        %v1329 = vmul.f32 %v1212, %v1327
        %v1330 = vmul.f32 %v1213, %v1327
        %v1331 = vmul.f32 %v1214, %v1327
        %v1332 = vmul.f32 %v1215, %v1327
        %v1333 = vmul.f32 %v1216, %v1327
        %v1334 = vmul.f32 %v1217, %v1327
        %v1335 = vmul.f32 %v1218, %v1327
        %v1336 = vmul.f32 %v1219, %v1327
        %1337 = vadd.xlane.f32.xlu0 %v1329
        %v1338 = vpop.xlane.xlu0 %1337
        %1339 = vadd.xlane.f32.xlu0 %v1330
        %v1340 = vpop.xlane.xlu0 %1339
        %1341 = vadd.xlane.f32.xlu0 %v1331
        %v1342 = vpop.xlane.xlu0 %1341
        %1343 = vadd.xlane.f32.xlu0 %v1332
        %v1344 = vpop.xlane.xlu0 %1343
        %1345 = vadd.xlane.f32.xlu0 %v1333
        %v1346 = vpop.xlane.xlu0 %1345
        %1347 = vadd.xlane.f32.xlu0 %v1334
        %v1348 = vpop.xlane.xlu0 %1347
        %1349 = vadd.xlane.f32.xlu0 %v1335
        %v1350 = vpop.xlane.xlu0 %1349
        %1351 = vadd.xlane.f32.xlu0 %v1336
        %v1352 = vpop.xlane.xlu0 %1351
        %v1353 = vadd.f32 %v1314, %v1338
        %v1354 = vadd.f32 %v1315, %v1340
        %v1355 = vadd.f32 %v1316, %v1342
        %v1356 = vadd.f32 %v1317, %v1344
        %v1357 = vadd.f32 %v1318, %v1346
        %v1358 = vadd.f32 %v1319, %v1348
        %v1359 = vadd.f32 %v1320, %v1350
        %v1360 = vadd.f32 %v1321, %v1352
        %v1361 = vld [vmem:[#allocation3] sm:$0x1]
        %v1363 = vlaneseq
        %v1364 = vshrl.u32 %v1363, 7
        %v1365 = vsub.s32 0, %v1364
        %v1366 = vrot.slane %v1361, %v1365
        %v1368 = vadd.f32 %v1353, %v1366
        %v1369 = vadd.f32 %v1354, %v1366
        %v1370 = vadd.f32 %v1355, %v1366
        %v1371 = vadd.f32 %v1356, %v1366
        %v1372 = vadd.f32 %v1357, %v1366
        %v1373 = vadd.f32 %v1358, %v1366
        %v1374 = vadd.f32 %v1359, %v1366
        %v1375 = vadd.f32 %v1360, %v1366
        %vm1376 = vcmask 7168
        %1377 = vst.msk [vmem:[%s536] sm:$0xff] %vm1376, %v1368
        %1378 = vst.msk [vmem:[%s536 + $0x8] sm:$0xff] %vm1376, %v1369
        %1379 = vst.msk [vmem:[%s536 + $0x10] sm:$0xff] %vm1376, %v1370
        %1380 = vst.msk [vmem:[%s536 + $0x18] sm:$0xff] %vm1376, %v1371
        %1381 = vst.msk [vmem:[%s536 + $0x20] sm:$0xff] %vm1376, %v1372
        %1382 = vst.msk [vmem:[%s536 + $0x28] sm:$0xff] %vm1376, %v1373
        %1383 = vst.msk [vmem:[%s536 + $0x30] sm:$0xff] %vm1376, %v1374
        %1384 = vst.msk [vmem:[%s536 + $0x38] sm:$0xff] %vm1376, %v1375
      $region76: #{selective_multihop_gcn.5} parent=67 // pred_fallthru
        _
      %s1385 = smul.u32 8, %s29
      %p1386 = scmp.lt.s32.totalorder %s1385, 31
      %s1387 = scalar_select %p1386, %s1385, 31
      %s1388 = smul.addr %s1387, 8
      %s1389 = scalar_lea.vmem %s12, %s1388
      // Predicated region
      $region77: #{selective_multihop_gcn.5} parent=67 // pred_check
        %p1390 = pneg %p334
      $region78: #{selective_multihop_gcn.5} parent=67 // pred_check_branch
        %1392 = sbr.rel (%p1390) target = $region80
      $region79: #{selective_multihop_gcn.5} parent=67 // pred_region
        %s1393 = smul.u32 8, %s29
      $region80: #{selective_multihop_gcn.5} parent=67 // pred_fallthru
        _
    $region68: #{selective_multihop_gcn.5} parent=5 // pred_fallthru
      _
    %p1394 = scmp.le.s32.totalorder 2, %s20
    // Predicated region
    $region81: #{selective_multihop_gcn.5} parent=5 // pred_check
      %p1395 = pneg %p1394
    $region82: #{selective_multihop_gcn.5} parent=5 // pred_check_branch
      %1397 = sbr.rel (%p1395) target = $region84
    $region83: #{selective_multihop_gcn.5} parent=5 // pred_region
      %s1398 = ssub.s32 %s20, 2
      // Predicated region
      $region85: #{selective_multihop_gcn.5} parent=83 // pred_check
        %p1399 = pneg %p340
      $region86: #{selective_multihop_gcn.5} parent=83 // pred_check_branch
        %1401 = sbr.rel (%p1399) target = $region88
      $region87: #{selective_multihop_gcn.5} parent=83 // pred_region
        %s1402 = smul.u32 8, %s31
        %p1403 = scmp.lt.s32.totalorder %s1402, 31
        %s1404 = scalar_select %p1403, %s1402, 31
        %s1405 = smul.addr %s1404, 8
        %s1406 = scalar_lea.vmem %s12, %s1405
      $region88: #{selective_multihop_gcn.5} parent=83 // pred_fallthru
        _
    $region84: #{selective_multihop_gcn.5} parent=5 // pred_fallthru
      _
  $region6: #{selective_multihop_gcn.5} parent=0 // loop_footer
    %s24 = sadd.s32 1, %s20
  $region7: #{selective_multihop_gcn.5} parent=0 // loop_footer_branch
    %19 = sbr.rel target = $region3
  $region8: #{selective_multihop_gcn.5} parent=0 // loop_exit
    _

</llo_original>
